<compile_context>
chip_gen: v5e
topology: v5e:2x2
jax: 0.10.0
libtpu: 0.0.40
codegen_flags: <defaults>
</compile_context>

<pallas_src>
import math
import jax
import jax.numpy as jnp
from jax.experimental import pallas as pl
from jax.experimental.pallas import tpu as pltpu

H = 8                       # number of heads (fixed in the PyTorch module)
LEAKY_SLOPE = 0.01
LN_EPS = 1e-5
NEG_INF = -1e9
MXU_DTYPE = jnp.bfloat16    # MXU operand dtype; accumulation stays f32
# Quirk reproduced exactly: scale = sqrt(K.shape[1]) = sqrt(num_heads) = sqrt(8)
INV_SCALE = 1.0 / math.sqrt(float(H))


def _layernorm(x, g, b):
    # One-pass LN: mean and mean-of-squares computed together (both cross-lane
    # reductions can issue back-to-back instead of being serialized).
    mu = jnp.mean(x, axis=-1, keepdims=True)
    m2 = jnp.mean(x * x, axis=-1, keepdims=True)
    var = m2 - mu * mu
    return (x - mu) * jax.lax.rsqrt(var + LN_EPS) * g + b


def _leaky_relu(x):
    return jnp.where(x >= 0, x, LEAKY_SLOPE * x)


def encoder_kernel(x_ref, mask_ref,
                   wqkv_ref, bqkv_ref, wend_ref, bend_ref,
                   w1_ref, b1_ref, w2_ref, b2_ref,
                   g_ref, beta_ref,
                   o_ref):
    # One grid step == block_b batch elements, presented as a [rows, E] slab.
    bt, s, _ = mask_ref.shape
    rows, e = x_ref.shape                 # rows == bt * s
    split = e // H

    x = x_ref[...]                        # [rows, E] f32

    # ---- fused QKV projection: one wide MXU matmul over the whole row slab ----
    # (the 1/sqrt(num_heads) scale is pre-folded into the Q columns/bias)
    qkv = jnp.dot(x.astype(MXU_DTYPE), wqkv_ref[...],
                  preferred_element_type=jnp.float32) + bqkv_ref[...]   # [rows, 3E] f32
    # [bt, S, 3E] view of the activations (layout-preserving when S % 8 == 0)
    qkv3 = qkv.reshape(bt, s, 3 * e).astype(MXU_DTYPE)

    # Mask predicate, shared by all heads (hoisted out of the head loop);
    # applied with where(...) to match masked_fill's replace semantics.
    keep = mask_ref[...].astype(jnp.float32) != 0.0                     # [bt, S, S]

    # ---- attention: static 8-head loop, each head batched over bt elements ----
    # Heads live along lanes (width `split`): each head costs one lane slice,
    # and the 8 contexts are merged with a single lane-concatenate below
    # (no per-head scatter stores, no f32 scratch round-trip).
    ctx_heads = []
    for h in range(H):                    # static: H == 8
        q_h = qkv3[:, :, h * split:(h + 1) * split]
        k_h = qkv3[:, :, e + h * split:e + (h + 1) * split]
        v_h = qkv3[:, :, 2 * e + h * split:2 * e + (h + 1) * split]
        scores = jnp.einsum("bqd,bkd->bqk", q_h, k_h,
                            preferred_element_type=jnp.float32)         # [bt, S, S]
        scores = jnp.where(keep, scores, jnp.float32(NEG_INF))          # masked_fill
        m = jnp.max(scores, axis=-1, keepdims=True)
        ex = jnp.exp(scores - m)
        p = ex * pl.reciprocal(jnp.sum(ex, axis=-1, keepdims=True), approx=True)
        ctx_heads.append(
            jnp.einsum("bqk,bkd->bqd", p.astype(MXU_DTYPE), v_h,
                       preferred_element_type=jnp.float32))             # [bt, S, split]
    attn = jnp.concatenate(ctx_heads, axis=-1).reshape(rows, e)         # [rows, E]

    # ---- end projection + residual + LayerNorm (gamma/beta shared by both) ----
    g = g_ref[...]
    beta = beta_ref[...]
    attn = jnp.dot(attn.astype(MXU_DTYPE), wend_ref[...],
                   preferred_element_type=jnp.float32) + bend_ref[...]
    ln1 = _layernorm(attn + x, g, beta)

    # ---- feed forward (linear -> leaky_relu -> linear) + residual + norm ----
    ff = jnp.dot(ln1.astype(MXU_DTYPE), w1_ref[...],
                 preferred_element_type=jnp.float32) + b1_ref[...]
    ff = _leaky_relu(ff)
    ff = jnp.dot(ff.astype(MXU_DTYPE), w2_ref[...],
                 preferred_element_type=jnp.float32) + b2_ref[...]
    ln2 = _layernorm(ff + ln1, g, beta)
    o_ref[...] = _leaky_relu(ln2).astype(o_ref.dtype)


# --------------------------- sizing / device helpers ---------------------------
def _tensorcores_per_chip():
    """Best-effort: v7x exposes 2 TensorCores per chip; v5e/v6e have one."""
    try:
        kind = jax.devices()[0].device_kind.lower()
    except Exception:
        return 1
    return 2 if "v7" in kind else 1


def _physical_vmem_bytes():
    default = 64 * 1024 * 1024            # assume the smallest (v7x per-core) if unknown
    try:
        info = pltpu.get_tpu_info()
        return int(getattr(info, "vmem_capacity_bytes", default))
    except Exception:
        return default


def _vmem_estimate_bytes(block_b, S, E, *, weight_buffers=1):
    rows = block_b * S
    weights = weight_buffers * (6 * E * E * 2 + 16 * E * 4)   # bf16 matrices + f32 vectors
    io = 2 * (2 * rows * E * 4) + 2 * block_b * S * S         # x/out double-buffered + int8 mask
    # in-kernel temporaries: qkv (f32 + bf16), LN/FF intermediates, per-head scores
    tmp = rows * 3 * E * 6 + 8 * rows * E * 4 + 4 * block_b * S * S * 4
    return weights + io + tmp


def _pick_block_b(B, S, *, multi_tc, target_rows=512):
    """Batches per grid step: target >=256-512 MXU rows per step (v6e/v7x MXU is
    2x256^2; each extra grid step costs ~0.35us).  Only trade rows for grid
    parallelism on multi-TensorCore chips (v7x) - on single-TC v5e/v6e a finer
    grid buys nothing."""
    bt = max(1, min(B, pl.cdiv(target_rows, S)))
    while B % bt:
        bt -= 1
    if multi_tc and B > 1 and B // bt < 2:
        bt = max(1, bt // 2)
        while B % bt:
            bt -= 1
    return bt


# ----------------------------------- wrapper -----------------------------------
def encoder_forward(x, mask, params, *, block_b=None):
    """x: [B, S, E] f32; mask: [B, S, S] (nonzero == keep);
    params: dict of [in, out]-layout weights and [1, out] biases (f32)."""
    B, S, E = x.shape
    assert E % H == 0, "embedding_size must be divisible by the 8 heads"

    multi_tc = _tensorcores_per_chip() >= 2
    if block_b is None:
        block_b = _pick_block_b(B, S, multi_tc=multi_tc)
    assert B % block_b == 0

    # Shrink the batch block first if the VMEM footprint exceeds the cap.
    vmem_cap = int(_physical_vmem_bytes() * 0.85)   # ~54 MiB v7x, ~108 MiB v5e/v6e
    while block_b > 1 and _vmem_estimate_bytes(block_b, S, E) > vmem_cap:
        block_b //= 2
        while B % block_b:
            block_b -= 1
    grid_b = B // block_b
    rows = block_b * S
    vmem_limit = min(vmem_cap,
                     max(32 * 1024 * 1024, 2 * _vmem_estimate_bytes(block_b, S, E)))

    # Flatten (B, S) -> rows so every matmul runs on a [rows, E] slab.
    x2d = x.reshape(B * S, E)
    mask_i8 = (mask != 0).astype(jnp.int8)          # 4x less mask DMA traffic

    # Fused QKV weight/bias built once in the wrapper; 1/sqrt(h) folded into Q.
    wqkv = jnp.concatenate(
        [params["wq"] * INV_SCALE, params["wk"], params["wv"]], axis=1).astype(MXU_DTYPE)
    bqkv = jnp.concatenate(
        [params["bq"] * INV_SCALE, params["bk"], params["bv"]], axis=1)
    wend = params["wend"].astype(MXU_DTYPE)
    w1 = params["w1"].astype(MXU_DTYPE)
    w2 = params["w2"].astype(MXU_DTYPE)

    def _run(single_buffer_weights):
        def blk_spec(shape):
            n = len(shape)
            return pl.BlockSpec(shape, lambda g, _n=n: (g,) + (0,) * (_n - 1))

        def const_spec(shape):
            n = len(shape)
            idx = lambda g, _n=n: (0,) * _n
            if single_buffer_weights:
                # resident weights: don't pay 2x VMEM for double buffering
                return pl.BlockSpec(shape, idx, pipeline_mode=pl.Buffered(1))
            return pl.BlockSpec(shape, idx)

        return pl.pallas_call(
            encoder_kernel,
            out_shape=jax.ShapeDtypeStruct((B * S, E), jnp.float32),
            grid=(grid_b,),
            in_specs=[
                blk_spec((rows, E)),                              # x slab
                blk_spec((block_b, S, S)),                        # mask (int8)
                const_spec((E, 3 * E)), const_spec((1, 3 * E)),   # fused q|k|v
                const_spec((E, E)), const_spec((1, E)),           # linear_end
                const_spec((E, E)), const_spec((1, E)),           # ff layer_1
                const_spec((E, E)), const_spec((1, E)),           # ff layer_2
                const_spec((1, E)), const_spec((1, E)),           # ln gamma, beta
            ],
            out_specs=blk_spec((rows, E)),
            compiler_params=pltpu.CompilerParams(
                dimension_semantics=("parallel",),
                vmem_limit_bytes=int(vmem_limit)),
        )(x2d, mask_i8,
          wqkv, bqkv, wend, params["bend"],
          w1, params["b1"], w2, params["b2"],
          params["gamma"], params["beta"])

    try:
        out2d = _run(True)
    except Exception:
        # pipeline_mode=pl.Buffered(1) not supported on this jax version:
        # fall back to default double-buffered (still correct, just more VMEM).
        out2d = _run(False)

    return out2d.reshape(B, S, E)


# ----------------------- pure-JAX reference (for checking) -----------------------
def encoder_reference(x, mask, p):
    """Module-faithful reference evaluated at the same MXU operand precision
    (bf16 operands, f32 accumulation) as the kernel."""
    B, S, E = x.shape
    split = E // H

    def mm(a, b):
        return jnp.matmul(a.astype(MXU_DTYPE), b.astype(MXU_DTYPE),
                          preferred_element_type=jnp.float32)

    def lin(t, w, b):
        return mm(t, w) + b

    q = (lin(x, p["wq"], p["bq"]) * INV_SCALE).reshape(B, S, H, split).transpose(0, 2, 1, 3)
    k = lin(x, p["wk"], p["bk"]).reshape(B, S, H, split).transpose(0, 2, 1, 3)
    v = lin(x, p["wv"], p["bv"]).reshape(B, S, H, split).transpose(0, 2, 1, 3)
    scores = jnp.einsum("bhqd,bhkd->bhqk", q.astype(MXU_DTYPE), k.astype(MXU_DTYPE),
                        preferred_element_type=jnp.float32)
    scores = jnp.where(mask[:, None, :, :] == 0, NEG_INF, scores)
    attn = jax.nn.softmax(scores, axis=-1)
    ctx = jnp.einsum("bhqk,bhkd->bhqd", attn.astype(MXU_DTYPE), v.astype(MXU_DTYPE),
                     preferred_element_type=jnp.float32)
    ctx = ctx.transpose(0, 2, 1, 3).reshape(B, S, E)
    ctx = lin(ctx, p["wend"], p["bend"]) + x
    ln1 = _layernorm(ctx, p["gamma"], p["beta"])
    ff = lin(_leaky_relu(lin(ln1, p["w1"], p["b1"])), p["w2"], p["b2"]) + ln1
    return _leaky_relu(_layernorm(ff, p["gamma"], p["beta"]))


def make_params(key, E):
    names = ["wq", "wk", "wv", "wend", "w1", "w2"]
    keys = jax.random.split(key, len(names) * 2)
    params = {}
    scale = 1.0 / math.sqrt(E)
    for i, n in enumerate(names):
        params[n] = jax.random.normal(keys[2 * i], (E, E), jnp.float32) * scale
        params["b" + n[1:]] = jax.random.normal(keys[2 * i + 1], (1, E), jnp.float32) * scale
    params["gamma"] = jnp.ones((1, E), jnp.float32)
    params["beta"] = jnp.zeros((1, E), jnp.float32)
    return params


if __name__ == "__main__":
    B, S, E = 2, 8, 32          # embedding_size must be divisible by 8 heads
    key = jax.random.PRNGKey(0)
    kx, kp = jax.random.split(key)
    x = jax.random.normal(kx, (B, S, E), jnp.float32)
    # causal mask (0 above the diagonal) to exercise masked_fill
    mask = jnp.tril(jnp.ones((S, S), jnp.float32))[None].repeat(B, axis=0)
    params = make_params(kp, E)

    out = encoder_forward(x, mask, params)
    out = jax.block_until_ready(out)

    ref = encoder_reference(x, mask, params)
    assert out.shape == (B, S, E)
    max_err = float(jnp.max(jnp.abs(out - ref)))
    assert jnp.allclose(out, ref, rtol=2e-2, atol=2e-2), \
        f"mismatch vs reference (max abs err {max_err})"
    print("KERNEL_OK")
</pallas_src>

<mosaic_0001>
module attributes {stable_mosaic.version = 11 : i64} {
  func.func @encoder_kernel(%arg0: i32, %arg1: memref<16x32xf32, #tpu.memory_space<vmem>>, %arg2: memref<2x8x8xi8, #tpu.memory_space<vmem>>, %arg3: memref<32x96xbf16, #tpu.memory_space<vmem>>, %arg4: memref<1x96xf32, #tpu.memory_space<vmem>>, %arg5: memref<32x32xbf16, #tpu.memory_space<vmem>>, %arg6: memref<1x32xf32, #tpu.memory_space<vmem>>, %arg7: memref<32x32xbf16, #tpu.memory_space<vmem>>, %arg8: memref<1x32xf32, #tpu.memory_space<vmem>>, %arg9: memref<32x32xbf16, #tpu.memory_space<vmem>>, %arg10: memref<1x32xf32, #tpu.memory_space<vmem>>, %arg11: memref<1x32xf32, #tpu.memory_space<vmem>>, %arg12: memref<1x32xf32, #tpu.memory_space<vmem>>, %arg13: memref<16x32xf32, #tpu.memory_space<vmem>>) attributes {dimension_semantics = [#tpu.dimension_semantics<parallel>], iteration_bounds = array<i64: 1>, scalar_prefetch = 0 : i64, scratch_operands = 0 : i64, tpu.core_type = #tpu.core_type<tc>, window_params = [{transform_indices = @transform_0, window_bounds = array<i64: 16, 32>}, {transform_indices = @transform_1, window_bounds = array<i64: 2, 8, 8>}, {pipeline_mode = #tpu.pipeline_mode<synchronous>, transform_indices = @transform_2, window_bounds = array<i64: 32, 96>}, {pipeline_mode = #tpu.pipeline_mode<synchronous>, transform_indices = @transform_3, window_bounds = array<i64: 1, 96>}, {pipeline_mode = #tpu.pipeline_mode<synchronous>, transform_indices = @transform_4, window_bounds = array<i64: 32, 32>}, {pipeline_mode = #tpu.pipeline_mode<synchronous>, transform_indices = @transform_5, window_bounds = array<i64: 1, 32>}, {pipeline_mode = #tpu.pipeline_mode<synchronous>, transform_indices = @transform_6, window_bounds = array<i64: 32, 32>}, {pipeline_mode = #tpu.pipeline_mode<synchronous>, transform_indices = @transform_7, window_bounds = array<i64: 1, 32>}, {pipeline_mode = #tpu.pipeline_mode<synchronous>, transform_indices = @transform_8, window_bounds = array<i64: 32, 32>}, {pipeline_mode = #tpu.pipeline_mode<synchronous>, transform_indices = @transform_9, window_bounds = array<i64: 1, 32>}, {pipeline_mode = #tpu.pipeline_mode<synchronous>, transform_indices = @transform_10, window_bounds = array<i64: 1, 32>}, {pipeline_mode = #tpu.pipeline_mode<synchronous>, transform_indices = @transform_11, window_bounds = array<i64: 1, 32>}, {transform_indices = @transform_12, window_bounds = array<i64: 16, 32>}]} {
    %c0 = arith.constant 0 : index
    %c0_0 = arith.constant 0 : index
    %0 = vector.load %arg1[%c0, %c0_0] : memref<16x32xf32, #tpu.memory_space<vmem>>, vector<16x32xf32>
    %1 = arith.truncf %0 : vector<16x32xf32> to vector<16x32xbf16>
    %c0_1 = arith.constant 0 : index
    %c0_2 = arith.constant 0 : index
    %2 = vector.load %arg3[%c0_1, %c0_2] : memref<32x96xbf16, #tpu.memory_space<vmem>>, vector<32x96xbf16>
    %cst = arith.constant dense<0.000000e+00> : vector<16x96xf32>
    %3 = tpu.matmul %1, %2, %cst {dimension_numbers = #tpu.dot_dimension_numbers<[1], [0], [0], [1], [0, 0, 1, 1], [], []>} : vector<16x32xbf16>, vector<32x96xbf16>, vector<16x96xf32> -> vector<16x96xf32>
    %c0_3 = arith.constant 0 : index
    %c0_4 = arith.constant 0 : index
    %4 = vector.load %arg4[%c0_3, %c0_4] : memref<1x96xf32, #tpu.memory_space<vmem>>, vector<1x96xf32>
    %5 = vector.broadcast %4 : vector<1x96xf32> to vector<16x96xf32>
    %6 = arith.addf %3, %5 : vector<16x96xf32>
    %7 = vector.shape_cast %6 : vector<16x96xf32> to vector<2x8x96xf32>
    %8 = arith.truncf %7 : vector<2x8x96xf32> to vector<2x8x96xbf16>
    %c0_5 = arith.constant 0 : index
    %c0_6 = arith.constant 0 : index
    %c0_7 = arith.constant 0 : index
    %9 = vector.load %arg2[%c0_5, %c0_6, %c0_7] : memref<2x8x8xi8, #tpu.memory_space<vmem>>, vector<2x8x8xi8>
    %10 = arith.sitofp %9 : vector<2x8x8xi8> to vector<2x8x8xf32>
    %cst_8 = arith.constant 0.000000e+00 : f32
    %11 = vector.broadcast %cst_8 : f32 to vector<2x8x8xf32>
    %12 = arith.cmpf one, %10, %11 : vector<2x8x8xf32>
    %13 = vector.extract_strided_slice %8 {offsets = [0, 0, 0], sizes = [2, 8, 4], strides = [1, 1, 1]} : vector<2x8x96xbf16> to vector<2x8x4xbf16>
    %14 = vector.extract_strided_slice %8 {offsets = [0, 0, 32], sizes = [2, 8, 4], strides = [1, 1, 1]} : vector<2x8x96xbf16> to vector<2x8x4xbf16>
    %15 = vector.extract_strided_slice %8 {offsets = [0, 0, 64], sizes = [2, 8, 4], strides = [1, 1, 1]} : vector<2x8x96xbf16> to vector<2x8x4xbf16>
    "tpu.trace_start"() <{level = 10 : i32, message = "bqd,bkd->bqk"}> : () -> ()
    %cst_9 = arith.constant dense<0.000000e+00> : vector<2x8x8xf32>
    %16 = tpu.matmul %13, %14, %cst_9 {dimension_numbers = #tpu.dot_dimension_numbers<[2], [2], [1], [1], [0, 0, 0, 1, 1, 1], [0], [0]>} : vector<2x8x4xbf16>, vector<2x8x4xbf16>, vector<2x8x8xf32> -> vector<2x8x8xf32>
    %cst_10 = arith.constant -1.000000e+09 : f32
    "tpu.trace_stop"() : () -> ()
    %17 = vector.broadcast %cst_10 : f32 to vector<2x8x8xf32>
    %18 = arith.select %12, %16, %17 : vector<2x8x8xi1>, vector<2x8x8xf32>
    %cst_11 = arith.constant dense<0xFF800000> : vector<2x8xf32>
    %19 = vector.multi_reduction <maximumf>, %18, %cst_11 [2] : vector<2x8x8xf32> to vector<2x8xf32>
    %20 = vector.shape_cast %19 : vector<2x8xf32> to vector<2x8x1xf32>
    %21 = vector.broadcast %20 : vector<2x8x1xf32> to vector<2x8x8xf32>
    %22 = arith.subf %18, %21 : vector<2x8x8xf32>
    %23 = math.exp %22 : vector<2x8x8xf32>
    %cst_12 = arith.constant dense<0.000000e+00> : vector<2x8xf32>
    %24 = vector.multi_reduction <add>, %23, %cst_12 [2] : vector<2x8x8xf32> to vector<2x8xf32>
    %25 = vector.shape_cast %24 : vector<2x8xf32> to vector<2x8x1xf32>
    %26 = tpu.reciprocal %25 {approx = true} : vector<2x8x1xf32> -> vector<2x8x1xf32>
    %27 = vector.broadcast %26 : vector<2x8x1xf32> to vector<2x8x8xf32>
    %28 = arith.mulf %23, %27 : vector<2x8x8xf32>
    %29 = arith.truncf %28 : vector<2x8x8xf32> to vector<2x8x8xbf16>
    "tpu.trace_start"() <{level = 10 : i32, message = "bqk,bkd->bqd"}> : () -> ()
    %cst_13 = arith.constant dense<0.000000e+00> : vector<2x8x4xf32>
    %30 = tpu.matmul %29, %15, %cst_13 {dimension_numbers = #tpu.dot_dimension_numbers<[2], [1], [1], [2], [0, 0, 0, 1, 1, 2], [0], [0]>} : vector<2x8x8xbf16>, vector<2x8x4xbf16>, vector<2x8x4xf32> -> vector<2x8x4xf32>
    "tpu.trace_stop"() : () -> ()
    %31 = vector.extract_strided_slice %8 {offsets = [0, 0, 4], sizes = [2, 8, 4], strides = [1, 1, 1]} : vector<2x8x96xbf16> to vector<2x8x4xbf16>
    %32 = vector.extract_strided_slice %8 {offsets = [0, 0, 36], sizes = [2, 8, 4], strides = [1, 1, 1]} : vector<2x8x96xbf16> to vector<2x8x4xbf16>
    %33 = vector.extract_strided_slice %8 {offsets = [0, 0, 68], sizes = [2, 8, 4], strides = [1, 1, 1]} : vector<2x8x96xbf16> to vector<2x8x4xbf16>
    "tpu.trace_start"() <{level = 10 : i32, message = "bqd,bkd->bqk"}> : () -> ()
    %cst_14 = arith.constant dense<0.000000e+00> : vector<2x8x8xf32>
    %34 = tpu.matmul %31, %32, %cst_14 {dimension_numbers = #tpu.dot_dimension_numbers<[2], [2], [1], [1], [0, 0, 0, 1, 1, 1], [0], [0]>} : vector<2x8x4xbf16>, vector<2x8x4xbf16>, vector<2x8x8xf32> -> vector<2x8x8xf32>
    %cst_15 = arith.constant -1.000000e+09 : f32
    "tpu.trace_stop"() : () -> ()
    %35 = vector.broadcast %cst_15 : f32 to vector<2x8x8xf32>
    %36 = arith.select %12, %34, %35 : vector<2x8x8xi1>, vector<2x8x8xf32>
    %cst_16 = arith.constant dense<0xFF800000> : vector<2x8xf32>
    %37 = vector.multi_reduction <maximumf>, %36, %cst_16 [2] : vector<2x8x8xf32> to vector<2x8xf32>
    %38 = vector.shape_cast %37 : vector<2x8xf32> to vector<2x8x1xf32>
    %39 = vector.broadcast %38 : vector<2x8x1xf32> to vector<2x8x8xf32>
    %40 = arith.subf %36, %39 : vector<2x8x8xf32>
    %41 = math.exp %40 : vector<2x8x8xf32>
    %cst_17 = arith.constant dense<0.000000e+00> : vector<2x8xf32>
    %42 = vector.multi_reduction <add>, %41, %cst_17 [2] : vector<2x8x8xf32> to vector<2x8xf32>
    %43 = vector.shape_cast %42 : vector<2x8xf32> to vector<2x8x1xf32>
    %44 = tpu.reciprocal %43 {approx = true} : vector<2x8x1xf32> -> vector<2x8x1xf32>
    %45 = vector.broadcast %44 : vector<2x8x1xf32> to vector<2x8x8xf32>
    %46 = arith.mulf %41, %45 : vector<2x8x8xf32>
    %47 = arith.truncf %46 : vector<2x8x8xf32> to vector<2x8x8xbf16>
    "tpu.trace_start"() <{level = 10 : i32, message = "bqk,bkd->bqd"}> : () -> ()
    %cst_18 = arith.constant dense<0.000000e+00> : vector<2x8x4xf32>
    %48 = tpu.matmul %47, %33, %cst_18 {dimension_numbers = #tpu.dot_dimension_numbers<[2], [1], [1], [2], [0, 0, 0, 1, 1, 2], [0], [0]>} : vector<2x8x8xbf16>, vector<2x8x4xbf16>, vector<2x8x4xf32> -> vector<2x8x4xf32>
    "tpu.trace_stop"() : () -> ()
    %49 = vector.extract_strided_slice %8 {offsets = [0, 0, 8], sizes = [2, 8, 4], strides = [1, 1, 1]} : vector<2x8x96xbf16> to vector<2x8x4xbf16>
    %50 = vector.extract_strided_slice %8 {offsets = [0, 0, 40], sizes = [2, 8, 4], strides = [1, 1, 1]} : vector<2x8x96xbf16> to vector<2x8x4xbf16>
    %51 = vector.extract_strided_slice %8 {offsets = [0, 0, 72], sizes = [2, 8, 4], strides = [1, 1, 1]} : vector<2x8x96xbf16> to vector<2x8x4xbf16>
    "tpu.trace_start"() <{level = 10 : i32, message = "bqd,bkd->bqk"}> : () -> ()
    %cst_19 = arith.constant dense<0.000000e+00> : vector<2x8x8xf32>
    %52 = tpu.matmul %49, %50, %cst_19 {dimension_numbers = #tpu.dot_dimension_numbers<[2], [2], [1], [1], [0, 0, 0, 1, 1, 1], [0], [0]>} : vector<2x8x4xbf16>, vector<2x8x4xbf16>, vector<2x8x8xf32> -> vector<2x8x8xf32>
    %cst_20 = arith.constant -1.000000e+09 : f32
    "tpu.trace_stop"() : () -> ()
    %53 = vector.broadcast %cst_20 : f32 to vector<2x8x8xf32>
    %54 = arith.select %12, %52, %53 : vector<2x8x8xi1>, vector<2x8x8xf32>
    %cst_21 = arith.constant dense<0xFF800000> : vector<2x8xf32>
    %55 = vector.multi_reduction <maximumf>, %54, %cst_21 [2] : vector<2x8x8xf32> to vector<2x8xf32>
    %56 = vector.shape_cast %55 : vector<2x8xf32> to vector<2x8x1xf32>
    %57 = vector.broadcast %56 : vector<2x8x1xf32> to vector<2x8x8xf32>
    %58 = arith.subf %54, %57 : vector<2x8x8xf32>
    %59 = math.exp %58 : vector<2x8x8xf32>
    %cst_22 = arith.constant dense<0.000000e+00> : vector<2x8xf32>
    %60 = vector.multi_reduction <add>, %59, %cst_22 [2] : vector<2x8x8xf32> to vector<2x8xf32>
    %61 = vector.shape_cast %60 : vector<2x8xf32> to vector<2x8x1xf32>
    %62 = tpu.reciprocal %61 {approx = true} : vector<2x8x1xf32> -> vector<2x8x1xf32>
    %63 = vector.broadcast %62 : vector<2x8x1xf32> to vector<2x8x8xf32>
    %64 = arith.mulf %59, %63 : vector<2x8x8xf32>
    %65 = arith.truncf %64 : vector<2x8x8xf32> to vector<2x8x8xbf16>
    "tpu.trace_start"() <{level = 10 : i32, message = "bqk,bkd->bqd"}> : () -> ()
    %cst_23 = arith.constant dense<0.000000e+00> : vector<2x8x4xf32>
    %66 = tpu.matmul %65, %51, %cst_23 {dimension_numbers = #tpu.dot_dimension_numbers<[2], [1], [1], [2], [0, 0, 0, 1, 1, 2], [0], [0]>} : vector<2x8x8xbf16>, vector<2x8x4xbf16>, vector<2x8x4xf32> -> vector<2x8x4xf32>
    "tpu.trace_stop"() : () -> ()
    %67 = vector.extract_strided_slice %8 {offsets = [0, 0, 12], sizes = [2, 8, 4], strides = [1, 1, 1]} : vector<2x8x96xbf16> to vector<2x8x4xbf16>
    %68 = vector.extract_strided_slice %8 {offsets = [0, 0, 44], sizes = [2, 8, 4], strides = [1, 1, 1]} : vector<2x8x96xbf16> to vector<2x8x4xbf16>
    %69 = vector.extract_strided_slice %8 {offsets = [0, 0, 76], sizes = [2, 8, 4], strides = [1, 1, 1]} : vector<2x8x96xbf16> to vector<2x8x4xbf16>
    "tpu.trace_start"() <{level = 10 : i32, message = "bqd,bkd->bqk"}> : () -> ()
    %cst_24 = arith.constant dense<0.000000e+00> : vector<2x8x8xf32>
    %70 = tpu.matmul %67, %68, %cst_24 {dimension_numbers = #tpu.dot_dimension_numbers<[2], [2], [1], [1], [0, 0, 0, 1, 1, 1], [0], [0]>} : vector<2x8x4xbf16>, vector<2x8x4xbf16>, vector<2x8x8xf32> -> vector<2x8x8xf32>
    %cst_25 = arith.constant -1.000000e+09 : f32
    "tpu.trace_stop"() : () -> ()
    %71 = vector.broadcast %cst_25 : f32 to vector<2x8x8xf32>
    %72 = arith.select %12, %70, %71 : vector<2x8x8xi1>, vector<2x8x8xf32>
    %cst_26 = arith.constant dense<0xFF800000> : vector<2x8xf32>
    %73 = vector.multi_reduction <maximumf>, %72, %cst_26 [2] : vector<2x8x8xf32> to vector<2x8xf32>
    %74 = vector.shape_cast %73 : vector<2x8xf32> to vector<2x8x1xf32>
    %75 = vector.broadcast %74 : vector<2x8x1xf32> to vector<2x8x8xf32>
    %76 = arith.subf %72, %75 : vector<2x8x8xf32>
    %77 = math.exp %76 : vector<2x8x8xf32>
    %cst_27 = arith.constant dense<0.000000e+00> : vector<2x8xf32>
    %78 = vector.multi_reduction <add>, %77, %cst_27 [2] : vector<2x8x8xf32> to vector<2x8xf32>
    %79 = vector.shape_cast %78 : vector<2x8xf32> to vector<2x8x1xf32>
    %80 = tpu.reciprocal %79 {approx = true} : vector<2x8x1xf32> -> vector<2x8x1xf32>
    %81 = vector.broadcast %80 : vector<2x8x1xf32> to vector<2x8x8xf32>
    %82 = arith.mulf %77, %81 : vector<2x8x8xf32>
    %83 = arith.truncf %82 : vector<2x8x8xf32> to vector<2x8x8xbf16>
    "tpu.trace_start"() <{level = 10 : i32, message = "bqk,bkd->bqd"}> : () -> ()
    %cst_28 = arith.constant dense<0.000000e+00> : vector<2x8x4xf32>
    %84 = tpu.matmul %83, %69, %cst_28 {dimension_numbers = #tpu.dot_dimension_numbers<[2], [1], [1], [2], [0, 0, 0, 1, 1, 2], [0], [0]>} : vector<2x8x8xbf16>, vector<2x8x4xbf16>, vector<2x8x4xf32> -> vector<2x8x4xf32>
    "tpu.trace_stop"() : () -> ()
    %85 = vector.extract_strided_slice %8 {offsets = [0, 0, 16], sizes = [2, 8, 4], strides = [1, 1, 1]} : vector<2x8x96xbf16> to vector<2x8x4xbf16>
    %86 = vector.extract_strided_slice %8 {offsets = [0, 0, 48], sizes = [2, 8, 4], strides = [1, 1, 1]} : vector<2x8x96xbf16> to vector<2x8x4xbf16>
    %87 = vector.extract_strided_slice %8 {offsets = [0, 0, 80], sizes = [2, 8, 4], strides = [1, 1, 1]} : vector<2x8x96xbf16> to vector<2x8x4xbf16>
    "tpu.trace_start"() <{level = 10 : i32, message = "bqd,bkd->bqk"}> : () -> ()
    %cst_29 = arith.constant dense<0.000000e+00> : vector<2x8x8xf32>
    %88 = tpu.matmul %85, %86, %cst_29 {dimension_numbers = #tpu.dot_dimension_numbers<[2], [2], [1], [1], [0, 0, 0, 1, 1, 1], [0], [0]>} : vector<2x8x4xbf16>, vector<2x8x4xbf16>, vector<2x8x8xf32> -> vector<2x8x8xf32>
    %cst_30 = arith.constant -1.000000e+09 : f32
    "tpu.trace_stop"() : () -> ()
    %89 = vector.broadcast %cst_30 : f32 to vector<2x8x8xf32>
    %90 = arith.select %12, %88, %89 : vector<2x8x8xi1>, vector<2x8x8xf32>
    %cst_31 = arith.constant dense<0xFF800000> : vector<2x8xf32>
    %91 = vector.multi_reduction <maximumf>, %90, %cst_31 [2] : vector<2x8x8xf32> to vector<2x8xf32>
    %92 = vector.shape_cast %91 : vector<2x8xf32> to vector<2x8x1xf32>
    %93 = vector.broadcast %92 : vector<2x8x1xf32> to vector<2x8x8xf32>
    %94 = arith.subf %90, %93 : vector<2x8x8xf32>
    %95 = math.exp %94 : vector<2x8x8xf32>
    %cst_32 = arith.constant dense<0.000000e+00> : vector<2x8xf32>
    %96 = vector.multi_reduction <add>, %95, %cst_32 [2] : vector<2x8x8xf32> to vector<2x8xf32>
    %97 = vector.shape_cast %96 : vector<2x8xf32> to vector<2x8x1xf32>
    %98 = tpu.reciprocal %97 {approx = true} : vector<2x8x1xf32> -> vector<2x8x1xf32>
    %99 = vector.broadcast %98 : vector<2x8x1xf32> to vector<2x8x8xf32>
    %100 = arith.mulf %95, %99 : vector<2x8x8xf32>
    %101 = arith.truncf %100 : vector<2x8x8xf32> to vector<2x8x8xbf16>
    "tpu.trace_start"() <{level = 10 : i32, message = "bqk,bkd->bqd"}> : () -> ()
    %cst_33 = arith.constant dense<0.000000e+00> : vector<2x8x4xf32>
    %102 = tpu.matmul %101, %87, %cst_33 {dimension_numbers = #tpu.dot_dimension_numbers<[2], [1], [1], [2], [0, 0, 0, 1, 1, 2], [0], [0]>} : vector<2x8x8xbf16>, vector<2x8x4xbf16>, vector<2x8x4xf32> -> vector<2x8x4xf32>
    "tpu.trace_stop"() : () -> ()
    %103 = vector.extract_strided_slice %8 {offsets = [0, 0, 20], sizes = [2, 8, 4], strides = [1, 1, 1]} : vector<2x8x96xbf16> to vector<2x8x4xbf16>
    %104 = vector.extract_strided_slice %8 {offsets = [0, 0, 52], sizes = [2, 8, 4], strides = [1, 1, 1]} : vector<2x8x96xbf16> to vector<2x8x4xbf16>
    %105 = vector.extract_strided_slice %8 {offsets = [0, 0, 84], sizes = [2, 8, 4], strides = [1, 1, 1]} : vector<2x8x96xbf16> to vector<2x8x4xbf16>
    "tpu.trace_start"() <{level = 10 : i32, message = "bqd,bkd->bqk"}> : () -> ()
    %cst_34 = arith.constant dense<0.000000e+00> : vector<2x8x8xf32>
    %106 = tpu.matmul %103, %104, %cst_34 {dimension_numbers = #tpu.dot_dimension_numbers<[2], [2], [1], [1], [0, 0, 0, 1, 1, 1], [0], [0]>} : vector<2x8x4xbf16>, vector<2x8x4xbf16>, vector<2x8x8xf32> -> vector<2x8x8xf32>
    %cst_35 = arith.constant -1.000000e+09 : f32
    "tpu.trace_stop"() : () -> ()
    %107 = vector.broadcast %cst_35 : f32 to vector<2x8x8xf32>
    %108 = arith.select %12, %106, %107 : vector<2x8x8xi1>, vector<2x8x8xf32>
    %cst_36 = arith.constant dense<0xFF800000> : vector<2x8xf32>
    %109 = vector.multi_reduction <maximumf>, %108, %cst_36 [2] : vector<2x8x8xf32> to vector<2x8xf32>
    %110 = vector.shape_cast %109 : vector<2x8xf32> to vector<2x8x1xf32>
    %111 = vector.broadcast %110 : vector<2x8x1xf32> to vector<2x8x8xf32>
    %112 = arith.subf %108, %111 : vector<2x8x8xf32>
    %113 = math.exp %112 : vector<2x8x8xf32>
    %cst_37 = arith.constant dense<0.000000e+00> : vector<2x8xf32>
    %114 = vector.multi_reduction <add>, %113, %cst_37 [2] : vector<2x8x8xf32> to vector<2x8xf32>
    %115 = vector.shape_cast %114 : vector<2x8xf32> to vector<2x8x1xf32>
    %116 = tpu.reciprocal %115 {approx = true} : vector<2x8x1xf32> -> vector<2x8x1xf32>
    %117 = vector.broadcast %116 : vector<2x8x1xf32> to vector<2x8x8xf32>
    %118 = arith.mulf %113, %117 : vector<2x8x8xf32>
    %119 = arith.truncf %118 : vector<2x8x8xf32> to vector<2x8x8xbf16>
    "tpu.trace_start"() <{level = 10 : i32, message = "bqk,bkd->bqd"}> : () -> ()
    %cst_38 = arith.constant dense<0.000000e+00> : vector<2x8x4xf32>
    %120 = tpu.matmul %119, %105, %cst_38 {dimension_numbers = #tpu.dot_dimension_numbers<[2], [1], [1], [2], [0, 0, 0, 1, 1, 2], [0], [0]>} : vector<2x8x8xbf16>, vector<2x8x4xbf16>, vector<2x8x4xf32> -> vector<2x8x4xf32>
    "tpu.trace_stop"() : () -> ()
    %121 = vector.extract_strided_slice %8 {offsets = [0, 0, 24], sizes = [2, 8, 4], strides = [1, 1, 1]} : vector<2x8x96xbf16> to vector<2x8x4xbf16>
    %122 = vector.extract_strided_slice %8 {offsets = [0, 0, 56], sizes = [2, 8, 4], strides = [1, 1, 1]} : vector<2x8x96xbf16> to vector<2x8x4xbf16>
    %123 = vector.extract_strided_slice %8 {offsets = [0, 0, 88], sizes = [2, 8, 4], strides = [1, 1, 1]} : vector<2x8x96xbf16> to vector<2x8x4xbf16>
    "tpu.trace_start"() <{level = 10 : i32, message = "bqd,bkd->bqk"}> : () -> ()
    %cst_39 = arith.constant dense<0.000000e+00> : vector<2x8x8xf32>
    %124 = tpu.matmul %121, %122, %cst_39 {dimension_numbers = #tpu.dot_dimension_numbers<[2], [2], [1], [1], [0, 0, 0, 1, 1, 1], [0], [0]>} : vector<2x8x4xbf16>, vector<2x8x4xbf16>, vector<2x8x8xf32> -> vector<2x8x8xf32>
    %cst_40 = arith.constant -1.000000e+09 : f32
    "tpu.trace_stop"() : () -> ()
    %125 = vector.broadcast %cst_40 : f32 to vector<2x8x8xf32>
    %126 = arith.select %12, %124, %125 : vector<2x8x8xi1>, vector<2x8x8xf32>
    %cst_41 = arith.constant dense<0xFF800000> : vector<2x8xf32>
    %127 = vector.multi_reduction <maximumf>, %126, %cst_41 [2] : vector<2x8x8xf32> to vector<2x8xf32>
    %128 = vector.shape_cast %127 : vector<2x8xf32> to vector<2x8x1xf32>
    %129 = vector.broadcast %128 : vector<2x8x1xf32> to vector<2x8x8xf32>
    %130 = arith.subf %126, %129 : vector<2x8x8xf32>
    %131 = math.exp %130 : vector<2x8x8xf32>
    %cst_42 = arith.constant dense<0.000000e+00> : vector<2x8xf32>
    %132 = vector.multi_reduction <add>, %131, %cst_42 [2] : vector<2x8x8xf32> to vector<2x8xf32>
    %133 = vector.shape_cast %132 : vector<2x8xf32> to vector<2x8x1xf32>
    %134 = tpu.reciprocal %133 {approx = true} : vector<2x8x1xf32> -> vector<2x8x1xf32>
    %135 = vector.broadcast %134 : vector<2x8x1xf32> to vector<2x8x8xf32>
    %136 = arith.mulf %131, %135 : vector<2x8x8xf32>
    %137 = arith.truncf %136 : vector<2x8x8xf32> to vector<2x8x8xbf16>
    "tpu.trace_start"() <{level = 10 : i32, message = "bqk,bkd->bqd"}> : () -> ()
    %cst_43 = arith.constant dense<0.000000e+00> : vector<2x8x4xf32>
    %138 = tpu.matmul %137, %123, %cst_43 {dimension_numbers = #tpu.dot_dimension_numbers<[2], [1], [1], [2], [0, 0, 0, 1, 1, 2], [0], [0]>} : vector<2x8x8xbf16>, vector<2x8x4xbf16>, vector<2x8x4xf32> -> vector<2x8x4xf32>
    "tpu.trace_stop"() : () -> ()
    %139 = vector.extract_strided_slice %8 {offsets = [0, 0, 28], sizes = [2, 8, 4], strides = [1, 1, 1]} : vector<2x8x96xbf16> to vector<2x8x4xbf16>
    %140 = vector.extract_strided_slice %8 {offsets = [0, 0, 60], sizes = [2, 8, 4], strides = [1, 1, 1]} : vector<2x8x96xbf16> to vector<2x8x4xbf16>
    %141 = vector.extract_strided_slice %8 {offsets = [0, 0, 92], sizes = [2, 8, 4], strides = [1, 1, 1]} : vector<2x8x96xbf16> to vector<2x8x4xbf16>
    "tpu.trace_start"() <{level = 10 : i32, message = "bqd,bkd->bqk"}> : () -> ()
    %cst_44 = arith.constant dense<0.000000e+00> : vector<2x8x8xf32>
    %142 = tpu.matmul %139, %140, %cst_44 {dimension_numbers = #tpu.dot_dimension_numbers<[2], [2], [1], [1], [0, 0, 0, 1, 1, 1], [0], [0]>} : vector<2x8x4xbf16>, vector<2x8x4xbf16>, vector<2x8x8xf32> -> vector<2x8x8xf32>
    %cst_45 = arith.constant -1.000000e+09 : f32
    "tpu.trace_stop"() : () -> ()
    %143 = vector.broadcast %cst_45 : f32 to vector<2x8x8xf32>
    %144 = arith.select %12, %142, %143 : vector<2x8x8xi1>, vector<2x8x8xf32>
    %cst_46 = arith.constant dense<0xFF800000> : vector<2x8xf32>
    %145 = vector.multi_reduction <maximumf>, %144, %cst_46 [2] : vector<2x8x8xf32> to vector<2x8xf32>
    %146 = vector.shape_cast %145 : vector<2x8xf32> to vector<2x8x1xf32>
    %147 = vector.broadcast %146 : vector<2x8x1xf32> to vector<2x8x8xf32>
    %148 = arith.subf %144, %147 : vector<2x8x8xf32>
    %149 = math.exp %148 : vector<2x8x8xf32>
    %cst_47 = arith.constant dense<0.000000e+00> : vector<2x8xf32>
    %150 = vector.multi_reduction <add>, %149, %cst_47 [2] : vector<2x8x8xf32> to vector<2x8xf32>
    %151 = vector.shape_cast %150 : vector<2x8xf32> to vector<2x8x1xf32>
    %152 = tpu.reciprocal %151 {approx = true} : vector<2x8x1xf32> -> vector<2x8x1xf32>
    %153 = vector.broadcast %152 : vector<2x8x1xf32> to vector<2x8x8xf32>
    %154 = arith.mulf %149, %153 : vector<2x8x8xf32>
    %155 = arith.truncf %154 : vector<2x8x8xf32> to vector<2x8x8xbf16>
    "tpu.trace_start"() <{level = 10 : i32, message = "bqk,bkd->bqd"}> : () -> ()
    %cst_48 = arith.constant dense<0.000000e+00> : vector<2x8x4xf32>
    %156 = tpu.matmul %155, %141, %cst_48 {dimension_numbers = #tpu.dot_dimension_numbers<[2], [1], [1], [2], [0, 0, 0, 1, 1, 2], [0], [0]>} : vector<2x8x8xbf16>, vector<2x8x4xbf16>, vector<2x8x4xf32> -> vector<2x8x4xf32>
    "tpu.trace_stop"() : () -> ()
    %157 = tpu.concatenate %30, %48, %66, %84, %102, %120, %138, %156 in 2 : vector<2x8x4xf32>, vector<2x8x4xf32>, vector<2x8x4xf32>, vector<2x8x4xf32>, vector<2x8x4xf32>, vector<2x8x4xf32>, vector<2x8x4xf32>, vector<2x8x4xf32> -> vector<2x8x32xf32>
    %158 = vector.shape_cast %157 : vector<2x8x32xf32> to vector<16x32xf32>
    %c0_49 = arith.constant 0 : index
    %c0_50 = arith.constant 0 : index
    %159 = vector.load %arg11[%c0_49, %c0_50] : memref<1x32xf32, #tpu.memory_space<vmem>>, vector<1x32xf32>
    %c0_51 = arith.constant 0 : index
    %c0_52 = arith.constant 0 : index
    %160 = vector.load %arg12[%c0_51, %c0_52] : memref<1x32xf32, #tpu.memory_space<vmem>>, vector<1x32xf32>
    %161 = arith.truncf %158 : vector<16x32xf32> to vector<16x32xbf16>
    %c0_53 = arith.constant 0 : index
    %c0_54 = arith.constant 0 : index
    %162 = vector.load %arg5[%c0_53, %c0_54] : memref<32x32xbf16, #tpu.memory_space<vmem>>, vector<32x32xbf16>
    %cst_55 = arith.constant dense<0.000000e+00> : vector<16x32xf32>
    %163 = tpu.matmul %161, %162, %cst_55 {dimension_numbers = #tpu.dot_dimension_numbers<[1], [0], [0], [1], [0, 0, 1, 1], [], []>} : vector<16x32xbf16>, vector<32x32xbf16>, vector<16x32xf32> -> vector<16x32xf32>
    %c0_56 = arith.constant 0 : index
    %c0_57 = arith.constant 0 : index
    %164 = vector.load %arg6[%c0_56, %c0_57] : memref<1x32xf32, #tpu.memory_space<vmem>>, vector<1x32xf32>
    %165 = vector.broadcast %164 : vector<1x32xf32> to vector<16x32xf32>
    %166 = arith.addf %163, %165 : vector<16x32xf32>
    %167 = arith.addf %166, %0 : vector<16x32xf32>
    %cst_58 = arith.constant dense<0.000000e+00> : vector<16xf32>
    %168 = vector.multi_reduction <add>, %167, %cst_58 [1] : vector<16x32xf32> to vector<16xf32>
    %169 = vector.shape_cast %168 : vector<16xf32> to vector<16x1xf32>
    %cst_59 = arith.constant 3.200000e+01 : f32
    %170 = vector.broadcast %cst_59 : f32 to vector<16x1xf32>
    %171 = arith.divf %169, %170 : vector<16x1xf32>
    %172 = arith.mulf %167, %167 : vector<16x32xf32>
    %cst_60 = arith.constant dense<0.000000e+00> : vector<16xf32>
    %173 = vector.multi_reduction <add>, %172, %cst_60 [1] : vector<16x32xf32> to vector<16xf32>
    %174 = vector.shape_cast %173 : vector<16xf32> to vector<16x1xf32>
    %cst_61 = arith.constant 3.200000e+01 : f32
    %175 = vector.broadcast %cst_61 : f32 to vector<16x1xf32>
    %176 = arith.divf %174, %175 : vector<16x1xf32>
    %177 = arith.mulf %171, %171 : vector<16x1xf32>
    %178 = arith.subf %176, %177 : vector<16x1xf32>
    %179 = vector.broadcast %171 : vector<16x1xf32> to vector<16x32xf32>
    %180 = arith.subf %167, %179 : vector<16x32xf32>
    %cst_62 = arith.constant 9.99999974E-6 : f32
    %181 = vector.broadcast %cst_62 : f32 to vector<16x1xf32>
    %182 = arith.addf %178, %181 : vector<16x1xf32>
    %183 = math.rsqrt %182 : vector<16x1xf32>
    %184 = vector.broadcast %183 : vector<16x1xf32> to vector<16x32xf32>
    %185 = arith.mulf %180, %184 : vector<16x32xf32>
    %186 = vector.broadcast %159 : vector<1x32xf32> to vector<16x32xf32>
    %187 = arith.mulf %185, %186 : vector<16x32xf32>
    %188 = vector.broadcast %160 : vector<1x32xf32> to vector<16x32xf32>
    %189 = arith.addf %187, %188 : vector<16x32xf32>
    %190 = arith.truncf %189 : vector<16x32xf32> to vector<16x32xbf16>
    %c0_63 = arith.constant 0 : index
    %c0_64 = arith.constant 0 : index
    %191 = vector.load %arg7[%c0_63, %c0_64] : memref<32x32xbf16, #tpu.memory_space<vmem>>, vector<32x32xbf16>
    %cst_65 = arith.constant dense<0.000000e+00> : vector<16x32xf32>
    %192 = tpu.matmul %190, %191, %cst_65 {dimension_numbers = #tpu.dot_dimension_numbers<[1], [0], [0], [1], [0, 0, 1, 1], [], []>} : vector<16x32xbf16>, vector<32x32xbf16>, vector<16x32xf32> -> vector<16x32xf32>
    %c0_66 = arith.constant 0 : index
    %c0_67 = arith.constant 0 : index
    %193 = vector.load %arg8[%c0_66, %c0_67] : memref<1x32xf32, #tpu.memory_space<vmem>>, vector<1x32xf32>
    %194 = vector.broadcast %193 : vector<1x32xf32> to vector<16x32xf32>
    %195 = arith.addf %192, %194 : vector<16x32xf32>
    %cst_68 = arith.constant 0.000000e+00 : f32
    %196 = vector.broadcast %cst_68 : f32 to vector<16x32xf32>
    %197 = arith.cmpf oge, %195, %196 : vector<16x32xf32>
    %cst_69 = arith.constant 0.00999999977 : f32
    %198 = vector.broadcast %cst_69 : f32 to vector<16x32xf32>
    %199 = arith.mulf %198, %195 : vector<16x32xf32>
    %200 = arith.select %197, %195, %199 : vector<16x32xi1>, vector<16x32xf32>
    %201 = arith.truncf %200 : vector<16x32xf32> to vector<16x32xbf16>
    %c0_70 = arith.constant 0 : index
    %c0_71 = arith.constant 0 : index
    %202 = vector.load %arg9[%c0_70, %c0_71] : memref<32x32xbf16, #tpu.memory_space<vmem>>, vector<32x32xbf16>
    %cst_72 = arith.constant dense<0.000000e+00> : vector<16x32xf32>
    %203 = tpu.matmul %201, %202, %cst_72 {dimension_numbers = #tpu.dot_dimension_numbers<[1], [0], [0], [1], [0, 0, 1, 1], [], []>} : vector<16x32xbf16>, vector<32x32xbf16>, vector<16x32xf32> -> vector<16x32xf32>
    %c0_73 = arith.constant 0 : index
    %c0_74 = arith.constant 0 : index
    %204 = vector.load %arg10[%c0_73, %c0_74] : memref<1x32xf32, #tpu.memory_space<vmem>>, vector<1x32xf32>
    %205 = vector.broadcast %204 : vector<1x32xf32> to vector<16x32xf32>
    %206 = arith.addf %203, %205 : vector<16x32xf32>
    %207 = arith.addf %206, %189 : vector<16x32xf32>
    %cst_75 = arith.constant dense<0.000000e+00> : vector<16xf32>
    %208 = vector.multi_reduction <add>, %207, %cst_75 [1] : vector<16x32xf32> to vector<16xf32>
    %209 = vector.shape_cast %208 : vector<16xf32> to vector<16x1xf32>
    %cst_76 = arith.constant 3.200000e+01 : f32
    %210 = vector.broadcast %cst_76 : f32 to vector<16x1xf32>
    %211 = arith.divf %209, %210 : vector<16x1xf32>
    %212 = arith.mulf %207, %207 : vector<16x32xf32>
    %cst_77 = arith.constant dense<0.000000e+00> : vector<16xf32>
    %213 = vector.multi_reduction <add>, %212, %cst_77 [1] : vector<16x32xf32> to vector<16xf32>
    %214 = vector.shape_cast %213 : vector<16xf32> to vector<16x1xf32>
    %cst_78 = arith.constant 3.200000e+01 : f32
    %215 = vector.broadcast %cst_78 : f32 to vector<16x1xf32>
    %216 = arith.divf %214, %215 : vector<16x1xf32>
    %217 = arith.mulf %211, %211 : vector<16x1xf32>
    %218 = arith.subf %216, %217 : vector<16x1xf32>
    %219 = vector.broadcast %211 : vector<16x1xf32> to vector<16x32xf32>
    %220 = arith.subf %207, %219 : vector<16x32xf32>
    %cst_79 = arith.constant 9.99999974E-6 : f32
    %221 = vector.broadcast %cst_79 : f32 to vector<16x1xf32>
    %222 = arith.addf %218, %221 : vector<16x1xf32>
    %223 = math.rsqrt %222 : vector<16x1xf32>
    %224 = vector.broadcast %223 : vector<16x1xf32> to vector<16x32xf32>
    %225 = arith.mulf %220, %224 : vector<16x32xf32>
    %226 = vector.broadcast %159 : vector<1x32xf32> to vector<16x32xf32>
    %227 = arith.mulf %225, %226 : vector<16x32xf32>
    %228 = vector.broadcast %160 : vector<1x32xf32> to vector<16x32xf32>
    %229 = arith.addf %227, %228 : vector<16x32xf32>
    %cst_80 = arith.constant 0.000000e+00 : f32
    %230 = vector.broadcast %cst_80 : f32 to vector<16x32xf32>
    %231 = arith.cmpf oge, %229, %230 : vector<16x32xf32>
    %cst_81 = arith.constant 0.00999999977 : f32
    %232 = vector.broadcast %cst_81 : f32 to vector<16x32xf32>
    %233 = arith.mulf %232, %229 : vector<16x32xf32>
    %234 = arith.select %231, %229, %233 : vector<16x32xi1>, vector<16x32xf32>
    %c0_82 = arith.constant 0 : index
    %c0_83 = arith.constant 0 : index
    %235 = vector.load %arg13[%c0_82, %c0_83] : memref<16x32xf32, #tpu.memory_space<vmem>>, vector<16x32xf32>
    tpu.vector_store %arg13[%c0_82, %c0_83], %234 {strides = array<i32>} : memref<16x32xf32, #tpu.memory_space<vmem>>, vector<16x32xf32>,
    return
  }
  func.func @transform_0(%arg0: i32) -> (i32, i32) {
    %c0_i32 = arith.constant 0 : i32
    %c0_i32_0 = arith.constant 0 : i32
    return %arg0, %c0_i32 : i32, i32
  }
  func.func @transform_1(%arg0: i32) -> (i32, i32, i32) {
    %c0_i32 = arith.constant 0 : i32
    %c0_i32_0 = arith.constant 0 : i32
    %c0_i32_1 = arith.constant 0 : i32
    return %arg0, %c0_i32, %c0_i32_0 : i32, i32, i32
  }
  func.func @transform_2(%arg0: i32) -> (i32, i32) {
    %c0_i32 = arith.constant 0 : i32
    %c0_i32_0 = arith.constant 0 : i32
    %c0_i32_1 = arith.constant 0 : i32
    return %c0_i32, %c0_i32_0 : i32, i32
  }
  func.func @transform_3(%arg0: i32) -> (i32, i32) {
    %c0_i32 = arith.constant 0 : i32
    %c0_i32_0 = arith.constant 0 : i32
    %c0_i32_1 = arith.constant 0 : i32
    return %c0_i32, %c0_i32_0 : i32, i32
  }
  func.func @transform_4(%arg0: i32) -> (i32, i32) {
    %c0_i32 = arith.constant 0 : i32
    %c0_i32_0 = arith.constant 0 : i32
    %c0_i32_1 = arith.constant 0 : i32
    return %c0_i32, %c0_i32_0 : i32, i32
  }
  func.func @transform_5(%arg0: i32) -> (i32, i32) {
    %c0_i32 = arith.constant 0 : i32
    %c0_i32_0 = arith.constant 0 : i32
    %c0_i32_1 = arith.constant 0 : i32
    return %c0_i32, %c0_i32_0 : i32, i32
  }
  func.func @transform_6(%arg0: i32) -> (i32, i32) {
    %c0_i32 = arith.constant 0 : i32
    %c0_i32_0 = arith.constant 0 : i32
    %c0_i32_1 = arith.constant 0 : i32
    return %c0_i32, %c0_i32_0 : i32, i32
  }
  func.func @transform_7(%arg0: i32) -> (i32, i32) {
    %c0_i32 = arith.constant 0 : i32
    %c0_i32_0 = arith.constant 0 : i32
    %c0_i32_1 = arith.constant 0 : i32
    return %c0_i32, %c0_i32_0 : i32, i32
  }
  func.func @transform_8(%arg0: i32) -> (i32, i32) {
    %c0_i32 = arith.constant 0 : i32
    %c0_i32_0 = arith.constant 0 : i32
    %c0_i32_1 = arith.constant 0 : i32
    return %c0_i32, %c0_i32_0 : i32, i32
  }
  func.func @transform_9(%arg0: i32) -> (i32, i32) {
    %c0_i32 = arith.constant 0 : i32
    %c0_i32_0 = arith.constant 0 : i32
    %c0_i32_1 = arith.constant 0 : i32
    return %c0_i32, %c0_i32_0 : i32, i32
  }
  func.func @transform_10(%arg0: i32) -> (i32, i32) {
    %c0_i32 = arith.constant 0 : i32
    %c0_i32_0 = arith.constant 0 : i32
    %c0_i32_1 = arith.constant 0 : i32
    return %c0_i32, %c0_i32_0 : i32, i32
  }
  func.func @transform_11(%arg0: i32) -> (i32, i32) {
    %c0_i32 = arith.constant 0 : i32
    %c0_i32_0 = arith.constant 0 : i32
    %c0_i32_1 = arith.constant 0 : i32
    return %c0_i32, %c0_i32_0 : i32, i32
  }
  func.func @transform_12(%arg0: i32) -> (i32, i32) {
    %c0_i32 = arith.constant 0 : i32
    %c0_i32_0 = arith.constant 0 : i32
    return %arg0, %c0_i32 : i32, i32
  }
}

module attributes {stable_mosaic.version = 11 : i64} {
  func.func @encoder_kernel(%arg0: i32, %arg1: memref<16x32xf32, #tpu.memory_space<vmem>>, %arg2: memref<2x8x8xi8, #tpu.memory_space<vmem>>, %arg3: memref<32x96xbf16, #tpu.memory_space<vmem>>, %arg4: memref<1x96xf32, #tpu.memory_space<vmem>>, %arg5: memref<32x32xbf16, #tpu.memory_space<vmem>>, %arg6: memref<1x32xf32, #tpu.memory_space<vmem>>, %arg7: memref<32x32xbf16, #tpu.memory_space<vmem>>, %arg8: memref<1x32xf32, #tpu.memory_space<vmem>>, %arg9: memref<32x32xbf16, #tpu.memory_space<vmem>>, %arg10: memref<1x32xf32, #tpu.memory_space<vmem>>, %arg11: memref<1x32xf32, #tpu.memory_space<vmem>>, %arg12: memref<1x32xf32, #tpu.memory_space<vmem>>, %arg13: memref<16x32xf32, #tpu.memory_space<vmem>>) attributes {dimension_semantics = [#tpu.dimension_semantics<parallel>], iteration_bounds = array<i64: 1>, scalar_prefetch = 0 : i64, scratch_operands = 0 : i64, tpu.core_type = #tpu.core_type<tc>, window_params = [{transform_indices = @transform_0, window_bounds = array<i64: 16, 32>}, {transform_indices = @transform_1, window_bounds = array<i64: 2, 8, 8>}, {pipeline_mode = #tpu.pipeline_mode<synchronous>, transform_indices = @transform_2, window_bounds = array<i64: 32, 96>}, {pipeline_mode = #tpu.pipeline_mode<synchronous>, transform_indices = @transform_3, window_bounds = array<i64: 1, 96>}, {pipeline_mode = #tpu.pipeline_mode<synchronous>, transform_indices = @transform_4, window_bounds = array<i64: 32, 32>}, {pipeline_mode = #tpu.pipeline_mode<synchronous>, transform_indices = @transform_5, window_bounds = array<i64: 1, 32>}, {pipeline_mode = #tpu.pipeline_mode<synchronous>, transform_indices = @transform_6, window_bounds = array<i64: 32, 32>}, {pipeline_mode = #tpu.pipeline_mode<synchronous>, transform_indices = @transform_7, window_bounds = array<i64: 1, 32>}, {pipeline_mode = #tpu.pipeline_mode<synchronous>, transform_indices = @transform_8, window_bounds = array<i64: 32, 32>}, {pipeline_mode = #tpu.pipeline_mode<synchronous>, transform_indices = @transform_9, window_bounds = array<i64: 1, 32>}, {pipeline_mode = #tpu.pipeline_mode<synchronous>, transform_indices = @transform_10, window_bounds = array<i64: 1, 32>}, {pipeline_mode = #tpu.pipeline_mode<synchronous>, transform_indices = @transform_11, window_bounds = array<i64: 1, 32>}, {transform_indices = @transform_12, window_bounds = array<i64: 16, 32>}]} {
    %c0 = arith.constant 0 : index
    %c0_0 = arith.constant 0 : index
    %0 = vector.load %arg1[%c0, %c0_0] : memref<16x32xf32, #tpu.memory_space<vmem>>, vector<16x32xf32>
    %1 = arith.truncf %0 : vector<16x32xf32> to vector<16x32xbf16>
    %c0_1 = arith.constant 0 : index
    %c0_2 = arith.constant 0 : index
    %2 = vector.load %arg3[%c0_1, %c0_2] : memref<32x96xbf16, #tpu.memory_space<vmem>>, vector<32x96xbf16>
    %cst = arith.constant dense<0.000000e+00> : vector<16x96xf32>
    %3 = tpu.matmul %1, %2, %cst {dimension_numbers = #tpu.dot_dimension_numbers<[1], [0], [0], [1], [0, 0, 1, 1], [], []>} : vector<16x32xbf16>, vector<32x96xbf16>, vector<16x96xf32> -> vector<16x96xf32>
    %c0_3 = arith.constant 0 : index
    %c0_4 = arith.constant 0 : index
    %4 = vector.load %arg4[%c0_3, %c0_4] : memref<1x96xf32, #tpu.memory_space<vmem>>, vector<1x96xf32>
    %5 = vector.broadcast %4 : vector<1x96xf32> to vector<16x96xf32>
    %6 = arith.addf %3, %5 : vector<16x96xf32>
    %7 = vector.shape_cast %6 : vector<16x96xf32> to vector<2x8x96xf32>
    %8 = arith.truncf %7 : vector<2x8x96xf32> to vector<2x8x96xbf16>
    %c0_5 = arith.constant 0 : index
    %c0_6 = arith.constant 0 : index
    %c0_7 = arith.constant 0 : index
    %9 = vector.load %arg2[%c0_5, %c0_6, %c0_7] : memref<2x8x8xi8, #tpu.memory_space<vmem>>, vector<2x8x8xi8>
    %10 = arith.sitofp %9 : vector<2x8x8xi8> to vector<2x8x8xf32>
    %cst_8 = arith.constant 0.000000e+00 : f32
    %11 = vector.broadcast %cst_8 : f32 to vector<2x8x8xf32>
    %12 = arith.cmpf one, %10, %11 : vector<2x8x8xf32>
    %13 = vector.extract_strided_slice %8 {offsets = [0, 0, 0], sizes = [2, 8, 4], strides = [1, 1, 1]} : vector<2x8x96xbf16> to vector<2x8x4xbf16>
    %14 = vector.extract_strided_slice %8 {offsets = [0, 0, 32], sizes = [2, 8, 4], strides = [1, 1, 1]} : vector<2x8x96xbf16> to vector<2x8x4xbf16>
    %15 = vector.extract_strided_slice %8 {offsets = [0, 0, 64], sizes = [2, 8, 4], strides = [1, 1, 1]} : vector<2x8x96xbf16> to vector<2x8x4xbf16>
    "tpu.trace_start"() <{level = 10 : i32, message = "bqd,bkd->bqk"}> : () -> ()
    %cst_9 = arith.constant dense<0.000000e+00> : vector<2x8x8xf32>
    %16 = tpu.matmul %13, %14, %cst_9 {dimension_numbers = #tpu.dot_dimension_numbers<[2], [2], [1], [1], [0, 0, 0, 1, 1, 1], [0], [0]>} : vector<2x8x4xbf16>, vector<2x8x4xbf16>, vector<2x8x8xf32> -> vector<2x8x8xf32>
    %cst_10 = arith.constant -1.000000e+09 : f32
    "tpu.trace_stop"() : () -> ()
    %17 = vector.broadcast %cst_10 : f32 to vector<2x8x8xf32>
    %18 = arith.select %12, %16, %17 : vector<2x8x8xi1>, vector<2x8x8xf32>
    %cst_11 = arith.constant dense<0xFF800000> : vector<2x8xf32>
    %19 = vector.multi_reduction <maximumf>, %18, %cst_11 [2] : vector<2x8x8xf32> to vector<2x8xf32>
    %20 = vector.shape_cast %19 : vector<2x8xf32> to vector<2x8x1xf32>
    %21 = vector.broadcast %20 : vector<2x8x1xf32> to vector<2x8x8xf32>
    %22 = arith.subf %18, %21 : vector<2x8x8xf32>
    %23 = math.exp %22 : vector<2x8x8xf32>
    %cst_12 = arith.constant dense<0.000000e+00> : vector<2x8xf32>
    %24 = vector.multi_reduction <add>, %23, %cst_12 [2] : vector<2x8x8xf32> to vector<2x8xf32>
    %25 = vector.shape_cast %24 : vector<2x8xf32> to vector<2x8x1xf32>
    %26 = tpu.reciprocal %25 {approx = true} : vector<2x8x1xf32> -> vector<2x8x1xf32>
    %27 = vector.broadcast %26 : vector<2x8x1xf32> to vector<2x8x8xf32>
    %28 = arith.mulf %23, %27 : vector<2x8x8xf32>
    %29 = arith.truncf %28 : vector<2x8x8xf32> to vector<2x8x8xbf16>
    "tpu.trace_start"() <{level = 10 : i32, message = "bqk,bkd->bqd"}> : () -> ()
    %cst_13 = arith.constant dense<0.000000e+00> : vector<2x8x4xf32>
    %30 = tpu.matmul %29, %15, %cst_13 {dimension_numbers = #tpu.dot_dimension_numbers<[2], [1], [1], [2], [0, 0, 0, 1, 1, 2], [0], [0]>} : vector<2x8x8xbf16>, vector<2x8x4xbf16>, vector<2x8x4xf32> -> vector<2x8x4xf32>
    "tpu.trace_stop"() : () -> ()
    %31 = vector.extract_strided_slice %8 {offsets = [0, 0, 4], sizes = [2, 8, 4], strides = [1, 1, 1]} : vector<2x8x96xbf16> to vector<2x8x4xbf16>
    %32 = vector.extract_strided_slice %8 {offsets = [0, 0, 36], sizes = [2, 8, 4], strides = [1, 1, 1]} : vector<2x8x96xbf16> to vector<2x8x4xbf16>
    %33 = vector.extract_strided_slice %8 {offsets = [0, 0, 68], sizes = [2, 8, 4], strides = [1, 1, 1]} : vector<2x8x96xbf16> to vector<2x8x4xbf16>
    "tpu.trace_start"() <{level = 10 : i32, message = "bqd,bkd->bqk"}> : () -> ()
    %cst_14 = arith.constant dense<0.000000e+00> : vector<2x8x8xf32>
    %34 = tpu.matmul %31, %32, %cst_14 {dimension_numbers = #tpu.dot_dimension_numbers<[2], [2], [1], [1], [0, 0, 0, 1, 1, 1], [0], [0]>} : vector<2x8x4xbf16>, vector<2x8x4xbf16>, vector<2x8x8xf32> -> vector<2x8x8xf32>
    %cst_15 = arith.constant -1.000000e+09 : f32
    "tpu.trace_stop"() : () -> ()
    %35 = vector.broadcast %cst_15 : f32 to vector<2x8x8xf32>
    %36 = arith.select %12, %34, %35 : vector<2x8x8xi1>, vector<2x8x8xf32>
    %cst_16 = arith.constant dense<0xFF800000> : vector<2x8xf32>
    %37 = vector.multi_reduction <maximumf>, %36, %cst_16 [2] : vector<2x8x8xf32> to vector<2x8xf32>
    %38 = vector.shape_cast %37 : vector<2x8xf32> to vector<2x8x1xf32>
    %39 = vector.broadcast %38 : vector<2x8x1xf32> to vector<2x8x8xf32>
    %40 = arith.subf %36, %39 : vector<2x8x8xf32>
    %41 = math.exp %40 : vector<2x8x8xf32>
    %cst_17 = arith.constant dense<0.000000e+00> : vector<2x8xf32>
    %42 = vector.multi_reduction <add>, %41, %cst_17 [2] : vector<2x8x8xf32> to vector<2x8xf32>
    %43 = vector.shape_cast %42 : vector<2x8xf32> to vector<2x8x1xf32>
    %44 = tpu.reciprocal %43 {approx = true} : vector<2x8x1xf32> -> vector<2x8x1xf32>
    %45 = vector.broadcast %44 : vector<2x8x1xf32> to vector<2x8x8xf32>
    %46 = arith.mulf %41, %45 : vector<2x8x8xf32>
    %47 = arith.truncf %46 : vector<2x8x8xf32> to vector<2x8x8xbf16>
    "tpu.trace_start"() <{level = 10 : i32, message = "bqk,bkd->bqd"}> : () -> ()
    %cst_18 = arith.constant dense<0.000000e+00> : vector<2x8x4xf32>
    %48 = tpu.matmul %47, %33, %cst_18 {dimension_numbers = #tpu.dot_dimension_numbers<[2], [1], [1], [2], [0, 0, 0, 1, 1, 2], [0], [0]>} : vector<2x8x8xbf16>, vector<2x8x4xbf16>, vector<2x8x4xf32> -> vector<2x8x4xf32>
    "tpu.trace_stop"() : () -> ()
    %49 = vector.extract_strided_slice %8 {offsets = [0, 0, 8], sizes = [2, 8, 4], strides = [1, 1, 1]} : vector<2x8x96xbf16> to vector<2x8x4xbf16>
    %50 = vector.extract_strided_slice %8 {offsets = [0, 0, 40], sizes = [2, 8, 4], strides = [1, 1, 1]} : vector<2x8x96xbf16> to vector<2x8x4xbf16>
    %51 = vector.extract_strided_slice %8 {offsets = [0, 0, 72], sizes = [2, 8, 4], strides = [1, 1, 1]} : vector<2x8x96xbf16> to vector<2x8x4xbf16>
    "tpu.trace_start"() <{level = 10 : i32, message = "bqd,bkd->bqk"}> : () -> ()
    %cst_19 = arith.constant dense<0.000000e+00> : vector<2x8x8xf32>
    %52 = tpu.matmul %49, %50, %cst_19 {dimension_numbers = #tpu.dot_dimension_numbers<[2], [2], [1], [1], [0, 0, 0, 1, 1, 1], [0], [0]>} : vector<2x8x4xbf16>, vector<2x8x4xbf16>, vector<2x8x8xf32> -> vector<2x8x8xf32>
    %cst_20 = arith.constant -1.000000e+09 : f32
    "tpu.trace_stop"() : () -> ()
    %53 = vector.broadcast %cst_20 : f32 to vector<2x8x8xf32>
    %54 = arith.select %12, %52, %53 : vector<2x8x8xi1>, vector<2x8x8xf32>
    %cst_21 = arith.constant dense<0xFF800000> : vector<2x8xf32>
    %55 = vector.multi_reduction <maximumf>, %54, %cst_21 [2] : vector<2x8x8xf32> to vector<2x8xf32>
    %56 = vector.shape_cast %55 : vector<2x8xf32> to vector<2x8x1xf32>
    %57 = vector.broadcast %56 : vector<2x8x1xf32> to vector<2x8x8xf32>
    %58 = arith.subf %54, %57 : vector<2x8x8xf32>
    %59 = math.exp %58 : vector<2x8x8xf32>
    %cst_22 = arith.constant dense<0.000000e+00> : vector<2x8xf32>
    %60 = vector.multi_reduction <add>, %59, %cst_22 [2] : vector<2x8x8xf32> to vector<2x8xf32>
    %61 = vector.shape_cast %60 : vector<2x8xf32> to vector<2x8x1xf32>
    %62 = tpu.reciprocal %61 {approx = true} : vector<2x8x1xf32> -> vector<2x8x1xf32>
    %63 = vector.broadcast %62 : vector<2x8x1xf32> to vector<2x8x8xf32>
    %64 = arith.mulf %59, %63 : vector<2x8x8xf32>
    %65 = arith.truncf %64 : vector<2x8x8xf32> to vector<2x8x8xbf16>
    "tpu.trace_start"() <{level = 10 : i32, message = "bqk,bkd->bqd"}> : () -> ()
    %cst_23 = arith.constant dense<0.000000e+00> : vector<2x8x4xf32>
    %66 = tpu.matmul %65, %51, %cst_23 {dimension_numbers = #tpu.dot_dimension_numbers<[2], [1], [1], [2], [0, 0, 0, 1, 1, 2], [0], [0]>} : vector<2x8x8xbf16>, vector<2x8x4xbf16>, vector<2x8x4xf32> -> vector<2x8x4xf32>
    "tpu.trace_stop"() : () -> ()
    %67 = vector.extract_strided_slice %8 {offsets = [0, 0, 12], sizes = [2, 8, 4], strides = [1, 1, 1]} : vector<2x8x96xbf16> to vector<2x8x4xbf16>
    %68 = vector.extract_strided_slice %8 {offsets = [0, 0, 44], sizes = [2, 8, 4], strides = [1, 1, 1]} : vector<2x8x96xbf16> to vector<2x8x4xbf16>
    %69 = vector.extract_strided_slice %8 {offsets = [0, 0, 76], sizes = [2, 8, 4], strides = [1, 1, 1]} : vector<2x8x96xbf16> to vector<2x8x4xbf16>
    "tpu.trace_start"() <{level = 10 : i32, message = "bqd,bkd->bqk"}> : () -> ()
    %cst_24 = arith.constant dense<0.000000e+00> : vector<2x8x8xf32>
    %70 = tpu.matmul %67, %68, %cst_24 {dimension_numbers = #tpu.dot_dimension_numbers<[2], [2], [1], [1], [0, 0, 0, 1, 1, 1], [0], [0]>} : vector<2x8x4xbf16>, vector<2x8x4xbf16>, vector<2x8x8xf32> -> vector<2x8x8xf32>
    %cst_25 = arith.constant -1.000000e+09 : f32
    "tpu.trace_stop"() : () -> ()
    %71 = vector.broadcast %cst_25 : f32 to vector<2x8x8xf32>
    %72 = arith.select %12, %70, %71 : vector<2x8x8xi1>, vector<2x8x8xf32>
    %cst_26 = arith.constant dense<0xFF800000> : vector<2x8xf32>
    %73 = vector.multi_reduction <maximumf>, %72, %cst_26 [2] : vector<2x8x8xf32> to vector<2x8xf32>
    %74 = vector.shape_cast %73 : vector<2x8xf32> to vector<2x8x1xf32>
    %75 = vector.broadcast %74 : vector<2x8x1xf32> to vector<2x8x8xf32>
    %76 = arith.subf %72, %75 : vector<2x8x8xf32>
    %77 = math.exp %76 : vector<2x8x8xf32>
    %cst_27 = arith.constant dense<0.000000e+00> : vector<2x8xf32>
    %78 = vector.multi_reduction <add>, %77, %cst_27 [2] : vector<2x8x8xf32> to vector<2x8xf32>
    %79 = vector.shape_cast %78 : vector<2x8xf32> to vector<2x8x1xf32>
    %80 = tpu.reciprocal %79 {approx = true} : vector<2x8x1xf32> -> vector<2x8x1xf32>
    %81 = vector.broadcast %80 : vector<2x8x1xf32> to vector<2x8x8xf32>
    %82 = arith.mulf %77, %81 : vector<2x8x8xf32>
    %83 = arith.truncf %82 : vector<2x8x8xf32> to vector<2x8x8xbf16>
    "tpu.trace_start"() <{level = 10 : i32, message = "bqk,bkd->bqd"}> : () -> ()
    %cst_28 = arith.constant dense<0.000000e+00> : vector<2x8x4xf32>
    %84 = tpu.matmul %83, %69, %cst_28 {dimension_numbers = #tpu.dot_dimension_numbers<[2], [1], [1], [2], [0, 0, 0, 1, 1, 2], [0], [0]>} : vector<2x8x8xbf16>, vector<2x8x4xbf16>, vector<2x8x4xf32> -> vector<2x8x4xf32>
    "tpu.trace_stop"() : () -> ()
    %85 = vector.extract_strided_slice %8 {offsets = [0, 0, 16], sizes = [2, 8, 4], strides = [1, 1, 1]} : vector<2x8x96xbf16> to vector<2x8x4xbf16>
    %86 = vector.extract_strided_slice %8 {offsets = [0, 0, 48], sizes = [2, 8, 4], strides = [1, 1, 1]} : vector<2x8x96xbf16> to vector<2x8x4xbf16>
    %87 = vector.extract_strided_slice %8 {offsets = [0, 0, 80], sizes = [2, 8, 4], strides = [1, 1, 1]} : vector<2x8x96xbf16> to vector<2x8x4xbf16>
    "tpu.trace_start"() <{level = 10 : i32, message = "bqd,bkd->bqk"}> : () -> ()
    %cst_29 = arith.constant dense<0.000000e+00> : vector<2x8x8xf32>
    %88 = tpu.matmul %85, %86, %cst_29 {dimension_numbers = #tpu.dot_dimension_numbers<[2], [2], [1], [1], [0, 0, 0, 1, 1, 1], [0], [0]>} : vector<2x8x4xbf16>, vector<2x8x4xbf16>, vector<2x8x8xf32> -> vector<2x8x8xf32>
    %cst_30 = arith.constant -1.000000e+09 : f32
    "tpu.trace_stop"() : () -> ()
    %89 = vector.broadcast %cst_30 : f32 to vector<2x8x8xf32>
    %90 = arith.select %12, %88, %89 : vector<2x8x8xi1>, vector<2x8x8xf32>
    %cst_31 = arith.constant dense<0xFF800000> : vector<2x8xf32>
    %91 = vector.multi_reduction <maximumf>, %90, %cst_31 [2] : vector<2x8x8xf32> to vector<2x8xf32>
    %92 = vector.shape_cast %91 : vector<2x8xf32> to vector<2x8x1xf32>
    %93 = vector.broadcast %92 : vector<2x8x1xf32> to vector<2x8x8xf32>
    %94 = arith.subf %90, %93 : vector<2x8x8xf32>
    %95 = math.exp %94 : vector<2x8x8xf32>
    %cst_32 = arith.constant dense<0.000000e+00> : vector<2x8xf32>
    %96 = vector.multi_reduction <add>, %95, %cst_32 [2] : vector<2x8x8xf32> to vector<2x8xf32>
    %97 = vector.shape_cast %96 : vector<2x8xf32> to vector<2x8x1xf32>
    %98 = tpu.reciprocal %97 {approx = true} : vector<2x8x1xf32> -> vector<2x8x1xf32>
    %99 = vector.broadcast %98 : vector<2x8x1xf32> to vector<2x8x8xf32>
    %100 = arith.mulf %95, %99 : vector<2x8x8xf32>
    %101 = arith.truncf %100 : vector<2x8x8xf32> to vector<2x8x8xbf16>
    "tpu.trace_start"() <{level = 10 : i32, message = "bqk,bkd->bqd"}> : () -> ()
    %cst_33 = arith.constant dense<0.000000e+00> : vector<2x8x4xf32>
    %102 = tpu.matmul %101, %87, %cst_33 {dimension_numbers = #tpu.dot_dimension_numbers<[2], [1], [1], [2], [0, 0, 0, 1, 1, 2], [0], [0]>} : vector<2x8x8xbf16>, vector<2x8x4xbf16>, vector<2x8x4xf32> -> vector<2x8x4xf32>
    "tpu.trace_stop"() : () -> ()
    %103 = vector.extract_strided_slice %8 {offsets = [0, 0, 20], sizes = [2, 8, 4], strides = [1, 1, 1]} : vector<2x8x96xbf16> to vector<2x8x4xbf16>
    %104 = vector.extract_strided_slice %8 {offsets = [0, 0, 52], sizes = [2, 8, 4], strides = [1, 1, 1]} : vector<2x8x96xbf16> to vector<2x8x4xbf16>
    %105 = vector.extract_strided_slice %8 {offsets = [0, 0, 84], sizes = [2, 8, 4], strides = [1, 1, 1]} : vector<2x8x96xbf16> to vector<2x8x4xbf16>
    "tpu.trace_start"() <{level = 10 : i32, message = "bqd,bkd->bqk"}> : () -> ()
    %cst_34 = arith.constant dense<0.000000e+00> : vector<2x8x8xf32>
    %106 = tpu.matmul %103, %104, %cst_34 {dimension_numbers = #tpu.dot_dimension_numbers<[2], [2], [1], [1], [0, 0, 0, 1, 1, 1], [0], [0]>} : vector<2x8x4xbf16>, vector<2x8x4xbf16>, vector<2x8x8xf32> -> vector<2x8x8xf32>
    %cst_35 = arith.constant -1.000000e+09 : f32
    "tpu.trace_stop"() : () -> ()
    %107 = vector.broadcast %cst_35 : f32 to vector<2x8x8xf32>
    %108 = arith.select %12, %106, %107 : vector<2x8x8xi1>, vector<2x8x8xf32>
    %cst_36 = arith.constant dense<0xFF800000> : vector<2x8xf32>
    %109 = vector.multi_reduction <maximumf>, %108, %cst_36 [2] : vector<2x8x8xf32> to vector<2x8xf32>
    %110 = vector.shape_cast %109 : vector<2x8xf32> to vector<2x8x1xf32>
    %111 = vector.broadcast %110 : vector<2x8x1xf32> to vector<2x8x8xf32>
    %112 = arith.subf %108, %111 : vector<2x8x8xf32>
    %113 = math.exp %112 : vector<2x8x8xf32>
    %cst_37 = arith.constant dense<0.000000e+00> : vector<2x8xf32>
    %114 = vector.multi_reduction <add>, %113, %cst_37 [2] : vector<2x8x8xf32> to vector<2x8xf32>
    %115 = vector.shape_cast %114 : vector<2x8xf32> to vector<2x8x1xf32>
    %116 = tpu.reciprocal %115 {approx = true} : vector<2x8x1xf32> -> vector<2x8x1xf32>
    %117 = vector.broadcast %116 : vector<2x8x1xf32> to vector<2x8x8xf32>
    %118 = arith.mulf %113, %117 : vector<2x8x8xf32>
    %119 = arith.truncf %118 : vector<2x8x8xf32> to vector<2x8x8xbf16>
    "tpu.trace_start"() <{level = 10 : i32, message = "bqk,bkd->bqd"}> : () -> ()
    %cst_38 = arith.constant dense<0.000000e+00> : vector<2x8x4xf32>
    %120 = tpu.matmul %119, %105, %cst_38 {dimension_numbers = #tpu.dot_dimension_numbers<[2], [1], [1], [2], [0, 0, 0, 1, 1, 2], [0], [0]>} : vector<2x8x8xbf16>, vector<2x8x4xbf16>, vector<2x8x4xf32> -> vector<2x8x4xf32>
    "tpu.trace_stop"() : () -> ()
    %121 = vector.extract_strided_slice %8 {offsets = [0, 0, 24], sizes = [2, 8, 4], strides = [1, 1, 1]} : vector<2x8x96xbf16> to vector<2x8x4xbf16>
    %122 = vector.extract_strided_slice %8 {offsets = [0, 0, 56], sizes = [2, 8, 4], strides = [1, 1, 1]} : vector<2x8x96xbf16> to vector<2x8x4xbf16>
    %123 = vector.extract_strided_slice %8 {offsets = [0, 0, 88], sizes = [2, 8, 4], strides = [1, 1, 1]} : vector<2x8x96xbf16> to vector<2x8x4xbf16>
    "tpu.trace_start"() <{level = 10 : i32, message = "bqd,bkd->bqk"}> : () -> ()
    %cst_39 = arith.constant dense<0.000000e+00> : vector<2x8x8xf32>
    %124 = tpu.matmul %121, %122, %cst_39 {dimension_numbers = #tpu.dot_dimension_numbers<[2], [2], [1], [1], [0, 0, 0, 1, 1, 1], [0], [0]>} : vector<2x8x4xbf16>, vector<2x8x4xbf16>, vector<2x8x8xf32> -> vector<2x8x8xf32>
    %cst_40 = arith.constant -1.000000e+09 : f32
    "tpu.trace_stop"() : () -> ()
    %125 = vector.broadcast %cst_40 : f32 to vector<2x8x8xf32>
    %126 = arith.select %12, %124, %125 : vector<2x8x8xi1>, vector<2x8x8xf32>
    %cst_41 = arith.constant dense<0xFF800000> : vector<2x8xf32>
    %127 = vector.multi_reduction <maximumf>, %126, %cst_41 [2] : vector<2x8x8xf32> to vector<2x8xf32>
    %128 = vector.shape_cast %127 : vector<2x8xf32> to vector<2x8x1xf32>
    %129 = vector.broadcast %128 : vector<2x8x1xf32> to vector<2x8x8xf32>
    %130 = arith.subf %126, %129 : vector<2x8x8xf32>
    %131 = math.exp %130 : vector<2x8x8xf32>
    %cst_42 = arith.constant dense<0.000000e+00> : vector<2x8xf32>
    %132 = vector.multi_reduction <add>, %131, %cst_42 [2] : vector<2x8x8xf32> to vector<2x8xf32>
    %133 = vector.shape_cast %132 : vector<2x8xf32> to vector<2x8x1xf32>
    %134 = tpu.reciprocal %133 {approx = true} : vector<2x8x1xf32> -> vector<2x8x1xf32>
    %135 = vector.broadcast %134 : vector<2x8x1xf32> to vector<2x8x8xf32>
    %136 = arith.mulf %131, %135 : vector<2x8x8xf32>
    %137 = arith.truncf %136 : vector<2x8x8xf32> to vector<2x8x8xbf16>
    "tpu.trace_start"() <{level = 10 : i32, message = "bqk,bkd->bqd"}> : () -> ()
    %cst_43 = arith.constant dense<0.000000e+00> : vector<2x8x4xf32>
    %138 = tpu.matmul %137, %123, %cst_43 {dimension_numbers = #tpu.dot_dimension_numbers<[2], [1], [1], [2], [0, 0, 0, 1, 1, 2], [0], [0]>} : vector<2x8x8xbf16>, vector<2x8x4xbf16>, vector<2x8x4xf32> -> vector<2x8x4xf32>
    "tpu.trace_stop"() : () -> ()
    %139 = vector.extract_strided_slice %8 {offsets = [0, 0, 28], sizes = [2, 8, 4], strides = [1, 1, 1]} : vector<2x8x96xbf16> to vector<2x8x4xbf16>
    %140 = vector.extract_strided_slice %8 {offsets = [0, 0, 60], sizes = [2, 8, 4], strides = [1, 1, 1]} : vector<2x8x96xbf16> to vector<2x8x4xbf16>
    %141 = vector.extract_strided_slice %8 {offsets = [0, 0, 92], sizes = [2, 8, 4], strides = [1, 1, 1]} : vector<2x8x96xbf16> to vector<2x8x4xbf16>
    "tpu.trace_start"() <{level = 10 : i32, message = "bqd,bkd->bqk"}> : () -> ()
    %cst_44 = arith.constant dense<0.000000e+00> : vector<2x8x8xf32>
    %142 = tpu.matmul %139, %140, %cst_44 {dimension_numbers = #tpu.dot_dimension_numbers<[2], [2], [1], [1], [0, 0, 0, 1, 1, 1], [0], [0]>} : vector<2x8x4xbf16>, vector<2x8x4xbf16>, vector<2x8x8xf32> -> vector<2x8x8xf32>
    %cst_45 = arith.constant -1.000000e+09 : f32
    "tpu.trace_stop"() : () -> ()
    %143 = vector.broadcast %cst_45 : f32 to vector<2x8x8xf32>
    %144 = arith.select %12, %142, %143 : vector<2x8x8xi1>, vector<2x8x8xf32>
    %cst_46 = arith.constant dense<0xFF800000> : vector<2x8xf32>
    %145 = vector.multi_reduction <maximumf>, %144, %cst_46 [2] : vector<2x8x8xf32> to vector<2x8xf32>
    %146 = vector.shape_cast %145 : vector<2x8xf32> to vector<2x8x1xf32>
    %147 = vector.broadcast %146 : vector<2x8x1xf32> to vector<2x8x8xf32>
    %148 = arith.subf %144, %147 : vector<2x8x8xf32>
    %149 = math.exp %148 : vector<2x8x8xf32>
    %cst_47 = arith.constant dense<0.000000e+00> : vector<2x8xf32>
    %150 = vector.multi_reduction <add>, %149, %cst_47 [2] : vector<2x8x8xf32> to vector<2x8xf32>
    %151 = vector.shape_cast %150 : vector<2x8xf32> to vector<2x8x1xf32>
    %152 = tpu.reciprocal %151 {approx = true} : vector<2x8x1xf32> -> vector<2x8x1xf32>
    %153 = vector.broadcast %152 : vector<2x8x1xf32> to vector<2x8x8xf32>
    %154 = arith.mulf %149, %153 : vector<2x8x8xf32>
    %155 = arith.truncf %154 : vector<2x8x8xf32> to vector<2x8x8xbf16>
    "tpu.trace_start"() <{level = 10 : i32, message = "bqk,bkd->bqd"}> : () -> ()
    %cst_48 = arith.constant dense<0.000000e+00> : vector<2x8x4xf32>
    %156 = tpu.matmul %155, %141, %cst_48 {dimension_numbers = #tpu.dot_dimension_numbers<[2], [1], [1], [2], [0, 0, 0, 1, 1, 2], [0], [0]>} : vector<2x8x8xbf16>, vector<2x8x4xbf16>, vector<2x8x4xf32> -> vector<2x8x4xf32>
    "tpu.trace_stop"() : () -> ()
    %157 = tpu.concatenate %30, %48, %66, %84, %102, %120, %138, %156 in 2 : vector<2x8x4xf32>, vector<2x8x4xf32>, vector<2x8x4xf32>, vector<2x8x4xf32>, vector<2x8x4xf32>, vector<2x8x4xf32>, vector<2x8x4xf32>, vector<2x8x4xf32> -> vector<2x8x32xf32>
    %158 = vector.shape_cast %157 : vector<2x8x32xf32> to vector<16x32xf32>
    %c0_49 = arith.constant 0 : index
    %c0_50 = arith.constant 0 : index
    %159 = vector.load %arg11[%c0_49, %c0_50] : memref<1x32xf32, #tpu.memory_space<vmem>>, vector<1x32xf32>
    %c0_51 = arith.constant 0 : index
    %c0_52 = arith.constant 0 : index
    %160 = vector.load %arg12[%c0_51, %c0_52] : memref<1x32xf32, #tpu.memory_space<vmem>>, vector<1x32xf32>
    %161 = arith.truncf %158 : vector<16x32xf32> to vector<16x32xbf16>
    %c0_53 = arith.constant 0 : index
    %c0_54 = arith.constant 0 : index
    %162 = vector.load %arg5[%c0_53, %c0_54] : memref<32x32xbf16, #tpu.memory_space<vmem>>, vector<32x32xbf16>
    %cst_55 = arith.constant dense<0.000000e+00> : vector<16x32xf32>
    %163 = tpu.matmul %161, %162, %cst_55 {dimension_numbers = #tpu.dot_dimension_numbers<[1], [0], [0], [1], [0, 0, 1, 1], [], []>} : vector<16x32xbf16>, vector<32x32xbf16>, vector<16x32xf32> -> vector<16x32xf32>
    %c0_56 = arith.constant 0 : index
    %c0_57 = arith.constant 0 : index
    %164 = vector.load %arg6[%c0_56, %c0_57] : memref<1x32xf32, #tpu.memory_space<vmem>>, vector<1x32xf32>
    %165 = vector.broadcast %164 : vector<1x32xf32> to vector<16x32xf32>
    %166 = arith.addf %163, %165 : vector<16x32xf32>
    %167 = arith.addf %166, %0 : vector<16x32xf32>
    %cst_58 = arith.constant dense<0.000000e+00> : vector<16xf32>
    %168 = vector.multi_reduction <add>, %167, %cst_58 [1] : vector<16x32xf32> to vector<16xf32>
    %169 = vector.shape_cast %168 : vector<16xf32> to vector<16x1xf32>
    %cst_59 = arith.constant 3.200000e+01 : f32
    %170 = vector.broadcast %cst_59 : f32 to vector<16x1xf32>
    %171 = arith.divf %169, %170 : vector<16x1xf32>
    %172 = arith.mulf %167, %167 : vector<16x32xf32>
    %cst_60 = arith.constant dense<0.000000e+00> : vector<16xf32>
    %173 = vector.multi_reduction <add>, %172, %cst_60 [1] : vector<16x32xf32> to vector<16xf32>
    %174 = vector.shape_cast %173 : vector<16xf32> to vector<16x1xf32>
    %cst_61 = arith.constant 3.200000e+01 : f32
    %175 = vector.broadcast %cst_61 : f32 to vector<16x1xf32>
    %176 = arith.divf %174, %175 : vector<16x1xf32>
    %177 = arith.mulf %171, %171 : vector<16x1xf32>
    %178 = arith.subf %176, %177 : vector<16x1xf32>
    %179 = vector.broadcast %171 : vector<16x1xf32> to vector<16x32xf32>
    %180 = arith.subf %167, %179 : vector<16x32xf32>
    %cst_62 = arith.constant 9.99999974E-6 : f32
    %181 = vector.broadcast %cst_62 : f32 to vector<16x1xf32>
    %182 = arith.addf %178, %181 : vector<16x1xf32>
    %183 = math.rsqrt %182 : vector<16x1xf32>
    %184 = vector.broadcast %183 : vector<16x1xf32> to vector<16x32xf32>
    %185 = arith.mulf %180, %184 : vector<16x32xf32>
    %186 = vector.broadcast %159 : vector<1x32xf32> to vector<16x32xf32>
    %187 = arith.mulf %185, %186 : vector<16x32xf32>
    %188 = vector.broadcast %160 : vector<1x32xf32> to vector<16x32xf32>
    %189 = arith.addf %187, %188 : vector<16x32xf32>
    %190 = arith.truncf %189 : vector<16x32xf32> to vector<16x32xbf16>
    %c0_63 = arith.constant 0 : index
    %c0_64 = arith.constant 0 : index
    %191 = vector.load %arg7[%c0_63, %c0_64] : memref<32x32xbf16, #tpu.memory_space<vmem>>, vector<32x32xbf16>
    %cst_65 = arith.constant dense<0.000000e+00> : vector<16x32xf32>
    %192 = tpu.matmul %190, %191, %cst_65 {dimension_numbers = #tpu.dot_dimension_numbers<[1], [0], [0], [1], [0, 0, 1, 1], [], []>} : vector<16x32xbf16>, vector<32x32xbf16>, vector<16x32xf32> -> vector<16x32xf32>
    %c0_66 = arith.constant 0 : index
    %c0_67 = arith.constant 0 : index
    %193 = vector.load %arg8[%c0_66, %c0_67] : memref<1x32xf32, #tpu.memory_space<vmem>>, vector<1x32xf32>
    %194 = vector.broadcast %193 : vector<1x32xf32> to vector<16x32xf32>
    %195 = arith.addf %192, %194 : vector<16x32xf32>
    %cst_68 = arith.constant 0.000000e+00 : f32
    %196 = vector.broadcast %cst_68 : f32 to vector<16x32xf32>
    %197 = arith.cmpf oge, %195, %196 : vector<16x32xf32>
    %cst_69 = arith.constant 0.00999999977 : f32
    %198 = vector.broadcast %cst_69 : f32 to vector<16x32xf32>
    %199 = arith.mulf %198, %195 : vector<16x32xf32>
    %200 = arith.select %197, %195, %199 : vector<16x32xi1>, vector<16x32xf32>
    %201 = arith.truncf %200 : vector<16x32xf32> to vector<16x32xbf16>
    %c0_70 = arith.constant 0 : index
    %c0_71 = arith.constant 0 : index
    %202 = vector.load %arg9[%c0_70, %c0_71] : memref<32x32xbf16, #tpu.memory_space<vmem>>, vector<32x32xbf16>
    %cst_72 = arith.constant dense<0.000000e+00> : vector<16x32xf32>
    %203 = tpu.matmul %201, %202, %cst_72 {dimension_numbers = #tpu.dot_dimension_numbers<[1], [0], [0], [1], [0, 0, 1, 1], [], []>} : vector<16x32xbf16>, vector<32x32xbf16>, vector<16x32xf32> -> vector<16x32xf32>
    %c0_73 = arith.constant 0 : index
    %c0_74 = arith.constant 0 : index
    %204 = vector.load %arg10[%c0_73, %c0_74] : memref<1x32xf32, #tpu.memory_space<vmem>>, vector<1x32xf32>
    %205 = vector.broadcast %204 : vector<1x32xf32> to vector<16x32xf32>
    %206 = arith.addf %203, %205 : vector<16x32xf32>
    %207 = arith.addf %206, %189 : vector<16x32xf32>
    %cst_75 = arith.constant dense<0.000000e+00> : vector<16xf32>
    %208 = vector.multi_reduction <add>, %207, %cst_75 [1] : vector<16x32xf32> to vector<16xf32>
    %209 = vector.shape_cast %208 : vector<16xf32> to vector<16x1xf32>
    %cst_76 = arith.constant 3.200000e+01 : f32
    %210 = vector.broadcast %cst_76 : f32 to vector<16x1xf32>
    %211 = arith.divf %209, %210 : vector<16x1xf32>
    %212 = arith.mulf %207, %207 : vector<16x32xf32>
    %cst_77 = arith.constant dense<0.000000e+00> : vector<16xf32>
    %213 = vector.multi_reduction <add>, %212, %cst_77 [1] : vector<16x32xf32> to vector<16xf32>
    %214 = vector.shape_cast %213 : vector<16xf32> to vector<16x1xf32>
    %cst_78 = arith.constant 3.200000e+01 : f32
    %215 = vector.broadcast %cst_78 : f32 to vector<16x1xf32>
    %216 = arith.divf %214, %215 : vector<16x1xf32>
    %217 = arith.mulf %211, %211 : vector<16x1xf32>
    %218 = arith.subf %216, %217 : vector<16x1xf32>
    %219 = vector.broadcast %211 : vector<16x1xf32> to vector<16x32xf32>
    %220 = arith.subf %207, %219 : vector<16x32xf32>
    %cst_79 = arith.constant 9.99999974E-6 : f32
    %221 = vector.broadcast %cst_79 : f32 to vector<16x1xf32>
    %222 = arith.addf %218, %221 : vector<16x1xf32>
    %223 = math.rsqrt %222 : vector<16x1xf32>
    %224 = vector.broadcast %223 : vector<16x1xf32> to vector<16x32xf32>
    %225 = arith.mulf %220, %224 : vector<16x32xf32>
    %226 = vector.broadcast %159 : vector<1x32xf32> to vector<16x32xf32>
    %227 = arith.mulf %225, %226 : vector<16x32xf32>
    %228 = vector.broadcast %160 : vector<1x32xf32> to vector<16x32xf32>
    %229 = arith.addf %227, %228 : vector<16x32xf32>
    %cst_80 = arith.constant 0.000000e+00 : f32
    %230 = vector.broadcast %cst_80 : f32 to vector<16x32xf32>
    %231 = arith.cmpf oge, %229, %230 : vector<16x32xf32>
    %cst_81 = arith.constant 0.00999999977 : f32
    %232 = vector.broadcast %cst_81 : f32 to vector<16x32xf32>
    %233 = arith.mulf %232, %229 : vector<16x32xf32>
    %234 = arith.select %231, %229, %233 : vector<16x32xi1>, vector<16x32xf32>
    %c0_82 = arith.constant 0 : index
    %c0_83 = arith.constant 0 : index
    %235 = vector.load %arg13[%c0_82, %c0_83] : memref<16x32xf32, #tpu.memory_space<vmem>>, vector<16x32xf32>
    tpu.vector_store %arg13[%c0_82, %c0_83], %234 {strides = array<i32>} : memref<16x32xf32, #tpu.memory_space<vmem>>, vector<16x32xf32>,
    return
  }
  func.func @transform_0(%arg0: i32) -> (i32, i32) {
    %c0_i32 = arith.constant 0 : i32
    %c0_i32_0 = arith.constant 0 : i32
    return %arg0, %c0_i32 : i32, i32
  }
  func.func @transform_1(%arg0: i32) -> (i32, i32, i32) {
    %c0_i32 = arith.constant 0 : i32
    %c0_i32_0 = arith.constant 0 : i32
    %c0_i32_1 = arith.constant 0 : i32
    return %arg0, %c0_i32, %c0_i32_0 : i32, i32, i32
  }
  func.func @transform_2(%arg0: i32) -> (i32, i32) {
    %c0_i32 = arith.constant 0 : i32
    %c0_i32_0 = arith.constant 0 : i32
    %c0_i32_1 = arith.constant 0 : i32
    return %c0_i32, %c0_i32_0 : i32, i32
  }
  func.func @transform_3(%arg0: i32) -> (i32, i32) {
    %c0_i32 = arith.constant 0 : i32
    %c0_i32_0 = arith.constant 0 : i32
    %c0_i32_1 = arith.constant 0 : i32
    return %c0_i32, %c0_i32_0 : i32, i32
  }
  func.func @transform_4(%arg0: i32) -> (i32, i32) {
    %c0_i32 = arith.constant 0 : i32
    %c0_i32_0 = arith.constant 0 : i32
    %c0_i32_1 = arith.constant 0 : i32
    return %c0_i32, %c0_i32_0 : i32, i32
  }
  func.func @transform_5(%arg0: i32) -> (i32, i32) {
    %c0_i32 = arith.constant 0 : i32
    %c0_i32_0 = arith.constant 0 : i32
    %c0_i32_1 = arith.constant 0 : i32
    return %c0_i32, %c0_i32_0 : i32, i32
  }
  func.func @transform_6(%arg0: i32) -> (i32, i32) {
    %c0_i32 = arith.constant 0 : i32
    %c0_i32_0 = arith.constant 0 : i32
    %c0_i32_1 = arith.constant 0 : i32
    return %c0_i32, %c0_i32_0 : i32, i32
  }
  func.func @transform_7(%arg0: i32) -> (i32, i32) {
    %c0_i32 = arith.constant 0 : i32
    %c0_i32_0 = arith.constant 0 : i32
    %c0_i32_1 = arith.constant 0 : i32
    return %c0_i32, %c0_i32_0 : i32, i32
  }
  func.func @transform_8(%arg0: i32) -> (i32, i32) {
    %c0_i32 = arith.constant 0 : i32
    %c0_i32_0 = arith.constant 0 : i32
    %c0_i32_1 = arith.constant 0 : i32
    return %c0_i32, %c0_i32_0 : i32, i32
  }
  func.func @transform_9(%arg0: i32) -> (i32, i32) {
    %c0_i32 = arith.constant 0 : i32
    %c0_i32_0 = arith.constant 0 : i32
    %c0_i32_1 = arith.constant 0 : i32
    return %c0_i32, %c0_i32_0 : i32, i32
  }
  func.func @transform_10(%arg0: i32) -> (i32, i32) {
    %c0_i32 = arith.constant 0 : i32
    %c0_i32_0 = arith.constant 0 : i32
    %c0_i32_1 = arith.constant 0 : i32
    return %c0_i32, %c0_i32_0 : i32, i32
  }
  func.func @transform_11(%arg0: i32) -> (i32, i32) {
    %c0_i32 = arith.constant 0 : i32
    %c0_i32_0 = arith.constant 0 : i32
    %c0_i32_1 = arith.constant 0 : i32
    return %c0_i32, %c0_i32_0 : i32, i32
  }
  func.func @transform_12(%arg0: i32) -> (i32, i32) {
    %c0_i32 = arith.constant 0 : i32
    %c0_i32_0 = arith.constant 0 : i32
    return %arg0, %c0_i32 : i32, i32
  }
}

</mosaic_0001>

<llo_original>
// kernel: tpu_custom_call.1
$region0: #{tpu_custom_call.1}
  #allocation0 [shape = 'u32[]', space=smem, size = 0x4, offset = 0x4, fixed_abs, tag = 'smem constant byte address 0x4 - core index']
  #allocation1 [shape = 'u32[72,128]{1,0:T(1,128)}', space=vmem, size = 0x9000, scoped, tag = 'internal scratch']
  %s0 = inlined_call_operand.hbm [shape: f32[16,32], index: 0, kind: input, shape index: {}]
  %s1 = inlined_call_operand.hbm [shape: s8[2,8,8], index: 1, kind: input, shape index: {}]
  %s2 = inlined_call_operand.hbm [shape: bf16[32,96], index: 2, kind: input, shape index: {}]
  %s3 = inlined_call_operand.vmem [shape: f32[1,96], index: 3, kind: input, shape index: {}]
  %s4 = inlined_call_operand.hbm [shape: bf16[32,32], index: 4, kind: input, shape index: {}]
  %s5 = inlined_call_operand.vmem [shape: f32[1,32], index: 5, kind: input, shape index: {}]
  %s6 = inlined_call_operand.hbm [shape: bf16[32,32], index: 6, kind: input, shape index: {}]
  %s7 = inlined_call_operand.vmem [shape: f32[1,32], index: 7, kind: input, shape index: {}]
  %s8 = inlined_call_operand.hbm [shape: bf16[32,32], index: 8, kind: input, shape index: {}]
  %s9 = inlined_call_operand.vmem [shape: f32[1,32], index: 9, kind: input, shape index: {}]
  %s10 = inlined_call_operand.vmem [shape: f32[1,32], index: 10, kind: input, shape index: {}]
  %s11 = inlined_call_operand.vmem [shape: f32[1,32], index: 11, kind: input, shape index: {}]
  %s12 = inlined_call_operand.hbm [shape: f32[16,32], index: 12, kind: output, shape index: {}]
  %s13 = sld [smem:[#allocation0]]
  $region82: #{tpu_custom_call.1} parent=0
    _
  %s15 = ssub.s32 1, %s13
  %s16 = scalar_select 0, %s15, %s13
  $region1: #{tpu_custom_call.1} parent=0
    #allocation2 [shape = 'u8[8192]{0}', space=vmem, size = 0x2000, scoped, tag = 'input window, operand 0, single buffered']
    #allocation3 [shape = 's32[1]{0}', space=sflag, size = 0x4, scoped, tag = 'scoped memory for tpu_custom_call.1']
    #allocation4 [shape = 's32[1]{0}', space=sflag, size = 0x4, scoped, tag = 'scoped memory for tpu_custom_call.1']
    #allocation5 [shape = 'u8[2048]{0}', space=vmem, size = 0x800, scoped, tag = 'input window, operand 1, single buffered']
    #allocation6 [shape = 's32[1]{0}', space=sflag, size = 0x4, scoped, tag = 'scoped memory for tpu_custom_call.1']
    #allocation7 [shape = 'u8[8192]{0}', space=vmem, size = 0x2000, scoped, tag = 'input window, operand 2, single buffered']
    #allocation8 [shape = 'u8[8192]{0}', space=vmem, size = 0x2000, scoped, tag = 'input window, operand 4, single buffered']
    #allocation9 [shape = 's32[1]{0}', space=sflag, size = 0x4, scoped, tag = 'scoped memory for tpu_custom_call.1']
    #allocation10 [shape = 'u8[8192]{0}', space=vmem, size = 0x2000, scoped, tag = 'input window, operand 6, single buffered']
    #allocation11 [shape = 'u8[8192]{0}', space=vmem, size = 0x2000, scoped, tag = 'input window, operand 8, single buffered']
    #allocation12 [shape = 's32[1]{0}', space=sflag, size = 0x4, scoped, tag = 'scoped memory for tpu_custom_call.1']
    #allocation13 [shape = 'u8[8192]{0}', space=vmem, size = 0x2000, scoped, tag = 'output window, operand 0, single buffered']
    %17 = vsyncpa [#allocation3], 0
    %18 = vsyncpa [#allocation6], 0
    %19 = vsyncpa [#allocation9], 0
    %20 = vsyncpa [#allocation12], 0
    %21 = vsyncpa [#allocation4], 0
    // Predicated region
    $region2: #{tpu_custom_call.1} parent=1 // pred_check
      _
    $region3: #{tpu_custom_call.1} parent=1 // pred_check_branch
      %23 = sbr.rel (0) target = $region5
    $region4: #{tpu_custom_call.1} parent=1 // pred_region
      %25 = vsyncadd [#allocation3], 0
      %s26 = sshll.u32 %s0, 4
      %s27 = int_to_ptr.hbm [resolvable:$true] %s26
      %s28 = sshll.u32 [#allocation2], 4
      %s29 = int_to_ptr.vmem [resolvable:$true] %s28
      %34 = dma.hbm_to_vmem [thread:$0]  %s27, 256, %s29, [#allocation3], 128, 128, 8
    $region5: #{tpu_custom_call.1} parent=1 // pred_fallthru
      _
    // Predicated region
    $region6: #{tpu_custom_call.1} parent=1 // pred_check
      _
    $region7: #{tpu_custom_call.1} parent=1 // pred_check_branch
      %36 = sbr.rel (0) target = $region9
    $region8: #{tpu_custom_call.1} parent=1 // pred_region
      %38 = vsyncadd [#allocation6], 0
      %s39 = sshll.u32 %s1, 4
      %s40 = int_to_ptr.hbm [resolvable:$true] %s39
      %s41 = sshll.u32 [#allocation5], 4
      %s42 = int_to_ptr.vmem [resolvable:$true] %s41
      %47 = dma.hbm_to_vmem [thread:$0]  %s40, 64, %s42, [#allocation6], 32, 32, 2
    $region9: #{tpu_custom_call.1} parent=1 // pred_fallthru
      _
    // Predicated region
    $region10: #{tpu_custom_call.1} parent=1 // pred_check
      _
    $region11: #{tpu_custom_call.1} parent=1 // pred_check_branch
      %49 = sbr.rel (0) target = $region13
    $region12: #{tpu_custom_call.1} parent=1 // pred_region
      %51 = vsyncadd [#allocation6], 0
      %s52 = sshll.u32 %s2, 4
      %s53 = int_to_ptr.hbm [resolvable:$true] %s52
      %s54 = sshll.u32 [#allocation7], 4
      %s55 = int_to_ptr.vmem [resolvable:$true] %s54
      %60 = dma.hbm_to_vmem [thread:$0]  %s53, 256, %s55, [#allocation6], 64, 64, 4
    $region13: #{tpu_custom_call.1} parent=1 // pred_fallthru
      _
    // Predicated region
    $region14: #{tpu_custom_call.1} parent=1 // pred_check
      _
    $region15: #{tpu_custom_call.1} parent=1 // pred_check_branch
      %62 = sbr.rel (0) target = $region17
    $region16: #{tpu_custom_call.1} parent=1 // pred_region
      _
    $region17: #{tpu_custom_call.1} parent=1 // pred_fallthru
      _
    // Predicated region
    $region18: #{tpu_custom_call.1} parent=1 // pred_check
      _
    $region19: #{tpu_custom_call.1} parent=1 // pred_check_branch
      %64 = sbr.rel (0) target = $region21
    $region20: #{tpu_custom_call.1} parent=1 // pred_region
      %66 = vsyncadd [#allocation9], 0
      %s67 = sshll.u32 %s4, 4
      %s68 = int_to_ptr.hbm [resolvable:$true] %s67
      %s69 = sshll.u32 [#allocation8], 4
      %s70 = int_to_ptr.vmem [resolvable:$true] %s69
      %75 = dma.hbm_to_vmem [thread:$0]  %s68, 256, %s70, [#allocation9], 64, 64, 4
    $region21: #{tpu_custom_call.1} parent=1 // pred_fallthru
      _
    // Predicated region
    $region22: #{tpu_custom_call.1} parent=1 // pred_check
      _
    $region23: #{tpu_custom_call.1} parent=1 // pred_check_branch
      %77 = sbr.rel (0) target = $region25
    $region24: #{tpu_custom_call.1} parent=1 // pred_region
      _
    $region25: #{tpu_custom_call.1} parent=1 // pred_fallthru
      _
    // Predicated region
    $region26: #{tpu_custom_call.1} parent=1 // pred_check
      _
    $region27: #{tpu_custom_call.1} parent=1 // pred_check_branch
      %79 = sbr.rel (0) target = $region29
    $region28: #{tpu_custom_call.1} parent=1 // pred_region
      %81 = vsyncadd [#allocation9], 0
      %s82 = sshll.u32 %s6, 4
      %s83 = int_to_ptr.hbm [resolvable:$true] %s82
      %s84 = sshll.u32 [#allocation10], 4
      %s85 = int_to_ptr.vmem [resolvable:$true] %s84
      %90 = dma.hbm_to_vmem [thread:$0]  %s83, 256, %s85, [#allocation9], 64, 64, 4
    $region29: #{tpu_custom_call.1} parent=1 // pred_fallthru
      _
    // Predicated region
    $region30: #{tpu_custom_call.1} parent=1 // pred_check
      _
    $region31: #{tpu_custom_call.1} parent=1 // pred_check_branch
      %92 = sbr.rel (0) target = $region33
    $region32: #{tpu_custom_call.1} parent=1 // pred_region
      _
    $region33: #{tpu_custom_call.1} parent=1 // pred_fallthru
      _
    // Predicated region
    $region34: #{tpu_custom_call.1} parent=1 // pred_check
      _
    $region35: #{tpu_custom_call.1} parent=1 // pred_check_branch
      %94 = sbr.rel (0) target = $region37
    $region36: #{tpu_custom_call.1} parent=1 // pred_region
      %96 = vsyncadd [#allocation12], 0
      %s97 = sshll.u32 %s8, 4
      %s98 = int_to_ptr.hbm [resolvable:$true] %s97
      %s99 = sshll.u32 [#allocation11], 4
      %s100 = int_to_ptr.vmem [resolvable:$true] %s99
      %105 = dma.hbm_to_vmem [thread:$0]  %s98, 256, %s100, [#allocation12], 64, 64, 4
    $region37: #{tpu_custom_call.1} parent=1 // pred_fallthru
      _
    // Predicated region
    $region38: #{tpu_custom_call.1} parent=1 // pred_check
      _
    $region39: #{tpu_custom_call.1} parent=1 // pred_check_branch
      %107 = sbr.rel (0) target = $region41
    $region40: #{tpu_custom_call.1} parent=1 // pred_region
      _
    $region41: #{tpu_custom_call.1} parent=1 // pred_fallthru
      _
    // Predicated region
    $region42: #{tpu_custom_call.1} parent=1 // pred_check
      _
    $region43: #{tpu_custom_call.1} parent=1 // pred_check_branch
      %109 = sbr.rel (0) target = $region45
    $region44: #{tpu_custom_call.1} parent=1 // pred_region
      _
    $region45: #{tpu_custom_call.1} parent=1 // pred_fallthru
      _
    // Predicated region
    $region46: #{tpu_custom_call.1} parent=1 // pred_check
      _
    $region47: #{tpu_custom_call.1} parent=1 // pred_check_branch
      %111 = sbr.rel (0) target = $region49
    $region48: #{tpu_custom_call.1} parent=1 // pred_region
      _
    $region49: #{tpu_custom_call.1} parent=1 // pred_fallthru
      _
    // Predicated region
    $region50: #{tpu_custom_call.1} parent=1 // pred_check
      _
    $region51: #{tpu_custom_call.1} parent=1 // pred_check_branch
      %113 = sbr.rel (0) target = $region53
    $region52: #{tpu_custom_call.1} parent=1 // pred_region
      %115 = dma.done [#allocation3], 256
    $region53: #{tpu_custom_call.1} parent=1 // pred_fallthru
      _
    // Predicated region
    $region54: #{tpu_custom_call.1} parent=1 // pred_check
      _
    $region55: #{tpu_custom_call.1} parent=1 // pred_check_branch
      %117 = sbr.rel (0) target = $region57
    $region56: #{tpu_custom_call.1} parent=1 // pred_region
      %119 = dma.done [#allocation6], 64
    $region57: #{tpu_custom_call.1} parent=1 // pred_fallthru
      _
    // Predicated region
    $region58: #{tpu_custom_call.1} parent=1 // pred_check
      _
    $region59: #{tpu_custom_call.1} parent=1 // pred_check_branch
      %121 = sbr.rel (0) target = $region61
    $region60: #{tpu_custom_call.1} parent=1 // pred_region
      %123 = dma.done [#allocation6], 256
    $region61: #{tpu_custom_call.1} parent=1 // pred_fallthru
      _
    // Predicated region
    $region62: #{tpu_custom_call.1} parent=1 // pred_check
      _
    $region63: #{tpu_custom_call.1} parent=1 // pred_check_branch
      %125 = sbr.rel (0) target = $region65
    $region64: #{tpu_custom_call.1} parent=1 // pred_region
      %127 = dma.done [#allocation9], 256
    $region65: #{tpu_custom_call.1} parent=1 // pred_fallthru
      _
    // Predicated region
    $region66: #{tpu_custom_call.1} parent=1 // pred_check
      _
    $region67: #{tpu_custom_call.1} parent=1 // pred_check_branch
      %129 = sbr.rel (0) target = $region69
    $region68: #{tpu_custom_call.1} parent=1 // pred_region
      %131 = dma.done [#allocation9], 256
    $region69: #{tpu_custom_call.1} parent=1 // pred_fallthru
      _
    // Predicated region
    $region70: #{tpu_custom_call.1} parent=1 // pred_check
      _
    $region71: #{tpu_custom_call.1} parent=1 // pred_check_branch
      %133 = sbr.rel (0) target = $region73
    $region72: #{tpu_custom_call.1} parent=1 // pred_region
      %135 = dma.done [#allocation12], 256
    $region73: #{tpu_custom_call.1} parent=1 // pred_fallthru
      _
    %v137 = vld [vmem:[#allocation2] sm:$0xff]
    %v138 = vld [vmem:[#allocation2 + $0x8] sm:$0xff]
    %v139 = vpack.c.bf16 %v138, %v137
    %v140 = vld [vmem:[#allocation7] sm:$0xf]
    %v141 = vld [vmem:[#allocation7 + $0x4] sm:$0xf]
    %v142 = vld [vmem:[#allocation7 + $0x8] sm:$0xf]
    %v143 = vld [vmem:[#allocation7 + $0xc] sm:$0xf]
    %v144 = vld [vmem:[%s3] sm:$0x1]
    %v146 = vperm.slane %v144, 0
    %v152 = vunpack.c.l.b16 %v140
    %v153 = vunpack.c.l.b16 %v141
    %v154 = vunpack.c.l.b16 %v142
    %v155 = vunpack.c.l.b16 %v143
    %v156 = vpack.c.b16 %v153, %v152
    %v157 = vpack.c.b16 %v155, %v154
    %vm160 = vcmask 261120
    %v162 = vsel %vm160, %v139, 0
    %164 = vmatpush.bf16.msra.mxu0 0
    %165 = vmatpush.bf16.msra.mxu0 0
    %166 = vmatpush.bf16.msra.mxu0 0
    %167 = vmatpush.bf16.msra.mxu0 0
    %168 = vmatpush.bf16.msra.mxu0 0
    %169 = vmatpush.bf16.msra.mxu0 0
    %170 = vmatpush.bf16.msra.mxu0 %v157
    %171 = vmatpush.bf16.msra.mxu0 %v156
    %172 = vmatmul.bf16.gmra.mxu0 %v162
    %v173 = vpop.f32.mrf.mxu0
    %v174 = vadd.f32 %v146, %v173
    %v175 = vpop.f32.mrf.mxu0
    %v176 = vadd.f32 %v146, %v175
    %177 = vdwg.mxu0
    %v178 = vpack.c.bf16 %v174, %v174
    %v179 = vpack.c.bf16 %v176, %v176
    %v180 = vld [vmem:[#allocation5] sm:$0x3]
    %v181 = vld [vmem:[#allocation5 + $0x2] sm:$0x3]
    %v182 = vunpack.c.0.s8 %v180
    %v183 = vunpack.c.0.s8 %v181
    %v184 = vcvt.s32.f32 %v182
    %v185 = vcvt.s32.f32 %v183
    %vm186 = vcmp.ne.f32.partialorder %v184, 0.0
    %vm187 = vcmp.ne.f32.partialorder %v185, 0.0
    %v189 = vunpack.c.l.b16 %v178
    %v190 = vpack.c.b16 %v189, %v189
    %191 = vrot.lane.b32.xlu0 %v190, 96
    %v192 = vpop.permute.xlu0 %191
    %vm193 = vcmask 31744
    %v195 = vsel %vm193, %v178, 0
    %v198 = vsel %vm193, %v192, 0
    %200 = vmatpush.bf16.xpose.msra.mxu0 0
    %201 = vmatpush.bf16.xpose.msra.mxu0 0
    %202 = vmatpush.bf16.xpose.msra.mxu0 0
    %203 = vmatpush.bf16.xpose.msra.mxu0 0
    %204 = vmatpush.bf16.xpose.msra.mxu0 0
    %205 = vmatpush.bf16.xpose.msra.mxu0 0
    %206 = vmatpush.bf16.xpose.msra.mxu0 0
    %207 = vmatpush.bf16.xpose.msra.mxu0 %v198
    %208 = vmatmul.bf16.gmra.mxu0 %v195
    %v209 = vpop.f32.mrf.mxu0
    %v210 = vadd.f32 0.0, %v209
    %v211 = vpop.f32.mrf.mxu0
    %212 = vdwg.mxu0
    %v214 = vunpack.c.l.b16 %v179
    %v215 = vpack.c.b16 %v214, %v214
    %216 = vrot.lane.b32.xlu0 %v215, 96
    %v217 = vpop.permute.xlu0 %216
    %v219 = vsel %vm193, %v179, 0
    %v222 = vsel %vm193, %v217, 0
    %224 = vmatpush.bf16.xpose.msra.mxu0 0
    %225 = vmatpush.bf16.xpose.msra.mxu0 0
    %226 = vmatpush.bf16.xpose.msra.mxu0 0
    %227 = vmatpush.bf16.xpose.msra.mxu0 0
    %228 = vmatpush.bf16.xpose.msra.mxu0 0
    %229 = vmatpush.bf16.xpose.msra.mxu0 0
    %230 = vmatpush.bf16.xpose.msra.mxu0 0
    %231 = vmatpush.bf16.xpose.msra.mxu0 %v222
    %232 = vmatmul.bf16.gmra.mxu0 %v219
    %v233 = vpop.f32.mrf.mxu0
    %v234 = vadd.f32 0.0, %v233
    %v235 = vpop.f32.mrf.mxu0
    %236 = vdwg.mxu0
    %v237 = vsel %vm186, %v210, -1e+09
    %v238 = vsel %vm187, %v234, -1e+09
    %vm239 = vcmask 64512
    %v240 = vsel %vm239, %v237, -inf
    %241 = vmax.xlane.f32.xlu0 %v240
    %v242 = vpop.xlane.xlu0 %241
    %v243 = vsel %vm239, %v238, -inf
    %244 = vmax.xlane.f32.xlu0 %v243
    %v245 = vpop.xlane.xlu0 %244
    %v246 = vsub.f32 %v237, %v242
    %v247 = vsub.f32 %v238, %v245
    %v248 = vmul.f32 %v246, 1.442695
    %v249 = vpow.pop %v248
    %v250 = vmul.f32 %v247, 1.442695
    %v251 = vpow.pop %v250
    %v252 = vsel %vm239, %v249, 0.0
    %253 = vadd.xlane.f32.xlu0 %v252
    %v254 = vpop.xlane.xlu0 %253
    %v255 = vsel %vm239, %v251, 0.0
    %256 = vadd.xlane.f32.xlu0 %v255
    %v257 = vpop.xlane.xlu0 %256
    %v258 = vrcp.pop %v254
    %v259 = vrcp.pop %v257
    %v260 = vmul.f32 %v249, %v258
    %v261 = vmul.f32 %v251, %v259
    %v262 = vpack.c.bf16 %v260, %v260
    %v263 = vpack.c.bf16 %v261, %v261
    %264 = vrot.lane.b32.xlu0 %v190, 64
    %v265 = vpop.permute.xlu0 %264
    %v267 = vsel %vm239, %v262, 0
    %vm269 = vcmask 1043456
    %v271 = vsel %vm269, %v265, 0
    %273 = vmatpush.bf16.msra.mxu0 0
    %274 = vmatpush.bf16.msra.mxu0 0
    %275 = vmatpush.bf16.msra.mxu0 0
    %276 = vmatpush.bf16.msra.mxu0 0
    %277 = vmatpush.bf16.msra.mxu0 0
    %278 = vmatpush.bf16.msra.mxu0 0
    %279 = vmatpush.bf16.msra.mxu0 0
    %280 = vmatpush.bf16.msra.mxu0 %v271
    %281 = vmatmul.bf16.gmra.mxu0 %v267
    %v282 = vpop.f32.mrf.mxu0
    %v283 = vadd.f32 0.0, %v282
    %v284 = vpop.f32.mrf.mxu0
    %285 = vdwg.mxu0
    %286 = vrot.lane.b32.xlu0 %v215, 64
    %v287 = vpop.permute.xlu0 %286
    %v289 = vsel %vm239, %v263, 0
    %v292 = vsel %vm269, %v287, 0
    %294 = vmatpush.bf16.msra.mxu0 0
    %295 = vmatpush.bf16.msra.mxu0 0
    %296 = vmatpush.bf16.msra.mxu0 0
    %297 = vmatpush.bf16.msra.mxu0 0
    %298 = vmatpush.bf16.msra.mxu0 0
    %299 = vmatpush.bf16.msra.mxu0 0
    %300 = vmatpush.bf16.msra.mxu0 0
    %301 = vmatpush.bf16.msra.mxu0 %v292
    %302 = vmatmul.bf16.gmra.mxu0 %v289
    %v303 = vpop.f32.mrf.mxu0
    %v304 = vadd.f32 0.0, %v303
    %v305 = vpop.f32.mrf.mxu0
    %306 = vdwg.mxu0
    %307 = vrot.lane.b32.xlu0 %v190, 124
    %v308 = vpop.permute.xlu0 %307
    %309 = vrot.lane.b32.xlu0 %v190, 92
    %v310 = vpop.permute.xlu0 %309
    %v312 = vsel %vm193, %v308, 0
    %v315 = vsel %vm193, %v310, 0
    %317 = vmatpush.bf16.xpose.msra.mxu0 0
    %318 = vmatpush.bf16.xpose.msra.mxu0 0
    %319 = vmatpush.bf16.xpose.msra.mxu0 0
    %320 = vmatpush.bf16.xpose.msra.mxu0 0
    %321 = vmatpush.bf16.xpose.msra.mxu0 0
    %322 = vmatpush.bf16.xpose.msra.mxu0 0
    %323 = vmatpush.bf16.xpose.msra.mxu0 0
    %324 = vmatpush.bf16.xpose.msra.mxu0 %v315
    %325 = vmatmul.bf16.gmra.mxu0 %v312
    %v326 = vpop.f32.mrf.mxu0
    %v327 = vadd.f32 0.0, %v326
    %v328 = vpop.f32.mrf.mxu0
    %329 = vdwg.mxu0
    %330 = vrot.lane.b32.xlu0 %v215, 124
    %v331 = vpop.permute.xlu0 %330
    %332 = vrot.lane.b32.xlu0 %v215, 92
    %v333 = vpop.permute.xlu0 %332
    %v335 = vsel %vm193, %v331, 0
    %v338 = vsel %vm193, %v333, 0
    %340 = vmatpush.bf16.xpose.msra.mxu0 0
    %341 = vmatpush.bf16.xpose.msra.mxu0 0
    %342 = vmatpush.bf16.xpose.msra.mxu0 0
    %343 = vmatpush.bf16.xpose.msra.mxu0 0
    %344 = vmatpush.bf16.xpose.msra.mxu0 0
    %345 = vmatpush.bf16.xpose.msra.mxu0 0
    %346 = vmatpush.bf16.xpose.msra.mxu0 0
    %347 = vmatpush.bf16.xpose.msra.mxu0 %v338
    %348 = vmatmul.bf16.gmra.mxu0 %v335
    %v349 = vpop.f32.mrf.mxu0
    %v350 = vadd.f32 0.0, %v349
    %v351 = vpop.f32.mrf.mxu0
    %352 = vdwg.mxu0
    %v353 = vsel %vm186, %v327, -1e+09
    %v354 = vsel %vm187, %v350, -1e+09
    %v355 = vsel %vm239, %v353, -inf
    %356 = vmax.xlane.f32.xlu0 %v355
    %v357 = vpop.xlane.xlu0 %356
    %v358 = vsel %vm239, %v354, -inf
    %359 = vmax.xlane.f32.xlu0 %v358
    %v360 = vpop.xlane.xlu0 %359
    %v361 = vsub.f32 %v353, %v357
    %v362 = vsub.f32 %v354, %v360
    %v363 = vmul.f32 %v361, 1.442695
    %v364 = vpow.pop %v363
    %v365 = vmul.f32 %v362, 1.442695
    %v366 = vpow.pop %v365
    %v367 = vsel %vm239, %v364, 0.0
    %368 = vadd.xlane.f32.xlu0 %v367
    %v369 = vpop.xlane.xlu0 %368
    %v370 = vsel %vm239, %v366, 0.0
    %371 = vadd.xlane.f32.xlu0 %v370
    %v372 = vpop.xlane.xlu0 %371
    %v373 = vrcp.pop %v369
    %v374 = vrcp.pop %v372
    %v375 = vmul.f32 %v364, %v373
    %v376 = vmul.f32 %v366, %v374
    %v377 = vpack.c.bf16 %v375, %v375
    %v378 = vpack.c.bf16 %v376, %v376
    %379 = vrot.lane.b32.xlu0 %v190, 60
    %v380 = vpop.permute.xlu0 %379
    %v382 = vsel %vm239, %v377, 0
    %v385 = vsel %vm269, %v380, 0
    %387 = vmatpush.bf16.msra.mxu0 0
    %388 = vmatpush.bf16.msra.mxu0 0
    %389 = vmatpush.bf16.msra.mxu0 0
    %390 = vmatpush.bf16.msra.mxu0 0
    %391 = vmatpush.bf16.msra.mxu0 0
    %392 = vmatpush.bf16.msra.mxu0 0
    %393 = vmatpush.bf16.msra.mxu0 0
    %394 = vmatpush.bf16.msra.mxu0 %v385
    %395 = vmatmul.bf16.gmra.mxu0 %v382
    %v396 = vpop.f32.mrf.mxu0
    %v397 = vadd.f32 0.0, %v396
    %v398 = vpop.f32.mrf.mxu0
    %399 = vdwg.mxu0
    %400 = vrot.lane.b32.xlu0 %v215, 60
    %v401 = vpop.permute.xlu0 %400
    %v403 = vsel %vm239, %v378, 0
    %v406 = vsel %vm269, %v401, 0
    %408 = vmatpush.bf16.msra.mxu0 0
    %409 = vmatpush.bf16.msra.mxu0 0
    %410 = vmatpush.bf16.msra.mxu0 0
    %411 = vmatpush.bf16.msra.mxu0 0
    %412 = vmatpush.bf16.msra.mxu0 0
    %413 = vmatpush.bf16.msra.mxu0 0
    %414 = vmatpush.bf16.msra.mxu0 0
    %415 = vmatpush.bf16.msra.mxu0 %v406
    %416 = vmatmul.bf16.gmra.mxu0 %v403
    %v417 = vpop.f32.mrf.mxu0
    %v418 = vadd.f32 0.0, %v417
    %v419 = vpop.f32.mrf.mxu0
    %420 = vdwg.mxu0
    %421 = vrot.lane.b32.xlu0 %v190, 120
    %v422 = vpop.permute.xlu0 %421
    %423 = vrot.lane.b32.xlu0 %v190, 88
    %v424 = vpop.permute.xlu0 %423
    %v426 = vsel %vm193, %v422, 0
    %v429 = vsel %vm193, %v424, 0
    %431 = vmatpush.bf16.xpose.msra.mxu0 0
    %432 = vmatpush.bf16.xpose.msra.mxu0 0
    %433 = vmatpush.bf16.xpose.msra.mxu0 0
    %434 = vmatpush.bf16.xpose.msra.mxu0 0
    %435 = vmatpush.bf16.xpose.msra.mxu0 0
    %436 = vmatpush.bf16.xpose.msra.mxu0 0
    %437 = vmatpush.bf16.xpose.msra.mxu0 0
    %438 = vmatpush.bf16.xpose.msra.mxu0 %v429
    %439 = vmatmul.bf16.gmra.mxu0 %v426
    %v440 = vpop.f32.mrf.mxu0
    %v441 = vadd.f32 0.0, %v440
    %v442 = vpop.f32.mrf.mxu0
    %443 = vdwg.mxu0
    %444 = vrot.lane.b32.xlu0 %v215, 120
    %v445 = vpop.permute.xlu0 %444
    %446 = vrot.lane.b32.xlu0 %v215, 88
    %v447 = vpop.permute.xlu0 %446
    %v449 = vsel %vm193, %v445, 0
    %v452 = vsel %vm193, %v447, 0
    %454 = vmatpush.bf16.xpose.msra.mxu0 0
    %455 = vmatpush.bf16.xpose.msra.mxu0 0
    %456 = vmatpush.bf16.xpose.msra.mxu0 0
    %457 = vmatpush.bf16.xpose.msra.mxu0 0
    %458 = vmatpush.bf16.xpose.msra.mxu0 0
    %459 = vmatpush.bf16.xpose.msra.mxu0 0
    %460 = vmatpush.bf16.xpose.msra.mxu0 0
    %461 = vmatpush.bf16.xpose.msra.mxu0 %v452
    %462 = vmatmul.bf16.gmra.mxu0 %v449
    %v463 = vpop.f32.mrf.mxu0
    %v464 = vadd.f32 0.0, %v463
    %v465 = vpop.f32.mrf.mxu0
    %466 = vdwg.mxu0
    %v467 = vsel %vm186, %v441, -1e+09
    %v468 = vsel %vm187, %v464, -1e+09
    %v469 = vsel %vm239, %v467, -inf
    %470 = vmax.xlane.f32.xlu0 %v469
    %v471 = vpop.xlane.xlu0 %470
    %v472 = vsel %vm239, %v468, -inf
    %473 = vmax.xlane.f32.xlu0 %v472
    %v474 = vpop.xlane.xlu0 %473
    %v475 = vsub.f32 %v467, %v471
    %v476 = vsub.f32 %v468, %v474
    %v477 = vmul.f32 %v475, 1.442695
    %v478 = vpow.pop %v477
    %v479 = vmul.f32 %v476, 1.442695
    %v480 = vpow.pop %v479
    %v481 = vsel %vm239, %v478, 0.0
    %482 = vadd.xlane.f32.xlu0 %v481
    %v483 = vpop.xlane.xlu0 %482
    %v484 = vsel %vm239, %v480, 0.0
    %485 = vadd.xlane.f32.xlu0 %v484
    %v486 = vpop.xlane.xlu0 %485
    %v487 = vrcp.pop %v483
    %v488 = vrcp.pop %v486
    %v489 = vmul.f32 %v478, %v487
    %v490 = vmul.f32 %v480, %v488
    %v491 = vpack.c.bf16 %v489, %v489
    %v492 = vpack.c.bf16 %v490, %v490
    %493 = vrot.lane.b32.xlu0 %v190, 56
    %v494 = vpop.permute.xlu0 %493
    %v496 = vsel %vm239, %v491, 0
    %v499 = vsel %vm269, %v494, 0
    %501 = vmatpush.bf16.msra.mxu0 0
    %502 = vmatpush.bf16.msra.mxu0 0
    %503 = vmatpush.bf16.msra.mxu0 0
    %504 = vmatpush.bf16.msra.mxu0 0
    %505 = vmatpush.bf16.msra.mxu0 0
    %506 = vmatpush.bf16.msra.mxu0 0
    %507 = vmatpush.bf16.msra.mxu0 0
    %508 = vmatpush.bf16.msra.mxu0 %v499
    %509 = vmatmul.bf16.gmra.mxu0 %v496
    %v510 = vpop.f32.mrf.mxu0
    %v511 = vadd.f32 0.0, %v510
    %v512 = vpop.f32.mrf.mxu0
    %513 = vdwg.mxu0
    %514 = vrot.lane.b32.xlu0 %v215, 56
    %v515 = vpop.permute.xlu0 %514
    %v517 = vsel %vm239, %v492, 0
    %v520 = vsel %vm269, %v515, 0
    %522 = vmatpush.bf16.msra.mxu0 0
    %523 = vmatpush.bf16.msra.mxu0 0
    %524 = vmatpush.bf16.msra.mxu0 0
    %525 = vmatpush.bf16.msra.mxu0 0
    %526 = vmatpush.bf16.msra.mxu0 0
    %527 = vmatpush.bf16.msra.mxu0 0
    %528 = vmatpush.bf16.msra.mxu0 0
    %529 = vmatpush.bf16.msra.mxu0 %v520
    %530 = vmatmul.bf16.gmra.mxu0 %v517
    %v531 = vpop.f32.mrf.mxu0
    %v532 = vadd.f32 0.0, %v531
    %v533 = vpop.f32.mrf.mxu0
    %534 = vdwg.mxu0
    %535 = vrot.lane.b32.xlu0 %v190, 116
    %v536 = vpop.permute.xlu0 %535
    %537 = vrot.lane.b32.xlu0 %v190, 84
    %v538 = vpop.permute.xlu0 %537
    %v540 = vsel %vm193, %v536, 0
    %v543 = vsel %vm193, %v538, 0
    %545 = vmatpush.bf16.xpose.msra.mxu0 0
    %546 = vmatpush.bf16.xpose.msra.mxu0 0
    %547 = vmatpush.bf16.xpose.msra.mxu0 0
    %548 = vmatpush.bf16.xpose.msra.mxu0 0
    %549 = vmatpush.bf16.xpose.msra.mxu0 0
    %550 = vmatpush.bf16.xpose.msra.mxu0 0
    %551 = vmatpush.bf16.xpose.msra.mxu0 0
    %552 = vmatpush.bf16.xpose.msra.mxu0 %v543
    %553 = vmatmul.bf16.gmra.mxu0 %v540
    %v554 = vpop.f32.mrf.mxu0
    %v555 = vadd.f32 0.0, %v554
    %v556 = vpop.f32.mrf.mxu0
    %557 = vdwg.mxu0
    %558 = vrot.lane.b32.xlu0 %v215, 116
    %v559 = vpop.permute.xlu0 %558
    %560 = vrot.lane.b32.xlu0 %v215, 84
    %v561 = vpop.permute.xlu0 %560
    %v563 = vsel %vm193, %v559, 0
    %v566 = vsel %vm193, %v561, 0
    %568 = vmatpush.bf16.xpose.msra.mxu0 0
    %569 = vmatpush.bf16.xpose.msra.mxu0 0
    %570 = vmatpush.bf16.xpose.msra.mxu0 0
    %571 = vmatpush.bf16.xpose.msra.mxu0 0
    %572 = vmatpush.bf16.xpose.msra.mxu0 0
    %573 = vmatpush.bf16.xpose.msra.mxu0 0
    %574 = vmatpush.bf16.xpose.msra.mxu0 0
    %575 = vmatpush.bf16.xpose.msra.mxu0 %v566
    %576 = vmatmul.bf16.gmra.mxu0 %v563
    %v577 = vpop.f32.mrf.mxu0
    %v578 = vadd.f32 0.0, %v577
    %v579 = vpop.f32.mrf.mxu0
    %580 = vdwg.mxu0
    %v581 = vsel %vm186, %v555, -1e+09
    %v582 = vsel %vm187, %v578, -1e+09
    %v583 = vsel %vm239, %v581, -inf
    %584 = vmax.xlane.f32.xlu0 %v583
    %v585 = vpop.xlane.xlu0 %584
    %v586 = vsel %vm239, %v582, -inf
    %587 = vmax.xlane.f32.xlu0 %v586
    %v588 = vpop.xlane.xlu0 %587
    %v589 = vsub.f32 %v581, %v585
    %v590 = vsub.f32 %v582, %v588
    %v591 = vmul.f32 %v589, 1.442695
    %v592 = vpow.pop %v591
    %v593 = vmul.f32 %v590, 1.442695
    %v594 = vpow.pop %v593
    %v595 = vsel %vm239, %v592, 0.0
    %596 = vadd.xlane.f32.xlu0 %v595
    %v597 = vpop.xlane.xlu0 %596
    %v598 = vsel %vm239, %v594, 0.0
    %599 = vadd.xlane.f32.xlu0 %v598
    %v600 = vpop.xlane.xlu0 %599
    %v601 = vrcp.pop %v597
    %v602 = vrcp.pop %v600
    %v603 = vmul.f32 %v592, %v601
    %v604 = vmul.f32 %v594, %v602
    %v605 = vpack.c.bf16 %v603, %v603
    %v606 = vpack.c.bf16 %v604, %v604
    %607 = vrot.lane.b32.xlu0 %v190, 52
    %v608 = vpop.permute.xlu0 %607
    %v610 = vsel %vm239, %v605, 0
    %v613 = vsel %vm269, %v608, 0
    %615 = vmatpush.bf16.msra.mxu0 0
    %616 = vmatpush.bf16.msra.mxu0 0
    %617 = vmatpush.bf16.msra.mxu0 0
    %618 = vmatpush.bf16.msra.mxu0 0
    %619 = vmatpush.bf16.msra.mxu0 0
    %620 = vmatpush.bf16.msra.mxu0 0
    %621 = vmatpush.bf16.msra.mxu0 0
    %622 = vmatpush.bf16.msra.mxu0 %v613
    %623 = vmatmul.bf16.gmra.mxu0 %v610
    %v624 = vpop.f32.mrf.mxu0
    %v625 = vadd.f32 0.0, %v624
    %v626 = vpop.f32.mrf.mxu0
    %627 = vdwg.mxu0
    %628 = vrot.lane.b32.xlu0 %v215, 52
    %v629 = vpop.permute.xlu0 %628
    %v631 = vsel %vm239, %v606, 0
    %v634 = vsel %vm269, %v629, 0
    %636 = vmatpush.bf16.msra.mxu0 0
    %637 = vmatpush.bf16.msra.mxu0 0
    %638 = vmatpush.bf16.msra.mxu0 0
    %639 = vmatpush.bf16.msra.mxu0 0
    %640 = vmatpush.bf16.msra.mxu0 0
    %641 = vmatpush.bf16.msra.mxu0 0
    %642 = vmatpush.bf16.msra.mxu0 0
    %643 = vmatpush.bf16.msra.mxu0 %v634
    %644 = vmatmul.bf16.gmra.mxu0 %v631
    %v645 = vpop.f32.mrf.mxu0
    %v646 = vadd.f32 0.0, %v645
    %v647 = vpop.f32.mrf.mxu0
    %648 = vdwg.mxu0
    %649 = vrot.lane.b32.xlu0 %v190, 112
    %v650 = vpop.permute.xlu0 %649
    %651 = vrot.lane.b32.xlu0 %v190, 80
    %v652 = vpop.permute.xlu0 %651
    %v654 = vsel %vm193, %v650, 0
    %v657 = vsel %vm193, %v652, 0
    %659 = vmatpush.bf16.xpose.msra.mxu0 0
    %660 = vmatpush.bf16.xpose.msra.mxu0 0
    %661 = vmatpush.bf16.xpose.msra.mxu0 0
    %662 = vmatpush.bf16.xpose.msra.mxu0 0
    %663 = vmatpush.bf16.xpose.msra.mxu0 0
    %664 = vmatpush.bf16.xpose.msra.mxu0 0
    %665 = vmatpush.bf16.xpose.msra.mxu0 0
    %666 = vmatpush.bf16.xpose.msra.mxu0 %v657
    %667 = vmatmul.bf16.gmra.mxu0 %v654
    %v668 = vpop.f32.mrf.mxu0
    %v669 = vadd.f32 0.0, %v668
    %v670 = vpop.f32.mrf.mxu0
    %671 = vdwg.mxu0
    %672 = vrot.lane.b32.xlu0 %v215, 112
    %v673 = vpop.permute.xlu0 %672
    %674 = vrot.lane.b32.xlu0 %v215, 80
    %v675 = vpop.permute.xlu0 %674
    %v677 = vsel %vm193, %v673, 0
    %v680 = vsel %vm193, %v675, 0
    %682 = vmatpush.bf16.xpose.msra.mxu0 0
    %683 = vmatpush.bf16.xpose.msra.mxu0 0
    %684 = vmatpush.bf16.xpose.msra.mxu0 0
    %685 = vmatpush.bf16.xpose.msra.mxu0 0
    %686 = vmatpush.bf16.xpose.msra.mxu0 0
    %687 = vmatpush.bf16.xpose.msra.mxu0 0
    %688 = vmatpush.bf16.xpose.msra.mxu0 0
    %689 = vmatpush.bf16.xpose.msra.mxu0 %v680
    %690 = vmatmul.bf16.gmra.mxu0 %v677
    %v691 = vpop.f32.mrf.mxu0
    %v692 = vadd.f32 0.0, %v691
    %v693 = vpop.f32.mrf.mxu0
    %694 = vdwg.mxu0
    %v695 = vsel %vm186, %v669, -1e+09
    %v696 = vsel %vm187, %v692, -1e+09
    %v697 = vsel %vm239, %v695, -inf
    %698 = vmax.xlane.f32.xlu0 %v697
    %v699 = vpop.xlane.xlu0 %698
    %v700 = vsel %vm239, %v696, -inf
    %701 = vmax.xlane.f32.xlu0 %v700
    %v702 = vpop.xlane.xlu0 %701
    %v703 = vsub.f32 %v695, %v699
    %v704 = vsub.f32 %v696, %v702
    %v705 = vmul.f32 %v703, 1.442695
    %v706 = vpow.pop %v705
    %v707 = vmul.f32 %v704, 1.442695
    %v708 = vpow.pop %v707
    %v709 = vsel %vm239, %v706, 0.0
    %710 = vadd.xlane.f32.xlu0 %v709
    %v711 = vpop.xlane.xlu0 %710
    %v712 = vsel %vm239, %v708, 0.0
    %713 = vadd.xlane.f32.xlu0 %v712
    %v714 = vpop.xlane.xlu0 %713
    %v715 = vrcp.pop %v711
    %v716 = vrcp.pop %v714
    %v717 = vmul.f32 %v706, %v715
    %v718 = vmul.f32 %v708, %v716
    %v719 = vpack.c.bf16 %v717, %v717
    %v720 = vpack.c.bf16 %v718, %v718
    %721 = vrot.lane.b32.xlu0 %v190, 48
    %v722 = vpop.permute.xlu0 %721
    %v724 = vsel %vm239, %v719, 0
    %v727 = vsel %vm269, %v722, 0
    %729 = vmatpush.bf16.msra.mxu0 0
    %730 = vmatpush.bf16.msra.mxu0 0
    %731 = vmatpush.bf16.msra.mxu0 0
    %732 = vmatpush.bf16.msra.mxu0 0
    %733 = vmatpush.bf16.msra.mxu0 0
    %734 = vmatpush.bf16.msra.mxu0 0
    %735 = vmatpush.bf16.msra.mxu0 0
    %736 = vmatpush.bf16.msra.mxu0 %v727
    %737 = vmatmul.bf16.gmra.mxu0 %v724
    %v738 = vpop.f32.mrf.mxu0
    %v739 = vadd.f32 0.0, %v738
    %v740 = vpop.f32.mrf.mxu0
    %741 = vdwg.mxu0
    %742 = vrot.lane.b32.xlu0 %v215, 48
    %v743 = vpop.permute.xlu0 %742
    %v745 = vsel %vm239, %v720, 0
    %v748 = vsel %vm269, %v743, 0
    %750 = vmatpush.bf16.msra.mxu0 0
    %751 = vmatpush.bf16.msra.mxu0 0
    %752 = vmatpush.bf16.msra.mxu0 0
    %753 = vmatpush.bf16.msra.mxu0 0
    %754 = vmatpush.bf16.msra.mxu0 0
    %755 = vmatpush.bf16.msra.mxu0 0
    %756 = vmatpush.bf16.msra.mxu0 0
    %757 = vmatpush.bf16.msra.mxu0 %v748
    %758 = vmatmul.bf16.gmra.mxu0 %v745
    %v759 = vpop.f32.mrf.mxu0
    %v760 = vadd.f32 0.0, %v759
    %v761 = vpop.f32.mrf.mxu0
    %762 = vdwg.mxu0
    %763 = vrot.lane.b32.xlu0 %v190, 108
    %v764 = vpop.permute.xlu0 %763
    %765 = vrot.lane.b32.xlu0 %v190, 76
    %v766 = vpop.permute.xlu0 %765
    %v768 = vsel %vm193, %v764, 0
    %v771 = vsel %vm193, %v766, 0
    %773 = vmatpush.bf16.xpose.msra.mxu0 0
    %774 = vmatpush.bf16.xpose.msra.mxu0 0
    %775 = vmatpush.bf16.xpose.msra.mxu0 0
    %776 = vmatpush.bf16.xpose.msra.mxu0 0
    %777 = vmatpush.bf16.xpose.msra.mxu0 0
    %778 = vmatpush.bf16.xpose.msra.mxu0 0
    %779 = vmatpush.bf16.xpose.msra.mxu0 0
    %780 = vmatpush.bf16.xpose.msra.mxu0 %v771
    %781 = vmatmul.bf16.gmra.mxu0 %v768
    %v782 = vpop.f32.mrf.mxu0
    %v783 = vadd.f32 0.0, %v782
    %v784 = vpop.f32.mrf.mxu0
    %785 = vdwg.mxu0
    %786 = vrot.lane.b32.xlu0 %v215, 108
    %v787 = vpop.permute.xlu0 %786
    %788 = vrot.lane.b32.xlu0 %v215, 76
    %v789 = vpop.permute.xlu0 %788
    %v791 = vsel %vm193, %v787, 0
    %v794 = vsel %vm193, %v789, 0
    %796 = vmatpush.bf16.xpose.msra.mxu0 0
    %797 = vmatpush.bf16.xpose.msra.mxu0 0
    %798 = vmatpush.bf16.xpose.msra.mxu0 0
    %799 = vmatpush.bf16.xpose.msra.mxu0 0
    %800 = vmatpush.bf16.xpose.msra.mxu0 0
    %801 = vmatpush.bf16.xpose.msra.mxu0 0
    %802 = vmatpush.bf16.xpose.msra.mxu0 0
    %803 = vmatpush.bf16.xpose.msra.mxu0 %v794
    %804 = vmatmul.bf16.gmra.mxu0 %v791
    %v805 = vpop.f32.mrf.mxu0
    %v806 = vadd.f32 0.0, %v805
    %v807 = vpop.f32.mrf.mxu0
    %808 = vdwg.mxu0
    %v809 = vsel %vm186, %v783, -1e+09
    %v810 = vsel %vm187, %v806, -1e+09
    %v811 = vsel %vm239, %v809, -inf
    %812 = vmax.xlane.f32.xlu0 %v811
    %v813 = vpop.xlane.xlu0 %812
    %v814 = vsel %vm239, %v810, -inf
    %815 = vmax.xlane.f32.xlu0 %v814
    %v816 = vpop.xlane.xlu0 %815
    %v817 = vsub.f32 %v809, %v813
    %v818 = vsub.f32 %v810, %v816
    %v819 = vmul.f32 %v817, 1.442695
    %v820 = vpow.pop %v819
    %v821 = vmul.f32 %v818, 1.442695
    %v822 = vpow.pop %v821
    %v823 = vsel %vm239, %v820, 0.0
    %824 = vadd.xlane.f32.xlu0 %v823
    %v825 = vpop.xlane.xlu0 %824
    %v826 = vsel %vm239, %v822, 0.0
    %827 = vadd.xlane.f32.xlu0 %v826
    %v828 = vpop.xlane.xlu0 %827
    %v829 = vrcp.pop %v825
    %v830 = vrcp.pop %v828
    %v831 = vmul.f32 %v820, %v829
    %v832 = vmul.f32 %v822, %v830
    %v833 = vpack.c.bf16 %v831, %v831
    %v834 = vpack.c.bf16 %v832, %v832
    %835 = vrot.lane.b32.xlu0 %v190, 44
    %v836 = vpop.permute.xlu0 %835
    %v838 = vsel %vm239, %v833, 0
    %v841 = vsel %vm269, %v836, 0
    %843 = vmatpush.bf16.msra.mxu0 0
    %844 = vmatpush.bf16.msra.mxu0 0
    %845 = vmatpush.bf16.msra.mxu0 0
    %846 = vmatpush.bf16.msra.mxu0 0
    %847 = vmatpush.bf16.msra.mxu0 0
    %848 = vmatpush.bf16.msra.mxu0 0
    %849 = vmatpush.bf16.msra.mxu0 0
    %850 = vmatpush.bf16.msra.mxu0 %v841
    %851 = vmatmul.bf16.gmra.mxu0 %v838
    %v852 = vpop.f32.mrf.mxu0
    %v853 = vadd.f32 0.0, %v852
    %v854 = vpop.f32.mrf.mxu0
    %855 = vdwg.mxu0
    %856 = vrot.lane.b32.xlu0 %v215, 44
    %v857 = vpop.permute.xlu0 %856
    %v859 = vsel %vm239, %v834, 0
    %v862 = vsel %vm269, %v857, 0
    %864 = vmatpush.bf16.msra.mxu0 0
    %865 = vmatpush.bf16.msra.mxu0 0
    %866 = vmatpush.bf16.msra.mxu0 0
    %867 = vmatpush.bf16.msra.mxu0 0
    %868 = vmatpush.bf16.msra.mxu0 0
    %869 = vmatpush.bf16.msra.mxu0 0
    %870 = vmatpush.bf16.msra.mxu0 0
    %871 = vmatpush.bf16.msra.mxu0 %v862
    %872 = vmatmul.bf16.gmra.mxu0 %v859
    %v873 = vpop.f32.mrf.mxu0
    %v874 = vadd.f32 0.0, %v873
    %v875 = vpop.f32.mrf.mxu0
    %876 = vdwg.mxu0
    %877 = vrot.lane.b32.xlu0 %v190, 104
    %v878 = vpop.permute.xlu0 %877
    %879 = vrot.lane.b32.xlu0 %v190, 72
    %v880 = vpop.permute.xlu0 %879
    %v882 = vsel %vm193, %v878, 0
    %v885 = vsel %vm193, %v880, 0
    %887 = vmatpush.bf16.xpose.msra.mxu0 0
    %888 = vmatpush.bf16.xpose.msra.mxu0 0
    %889 = vmatpush.bf16.xpose.msra.mxu0 0
    %890 = vmatpush.bf16.xpose.msra.mxu0 0
    %891 = vmatpush.bf16.xpose.msra.mxu0 0
    %892 = vmatpush.bf16.xpose.msra.mxu0 0
    %893 = vmatpush.bf16.xpose.msra.mxu0 0
    %894 = vmatpush.bf16.xpose.msra.mxu0 %v885
    %895 = vmatmul.bf16.gmra.mxu0 %v882
    %v896 = vpop.f32.mrf.mxu0
    %v897 = vadd.f32 0.0, %v896
    %v898 = vpop.f32.mrf.mxu0
    %899 = vdwg.mxu0
    %900 = vrot.lane.b32.xlu0 %v215, 104
    %v901 = vpop.permute.xlu0 %900
    %902 = vrot.lane.b32.xlu0 %v215, 72
    %v903 = vpop.permute.xlu0 %902
    %v905 = vsel %vm193, %v901, 0
    %v908 = vsel %vm193, %v903, 0
    %910 = vmatpush.bf16.xpose.msra.mxu0 0
    %911 = vmatpush.bf16.xpose.msra.mxu0 0
    %912 = vmatpush.bf16.xpose.msra.mxu0 0
    %913 = vmatpush.bf16.xpose.msra.mxu0 0
    %914 = vmatpush.bf16.xpose.msra.mxu0 0
    %915 = vmatpush.bf16.xpose.msra.mxu0 0
    %916 = vmatpush.bf16.xpose.msra.mxu0 0
    %917 = vmatpush.bf16.xpose.msra.mxu0 %v908
    %918 = vmatmul.bf16.gmra.mxu0 %v905
    %v919 = vpop.f32.mrf.mxu0
    %v920 = vadd.f32 0.0, %v919
    %v921 = vpop.f32.mrf.mxu0
    %922 = vdwg.mxu0
    %v923 = vsel %vm186, %v897, -1e+09
    %v924 = vsel %vm187, %v920, -1e+09
    %v925 = vsel %vm239, %v923, -inf
    %926 = vmax.xlane.f32.xlu0 %v925
    %v927 = vpop.xlane.xlu0 %926
    %v928 = vsel %vm239, %v924, -inf
    %929 = vmax.xlane.f32.xlu0 %v928
    %v930 = vpop.xlane.xlu0 %929
    %v931 = vsub.f32 %v923, %v927
    %v932 = vsub.f32 %v924, %v930
    %v933 = vmul.f32 %v931, 1.442695
    %v934 = vpow.pop %v933
    %v935 = vmul.f32 %v932, 1.442695
    %v936 = vpow.pop %v935
    %v937 = vsel %vm239, %v934, 0.0
    %938 = vadd.xlane.f32.xlu0 %v937
    %v939 = vpop.xlane.xlu0 %938
    %v940 = vsel %vm239, %v936, 0.0
    %941 = vadd.xlane.f32.xlu0 %v940
    %v942 = vpop.xlane.xlu0 %941
    %v943 = vrcp.pop %v939
    %v944 = vrcp.pop %v942
    %v945 = vmul.f32 %v934, %v943
    %v946 = vmul.f32 %v936, %v944
    %v947 = vpack.c.bf16 %v945, %v945
    %v948 = vpack.c.bf16 %v946, %v946
    %949 = vrot.lane.b32.xlu0 %v190, 40
    %v950 = vpop.permute.xlu0 %949
    %v952 = vsel %vm239, %v947, 0
    %v955 = vsel %vm269, %v950, 0
    %957 = vmatpush.bf16.msra.mxu0 0
    %958 = vmatpush.bf16.msra.mxu0 0
    %959 = vmatpush.bf16.msra.mxu0 0
    %960 = vmatpush.bf16.msra.mxu0 0
    %961 = vmatpush.bf16.msra.mxu0 0
    %962 = vmatpush.bf16.msra.mxu0 0
    %963 = vmatpush.bf16.msra.mxu0 0
    %964 = vmatpush.bf16.msra.mxu0 %v955
    %965 = vmatmul.bf16.gmra.mxu0 %v952
    %v966 = vpop.f32.mrf.mxu0
    %v967 = vadd.f32 0.0, %v966
    %v968 = vpop.f32.mrf.mxu0
    %969 = vdwg.mxu0
    %970 = vrot.lane.b32.xlu0 %v215, 40
    %v971 = vpop.permute.xlu0 %970
    %v973 = vsel %vm239, %v948, 0
    %v976 = vsel %vm269, %v971, 0
    %978 = vmatpush.bf16.msra.mxu0 0
    %979 = vmatpush.bf16.msra.mxu0 0
    %980 = vmatpush.bf16.msra.mxu0 0
    %981 = vmatpush.bf16.msra.mxu0 0
    %982 = vmatpush.bf16.msra.mxu0 0
    %983 = vmatpush.bf16.msra.mxu0 0
    %984 = vmatpush.bf16.msra.mxu0 0
    %985 = vmatpush.bf16.msra.mxu0 %v976
    %986 = vmatmul.bf16.gmra.mxu0 %v973
    %v987 = vpop.f32.mrf.mxu0
    %v988 = vadd.f32 0.0, %v987
    %v989 = vpop.f32.mrf.mxu0
    %990 = vdwg.mxu0
    %991 = vrot.lane.b32.xlu0 %v190, 100
    %v992 = vpop.permute.xlu0 %991
    %993 = vrot.lane.b32.xlu0 %v190, 68
    %v994 = vpop.permute.xlu0 %993
    %v996 = vsel %vm193, %v992, 0
    %v999 = vsel %vm193, %v994, 0
    %1001 = vmatpush.bf16.xpose.msra.mxu0 0
    %1002 = vmatpush.bf16.xpose.msra.mxu0 0
    %1003 = vmatpush.bf16.xpose.msra.mxu0 0
    %1004 = vmatpush.bf16.xpose.msra.mxu0 0
    %1005 = vmatpush.bf16.xpose.msra.mxu0 0
    %1006 = vmatpush.bf16.xpose.msra.mxu0 0
    %1007 = vmatpush.bf16.xpose.msra.mxu0 0
    %1008 = vmatpush.bf16.xpose.msra.mxu0 %v999
    %1009 = vmatmul.bf16.gmra.mxu0 %v996
    %v1010 = vpop.f32.mrf.mxu0
    %v1011 = vadd.f32 0.0, %v1010
    %v1012 = vpop.f32.mrf.mxu0
    %1013 = vdwg.mxu0
    %1014 = vrot.lane.b32.xlu0 %v215, 100
    %v1015 = vpop.permute.xlu0 %1014
    %1016 = vrot.lane.b32.xlu0 %v215, 68
    %v1017 = vpop.permute.xlu0 %1016
    %v1019 = vsel %vm193, %v1015, 0
    %v1022 = vsel %vm193, %v1017, 0
    %1024 = vmatpush.bf16.xpose.msra.mxu0 0
    %1025 = vmatpush.bf16.xpose.msra.mxu0 0
    %1026 = vmatpush.bf16.xpose.msra.mxu0 0
    %1027 = vmatpush.bf16.xpose.msra.mxu0 0
    %1028 = vmatpush.bf16.xpose.msra.mxu0 0
    %1029 = vmatpush.bf16.xpose.msra.mxu0 0
    %1030 = vmatpush.bf16.xpose.msra.mxu0 0
    %1031 = vmatpush.bf16.xpose.msra.mxu0 %v1022
    %1032 = vmatmul.bf16.gmra.mxu0 %v1019
    %v1033 = vpop.f32.mrf.mxu0
    %v1034 = vadd.f32 0.0, %v1033
    %v1035 = vpop.f32.mrf.mxu0
    %1036 = vdwg.mxu0
    %v1037 = vsel %vm186, %v1011, -1e+09
    %v1038 = vsel %vm187, %v1034, -1e+09
    %v1039 = vsel %vm239, %v1037, -inf
    %1040 = vmax.xlane.f32.xlu0 %v1039
    %v1041 = vpop.xlane.xlu0 %1040
    %v1042 = vsel %vm239, %v1038, -inf
    %1043 = vmax.xlane.f32.xlu0 %v1042
    %v1044 = vpop.xlane.xlu0 %1043
    %v1045 = vsub.f32 %v1037, %v1041
    %v1046 = vsub.f32 %v1038, %v1044
    %v1047 = vmul.f32 %v1045, 1.442695
    %v1048 = vpow.pop %v1047
    %v1049 = vmul.f32 %v1046, 1.442695
    %v1050 = vpow.pop %v1049
    %v1051 = vsel %vm239, %v1048, 0.0
    %1052 = vadd.xlane.f32.xlu0 %v1051
    %v1053 = vpop.xlane.xlu0 %1052
    %v1054 = vsel %vm239, %v1050, 0.0
    %1055 = vadd.xlane.f32.xlu0 %v1054
    %v1056 = vpop.xlane.xlu0 %1055
    %v1057 = vrcp.pop %v1053
    %v1058 = vrcp.pop %v1056
    %v1059 = vmul.f32 %v1048, %v1057
    %v1060 = vmul.f32 %v1050, %v1058
    %v1061 = vpack.c.bf16 %v1059, %v1059
    %v1062 = vpack.c.bf16 %v1060, %v1060
    %1063 = vrot.lane.b32.xlu0 %v190, 36
    %v1064 = vpop.permute.xlu0 %1063
    %v1066 = vsel %vm239, %v1061, 0
    %v1069 = vsel %vm269, %v1064, 0
    %1071 = vmatpush.bf16.msra.mxu0 0
    %1072 = vmatpush.bf16.msra.mxu0 0
    %1073 = vmatpush.bf16.msra.mxu0 0
    %1074 = vmatpush.bf16.msra.mxu0 0
    %1075 = vmatpush.bf16.msra.mxu0 0
    %1076 = vmatpush.bf16.msra.mxu0 0
    %1077 = vmatpush.bf16.msra.mxu0 0
    %1078 = vmatpush.bf16.msra.mxu0 %v1069
    %1079 = vmatmul.bf16.gmra.mxu0 %v1066
    %v1080 = vpop.f32.mrf.mxu0
    %v1081 = vadd.f32 0.0, %v1080
    %v1082 = vpop.f32.mrf.mxu0
    %1083 = vdwg.mxu0
    %1084 = vrot.lane.b32.xlu0 %v215, 36
    %v1085 = vpop.permute.xlu0 %1084
    %v1087 = vsel %vm239, %v1062, 0
    %v1090 = vsel %vm269, %v1085, 0
    %1092 = vmatpush.bf16.msra.mxu0 0
    %1093 = vmatpush.bf16.msra.mxu0 0
    %1094 = vmatpush.bf16.msra.mxu0 0
    %1095 = vmatpush.bf16.msra.mxu0 0
    %1096 = vmatpush.bf16.msra.mxu0 0
    %1097 = vmatpush.bf16.msra.mxu0 0
    %1098 = vmatpush.bf16.msra.mxu0 0
    %1099 = vmatpush.bf16.msra.mxu0 %v1090
    %1100 = vmatmul.bf16.gmra.mxu0 %v1087
    %v1101 = vpop.f32.mrf.mxu0
    %v1102 = vadd.f32 0.0, %v1101
    %v1103 = vpop.f32.mrf.mxu0
    %1104 = vdwg.mxu0
    %1107 = vrot.lane.b32.xlu0 %v397, 4
    %v1108 = vpop.permute.xlu0 %1107
    %1109 = vrot.lane.b32.xlu0 %v418, 4
    %v1110 = vpop.permute.xlu0 %1109
    %1115 = vrot.lane.b32.xlu0 %v511, 8
    %v1116 = vpop.permute.xlu0 %1115
    %1117 = vrot.lane.b32.xlu0 %v532, 8
    %v1118 = vpop.permute.xlu0 %1117
    %1123 = vrot.lane.b32.xlu0 %v625, 12
    %v1124 = vpop.permute.xlu0 %1123
    %1125 = vrot.lane.b32.xlu0 %v646, 12
    %v1126 = vpop.permute.xlu0 %1125
    %1131 = vrot.lane.b32.xlu0 %v739, 16
    %v1132 = vpop.permute.xlu0 %1131
    %1133 = vrot.lane.b32.xlu0 %v760, 16
    %v1134 = vpop.permute.xlu0 %1133
    %1139 = vrot.lane.b32.xlu0 %v853, 20
    %v1140 = vpop.permute.xlu0 %1139
    %1141 = vrot.lane.b32.xlu0 %v874, 20
    %v1142 = vpop.permute.xlu0 %1141
    %1147 = vrot.lane.b32.xlu0 %v967, 24
    %v1148 = vpop.permute.xlu0 %1147
    %1149 = vrot.lane.b32.xlu0 %v988, 24
    %v1150 = vpop.permute.xlu0 %1149
    %1155 = vrot.lane.b32.xlu0 %v1081, 28
    %v1156 = vpop.permute.xlu0 %1155
    %1157 = vrot.lane.b32.xlu0 %v1102, 28
    %v1158 = vpop.permute.xlu0 %1157
    %v1161 = vsel %vm193, %v283, %v1108
    %v1162 = vsel %vm193, %v304, %v1110
    %v1163 = vsel %vm239, %v1161, %v1116
    %v1164 = vsel %vm239, %v1162, %v1118
    %vm1165 = vcmask 97280
    %v1166 = vsel %vm1165, %v1163, %v1124
    %v1167 = vsel %vm1165, %v1164, %v1126
    %vm1168 = vcmask 130048
    %v1169 = vsel %vm1168, %v1166, %v1132
    %v1170 = vsel %vm1168, %v1167, %v1134
    %vm1171 = vcmask 162816
    %v1172 = vsel %vm1171, %v1169, %v1140
    %v1173 = vsel %vm1171, %v1170, %v1142
    %vm1174 = vcmask 195584
    %v1175 = vsel %vm1174, %v1172, %v1148
    %v1176 = vsel %vm1174, %v1173, %v1150
    %vm1177 = vcmask 228352
    %v1178 = vsel %vm1177, %v1175, %v1156
    %v1179 = vsel %vm1177, %v1176, %v1158
    %v1180 = vld [vmem:[%s10] sm:$0x1]
    %v1181 = vld [vmem:[%s11] sm:$0x1]
    %v1182 = vpack.c.bf16 %v1179, %v1178
    %v1183 = vld [vmem:[#allocation8] sm:$0xf]
    %v1184 = vld [vmem:[#allocation8 + $0x4] sm:$0xf]
    %v1185 = vld [vmem:[#allocation8 + $0x8] sm:$0xf]
    %v1186 = vld [vmem:[#allocation8 + $0xc] sm:$0xf]
    %v1187 = vld [vmem:[%s5] sm:$0x1]
    %v1189 = vperm.slane %v1187, 0
    %v1195 = vunpack.c.l.b16 %v1183
    %v1196 = vunpack.c.l.b16 %v1184
    %v1197 = vunpack.c.l.b16 %v1185
    %v1198 = vunpack.c.l.b16 %v1186
    %v1199 = vpack.c.b16 %v1196, %v1195
    %v1200 = vpack.c.b16 %v1198, %v1197
    %v1204 = vsel %vm160, %v1182, 0
    %1206 = vmatpush.bf16.msra.mxu0 0
    %1207 = vmatpush.bf16.msra.mxu0 0
    %1208 = vmatpush.bf16.msra.mxu0 0
    %1209 = vmatpush.bf16.msra.mxu0 0
    %1210 = vmatpush.bf16.msra.mxu0 0
    %1211 = vmatpush.bf16.msra.mxu0 0
    %1212 = vmatpush.bf16.msra.mxu0 %v1200
    %1213 = vmatpush.bf16.msra.mxu0 %v1199
    %1214 = vmatmul.bf16.gmra.mxu0 %v1204
    %v1215 = vpop.f32.mrf.mxu0
    %v1216 = vadd.f32 %v1189, %v1215
    %v1217 = vpop.f32.mrf.mxu0
    %v1218 = vadd.f32 %v1189, %v1217
    %1219 = vdwg.mxu0
    %v1220 = vadd.f32 %v1216, %v137
    %v1221 = vadd.f32 %v1218, %v138
    %v1222 = vsel %vm160, %v1220, 0.0
    %1223 = vadd.xlane.f32.xlu0 %v1222
    %v1224 = vpop.xlane.xlu0 %1223
    %v1225 = vsel %vm160, %v1221, 0.0
    %1226 = vadd.xlane.f32.xlu0 %v1225
    %v1227 = vpop.xlane.xlu0 %1226
    %v1228 = vrcp.pop 32.0
    %v1229 = vmul.f32 32.0, %v1228
    %v1230 = vsub.f32 1.0, %v1229
    %v1231 = vmul.f32 %v1228, %v1230
    %v1232 = vadd.f32 %v1228, %v1231
    %vm1233 = vweird.f32 %v1228
    %v1234 = vsel %vm1233, %v1228, %v1232
    %v1235 = vmul.f32 %v1224, %v1234
    %v1236 = vmul.f32 %v1227, %v1234
    %v1237 = vmul.f32 %v1220, %v1220
    %v1238 = vmul.f32 %v1221, %v1221
    %v1239 = vsel %vm160, %v1237, 0.0
    %1240 = vadd.xlane.f32.xlu0 %v1239
    %v1241 = vpop.xlane.xlu0 %1240
    %v1242 = vsel %vm160, %v1238, 0.0
    %1243 = vadd.xlane.f32.xlu0 %v1242
    %v1244 = vpop.xlane.xlu0 %1243
    %v1245 = vmul.f32 %v1241, %v1234
    %v1246 = vmul.f32 %v1244, %v1234
    %v1247 = vmul.f32 %v1235, %v1235
    %v1248 = vmul.f32 %v1236, %v1236
    %v1249 = vsub.f32 %v1245, %v1247
    %v1250 = vsub.f32 %v1246, %v1248
    %v1251 = vsub.f32 %v1220, %v1235
    %v1252 = vsub.f32 %v1221, %v1236
    %v1253 = vadd.f32 %v1249, 1e-05
    %v1254 = vadd.f32 %v1250, 1e-05
    %v1255 = vrsqrt.pop %v1253
    %v1256 = vmul.f32 %v1255, %v1253
    %v1257 = vmul.f32 %v1256, %v1255
    %v1258 = vmul.f32 0.5, %v1257
    %v1259 = vsub.f32 1.5, %v1258
    %v1260 = vmul.f32 %v1255, %v1259
    %vm1261 = vweird.f32 %v1253
    %vm1262 = vweird.f32 %v1255
    %vm1263 = vmor %vm1261, %vm1262
    %v1264 = vsel %vm1263, %v1255, %v1260
    %v1265 = vrsqrt.pop %v1254
    %v1266 = vmul.f32 %v1265, %v1254
    %v1267 = vmul.f32 %v1266, %v1265
    %v1268 = vmul.f32 0.5, %v1267
    %v1269 = vsub.f32 1.5, %v1268
    %v1270 = vmul.f32 %v1265, %v1269
    %vm1271 = vweird.f32 %v1254
    %vm1272 = vweird.f32 %v1265
    %vm1273 = vmor %vm1271, %vm1272
    %v1274 = vsel %vm1273, %v1265, %v1270
    %v1275 = vmul.f32 %v1251, %v1264
    %v1276 = vmul.f32 %v1252, %v1274
    %v1278 = vperm.slane %v1180, 0
    %v1280 = vmul.f32 %v1275, %v1278
    %v1281 = vmul.f32 %v1276, %v1278
    %v1283 = vperm.slane %v1181, 0
    %v1285 = vadd.f32 %v1280, %v1283
    %v1286 = vadd.f32 %v1281, %v1283
    %v1287 = vpack.c.bf16 %v1286, %v1285
    %v1288 = vld [vmem:[#allocation10] sm:$0xf]
    %v1289 = vld [vmem:[#allocation10 + $0x4] sm:$0xf]
    %v1290 = vld [vmem:[#allocation10 + $0x8] sm:$0xf]
    %v1291 = vld [vmem:[#allocation10 + $0xc] sm:$0xf]
    %v1292 = vld [vmem:[%s7] sm:$0x1]
    %v1294 = vperm.slane %v1292, 0
    %v1300 = vunpack.c.l.b16 %v1288
    %v1301 = vunpack.c.l.b16 %v1289
    %v1302 = vunpack.c.l.b16 %v1290
    %v1303 = vunpack.c.l.b16 %v1291
    %v1304 = vpack.c.b16 %v1301, %v1300
    %v1305 = vpack.c.b16 %v1303, %v1302
    %v1309 = vsel %vm160, %v1287, 0
    %1311 = vmatpush.bf16.msra.mxu0 0
    %1312 = vmatpush.bf16.msra.mxu0 0
    %1313 = vmatpush.bf16.msra.mxu0 0
    %1314 = vmatpush.bf16.msra.mxu0 0
    %1315 = vmatpush.bf16.msra.mxu0 0
    %1316 = vmatpush.bf16.msra.mxu0 0
    %1317 = vmatpush.bf16.msra.mxu0 %v1305
    %1318 = vmatpush.bf16.msra.mxu0 %v1304
    %1319 = vmatmul.bf16.gmra.mxu0 %v1309
    %v1320 = vpop.f32.mrf.mxu0
    %v1321 = vadd.f32 %v1294, %v1320
    %v1322 = vpop.f32.mrf.mxu0
    %v1323 = vadd.f32 %v1294, %v1322
    %1324 = vdwg.mxu0
    %vm1325 = vcmp.ge.f32.partialorder %v1321, 0.0
    %vm1326 = vcmp.ge.f32.partialorder %v1323, 0.0
    %v1327 = vmul.f32 %v1321, 0.01
    %v1328 = vmul.f32 %v1323, 0.01
    %v1329 = vsel %vm1325, %v1321, %v1327
    %v1330 = vsel %vm1326, %v1323, %v1328
    %v1331 = vpack.c.bf16 %v1330, %v1329
    %v1332 = vld [vmem:[#allocation11] sm:$0xf]
    %v1333 = vld [vmem:[#allocation11 + $0x4] sm:$0xf]
    %v1334 = vld [vmem:[#allocation11 + $0x8] sm:$0xf]
    %v1335 = vld [vmem:[#allocation11 + $0xc] sm:$0xf]
    %v1336 = vld [vmem:[%s9] sm:$0x1]
    %v1338 = vperm.slane %v1336, 0
    %v1344 = vunpack.c.l.b16 %v1332
    %v1345 = vunpack.c.l.b16 %v1333
    %v1346 = vunpack.c.l.b16 %v1334
    %v1347 = vunpack.c.l.b16 %v1335
    %v1348 = vpack.c.b16 %v1345, %v1344
    %v1349 = vpack.c.b16 %v1347, %v1346
    %v1353 = vsel %vm160, %v1331, 0
    %1355 = vmatpush.bf16.msra.mxu0 0
    %1356 = vmatpush.bf16.msra.mxu0 0
    %1357 = vmatpush.bf16.msra.mxu0 0
    %1358 = vmatpush.bf16.msra.mxu0 0
    %1359 = vmatpush.bf16.msra.mxu0 0
    %1360 = vmatpush.bf16.msra.mxu0 0
    %1361 = vmatpush.bf16.msra.mxu0 %v1349
    %1362 = vmatpush.bf16.msra.mxu0 %v1348
    %1363 = vmatmul.bf16.gmra.mxu0 %v1353
    %v1364 = vpop.f32.mrf.mxu0
    %v1365 = vadd.f32 %v1338, %v1364
    %v1366 = vpop.f32.mrf.mxu0
    %v1367 = vadd.f32 %v1338, %v1366
    %1368 = vdwg.mxu0
    %v1369 = vadd.f32 %v1365, %v1285
    %v1370 = vadd.f32 %v1367, %v1286
    %v1371 = vsel %vm160, %v1369, 0.0
    %1372 = vadd.xlane.f32.xlu0 %v1371
    %v1373 = vpop.xlane.xlu0 %1372
    %v1374 = vsel %vm160, %v1370, 0.0
    %1375 = vadd.xlane.f32.xlu0 %v1374
    %v1376 = vpop.xlane.xlu0 %1375
    %v1377 = vmul.f32 %v1373, %v1234
    %v1378 = vmul.f32 %v1376, %v1234
    %v1379 = vmul.f32 %v1369, %v1369
    %v1380 = vmul.f32 %v1370, %v1370
    %v1381 = vsel %vm160, %v1379, 0.0
    %1382 = vadd.xlane.f32.xlu0 %v1381
    %v1383 = vpop.xlane.xlu0 %1382
    %v1384 = vsel %vm160, %v1380, 0.0
    %1385 = vadd.xlane.f32.xlu0 %v1384
    %v1386 = vpop.xlane.xlu0 %1385
    %v1387 = vmul.f32 %v1383, %v1234
    %v1388 = vmul.f32 %v1386, %v1234
    %v1389 = vmul.f32 %v1377, %v1377
    %v1390 = vmul.f32 %v1378, %v1378
    %v1391 = vsub.f32 %v1387, %v1389
    %v1392 = vsub.f32 %v1388, %v1390
    %v1393 = vsub.f32 %v1369, %v1377
    %v1394 = vsub.f32 %v1370, %v1378
    %v1395 = vadd.f32 %v1391, 1e-05
    %v1396 = vadd.f32 %v1392, 1e-05
    %v1397 = vrsqrt.pop %v1395
    %v1398 = vmul.f32 %v1397, %v1395
    %v1399 = vmul.f32 %v1398, %v1397
    %v1400 = vmul.f32 0.5, %v1399
    %v1401 = vsub.f32 1.5, %v1400
    %v1402 = vmul.f32 %v1397, %v1401
    %vm1403 = vweird.f32 %v1395
    %vm1404 = vweird.f32 %v1397
    %vm1405 = vmor %vm1403, %vm1404
    %v1406 = vsel %vm1405, %v1397, %v1402
    %v1407 = vrsqrt.pop %v1396
    %v1408 = vmul.f32 %v1407, %v1396
    %v1409 = vmul.f32 %v1408, %v1407
    %v1410 = vmul.f32 0.5, %v1409
    %v1411 = vsub.f32 1.5, %v1410
    %v1412 = vmul.f32 %v1407, %v1411
    %vm1413 = vweird.f32 %v1396
    %vm1414 = vweird.f32 %v1407
    %vm1415 = vmor %vm1413, %vm1414
    %v1416 = vsel %vm1415, %v1407, %v1412
    %v1417 = vmul.f32 %v1393, %v1406
    %v1418 = vmul.f32 %v1394, %v1416
    %v1419 = vmul.f32 %v1417, %v1278
    %v1420 = vmul.f32 %v1418, %v1278
    %v1421 = vadd.f32 %v1419, %v1283
    %v1422 = vadd.f32 %v1420, %v1283
    %vm1423 = vcmp.ge.f32.partialorder %v1421, 0.0
    %vm1424 = vcmp.ge.f32.partialorder %v1422, 0.0
    %v1425 = vmul.f32 %v1421, 0.01
    %v1426 = vmul.f32 %v1422, 0.01
    %v1427 = vsel %vm1423, %v1421, %v1425
    %v1428 = vsel %vm1424, %v1422, %v1426
    %1429 = vst.msk [vmem:[#allocation13] sm:$0xff] %vm160, %v1427
    %1430 = vst.msk [vmem:[#allocation13 + $0x8] sm:$0xff] %vm160, %v1428
    // Predicated region
    $region74: #{tpu_custom_call.1} parent=1 // pred_check
      _
    $region75: #{tpu_custom_call.1} parent=1 // pred_check_branch
      %1432 = sbr.rel (0) target = $region77
    $region76: #{tpu_custom_call.1} parent=1 // pred_region
      %1434 = vsyncadd [#allocation4], 0
      %s1435 = sshll.u32 [#allocation13], 4
      %s1436 = int_to_ptr.vmem [resolvable:$true] %s1435
      %s1437 = sshll.u32 %s12, 4
      %s1438 = int_to_ptr.hbm [resolvable:$true] %s1437
      %1443 = dma.vmem_to_hbm [thread:$0]  %s1436, 256, %s1438, [#allocation4], 128, 128, 8
    $region77: #{tpu_custom_call.1} parent=1 // pred_fallthru
      _
    // Predicated region
    $region78: #{tpu_custom_call.1} parent=1 // pred_check
      _
    $region79: #{tpu_custom_call.1} parent=1 // pred_check_branch
      %1445 = sbr.rel (0) target = $region81
    $region80: #{tpu_custom_call.1} parent=1 // pred_region
      %1447 = dma.done [#allocation4], 256
    $region81: #{tpu_custom_call.1} parent=1 // pred_fallthru
      _
    %1448 = vsyncpa [#allocation3], 1
    %1449 = vsyncpa [#allocation6], 1
    %1450 = vsyncpa [#allocation9], 1
    %1451 = vsyncpa [#allocation12], 1
    %1452 = vsyncpa [#allocation4], 1

// kernel: tpu_custom_call.1
$region0: #{tpu_custom_call.1}
  #allocation0 [shape = 'u32[]', space=smem, size = 0x4, offset = 0x4, fixed_abs, tag = 'smem constant byte address 0x4 - core index']
  #allocation1 [shape = 'u32[72,128]{1,0:T(1,128)}', space=vmem, size = 0x9000, scoped, tag = 'internal scratch']
  %s0 = inlined_call_operand.hbm [shape: f32[16,32], index: 0, kind: input, shape index: {}]
  %s1 = inlined_call_operand.hbm [shape: s8[2,8,8], index: 1, kind: input, shape index: {}]
  %s2 = inlined_call_operand.hbm [shape: bf16[32,96], index: 2, kind: input, shape index: {}]
  %s3 = inlined_call_operand.vmem [shape: f32[1,96], index: 3, kind: input, shape index: {}]
  %s4 = inlined_call_operand.hbm [shape: bf16[32,32], index: 4, kind: input, shape index: {}]
  %s5 = inlined_call_operand.vmem [shape: f32[1,32], index: 5, kind: input, shape index: {}]
  %s6 = inlined_call_operand.hbm [shape: bf16[32,32], index: 6, kind: input, shape index: {}]
  %s7 = inlined_call_operand.vmem [shape: f32[1,32], index: 7, kind: input, shape index: {}]
  %s8 = inlined_call_operand.hbm [shape: bf16[32,32], index: 8, kind: input, shape index: {}]
  %s9 = inlined_call_operand.vmem [shape: f32[1,32], index: 9, kind: input, shape index: {}]
  %s10 = inlined_call_operand.vmem [shape: f32[1,32], index: 10, kind: input, shape index: {}]
  %s11 = inlined_call_operand.vmem [shape: f32[1,32], index: 11, kind: input, shape index: {}]
  %s12 = inlined_call_operand.hbm [shape: f32[16,32], index: 12, kind: output, shape index: {}]
  %s13 = sld [smem:[#allocation0]]
  $region82: #{tpu_custom_call.1} parent=0
    _
  %s15 = ssub.s32 1, %s13
  %s16 = scalar_select 0, %s15, %s13
  $region1: #{tpu_custom_call.1} parent=0
    #allocation2 [shape = 'u8[8192]{0}', space=vmem, size = 0x2000, scoped, tag = 'input window, operand 0, single buffered']
    #allocation3 [shape = 's32[1]{0}', space=sflag, size = 0x4, scoped, tag = 'scoped memory for tpu_custom_call.1']
    #allocation4 [shape = 's32[1]{0}', space=sflag, size = 0x4, scoped, tag = 'scoped memory for tpu_custom_call.1']
    #allocation5 [shape = 'u8[2048]{0}', space=vmem, size = 0x800, scoped, tag = 'input window, operand 1, single buffered']
    #allocation6 [shape = 's32[1]{0}', space=sflag, size = 0x4, scoped, tag = 'scoped memory for tpu_custom_call.1']
    #allocation7 [shape = 'u8[8192]{0}', space=vmem, size = 0x2000, scoped, tag = 'input window, operand 2, single buffered']
    #allocation8 [shape = 'u8[8192]{0}', space=vmem, size = 0x2000, scoped, tag = 'input window, operand 4, single buffered']
    #allocation9 [shape = 's32[1]{0}', space=sflag, size = 0x4, scoped, tag = 'scoped memory for tpu_custom_call.1']
    #allocation10 [shape = 'u8[8192]{0}', space=vmem, size = 0x2000, scoped, tag = 'input window, operand 6, single buffered']
    #allocation11 [shape = 'u8[8192]{0}', space=vmem, size = 0x2000, scoped, tag = 'input window, operand 8, single buffered']
    #allocation12 [shape = 's32[1]{0}', space=sflag, size = 0x4, scoped, tag = 'scoped memory for tpu_custom_call.1']
    #allocation13 [shape = 'u8[8192]{0}', space=vmem, size = 0x2000, scoped, tag = 'output window, operand 0, single buffered']
    %17 = vsyncpa [#allocation3], 0
    %18 = vsyncpa [#allocation6], 0
    %19 = vsyncpa [#allocation9], 0
    %20 = vsyncpa [#allocation12], 0
    %21 = vsyncpa [#allocation4], 0
    // Predicated region
    $region2: #{tpu_custom_call.1} parent=1 // pred_check
      _
    $region3: #{tpu_custom_call.1} parent=1 // pred_check_branch
      %23 = sbr.rel (0) target = $region5
    $region4: #{tpu_custom_call.1} parent=1 // pred_region
      %25 = vsyncadd [#allocation3], 0
      %s26 = sshll.u32 %s0, 4
      %s27 = int_to_ptr.hbm [resolvable:$true] %s26
      %s28 = sshll.u32 [#allocation2], 4
      %s29 = int_to_ptr.vmem [resolvable:$true] %s28
      %34 = dma.hbm_to_vmem [thread:$0]  %s27, 256, %s29, [#allocation3], 128, 128, 8
    $region5: #{tpu_custom_call.1} parent=1 // pred_fallthru
      _
    // Predicated region
    $region6: #{tpu_custom_call.1} parent=1 // pred_check
      _
    $region7: #{tpu_custom_call.1} parent=1 // pred_check_branch
      %36 = sbr.rel (0) target = $region9
    $region8: #{tpu_custom_call.1} parent=1 // pred_region
      %38 = vsyncadd [#allocation6], 0
      %s39 = sshll.u32 %s1, 4
      %s40 = int_to_ptr.hbm [resolvable:$true] %s39
      %s41 = sshll.u32 [#allocation5], 4
      %s42 = int_to_ptr.vmem [resolvable:$true] %s41
      %47 = dma.hbm_to_vmem [thread:$0]  %s40, 64, %s42, [#allocation6], 32, 32, 2
    $region9: #{tpu_custom_call.1} parent=1 // pred_fallthru
      _
    // Predicated region
    $region10: #{tpu_custom_call.1} parent=1 // pred_check
      _
    $region11: #{tpu_custom_call.1} parent=1 // pred_check_branch
      %49 = sbr.rel (0) target = $region13
    $region12: #{tpu_custom_call.1} parent=1 // pred_region
      %51 = vsyncadd [#allocation6], 0
      %s52 = sshll.u32 %s2, 4
      %s53 = int_to_ptr.hbm [resolvable:$true] %s52
      %s54 = sshll.u32 [#allocation7], 4
      %s55 = int_to_ptr.vmem [resolvable:$true] %s54
      %60 = dma.hbm_to_vmem [thread:$0]  %s53, 256, %s55, [#allocation6], 64, 64, 4
    $region13: #{tpu_custom_call.1} parent=1 // pred_fallthru
      _
    // Predicated region
    $region14: #{tpu_custom_call.1} parent=1 // pred_check
      _
    $region15: #{tpu_custom_call.1} parent=1 // pred_check_branch
      %62 = sbr.rel (0) target = $region17
    $region16: #{tpu_custom_call.1} parent=1 // pred_region
      _
    $region17: #{tpu_custom_call.1} parent=1 // pred_fallthru
      _
    // Predicated region
    $region18: #{tpu_custom_call.1} parent=1 // pred_check
      _
    $region19: #{tpu_custom_call.1} parent=1 // pred_check_branch
      %64 = sbr.rel (0) target = $region21
    $region20: #{tpu_custom_call.1} parent=1 // pred_region
      %66 = vsyncadd [#allocation9], 0
      %s67 = sshll.u32 %s4, 4
      %s68 = int_to_ptr.hbm [resolvable:$true] %s67
      %s69 = sshll.u32 [#allocation8], 4
      %s70 = int_to_ptr.vmem [resolvable:$true] %s69
      %75 = dma.hbm_to_vmem [thread:$0]  %s68, 256, %s70, [#allocation9], 64, 64, 4
    $region21: #{tpu_custom_call.1} parent=1 // pred_fallthru
      _
    // Predicated region
    $region22: #{tpu_custom_call.1} parent=1 // pred_check
      _
    $region23: #{tpu_custom_call.1} parent=1 // pred_check_branch
      %77 = sbr.rel (0) target = $region25
    $region24: #{tpu_custom_call.1} parent=1 // pred_region
      _
    $region25: #{tpu_custom_call.1} parent=1 // pred_fallthru
      _
    // Predicated region
    $region26: #{tpu_custom_call.1} parent=1 // pred_check
      _
    $region27: #{tpu_custom_call.1} parent=1 // pred_check_branch
      %79 = sbr.rel (0) target = $region29
    $region28: #{tpu_custom_call.1} parent=1 // pred_region
      %81 = vsyncadd [#allocation9], 0
      %s82 = sshll.u32 %s6, 4
      %s83 = int_to_ptr.hbm [resolvable:$true] %s82
      %s84 = sshll.u32 [#allocation10], 4
      %s85 = int_to_ptr.vmem [resolvable:$true] %s84
      %90 = dma.hbm_to_vmem [thread:$0]  %s83, 256, %s85, [#allocation9], 64, 64, 4
    $region29: #{tpu_custom_call.1} parent=1 // pred_fallthru
      _
    // Predicated region
    $region30: #{tpu_custom_call.1} parent=1 // pred_check
      _
    $region31: #{tpu_custom_call.1} parent=1 // pred_check_branch
      %92 = sbr.rel (0) target = $region33
    $region32: #{tpu_custom_call.1} parent=1 // pred_region
      _
    $region33: #{tpu_custom_call.1} parent=1 // pred_fallthru
      _
    // Predicated region
    $region34: #{tpu_custom_call.1} parent=1 // pred_check
      _
    $region35: #{tpu_custom_call.1} parent=1 // pred_check_branch
      %94 = sbr.rel (0) target = $region37
    $region36: #{tpu_custom_call.1} parent=1 // pred_region
      %96 = vsyncadd [#allocation12], 0
      %s97 = sshll.u32 %s8, 4
      %s98 = int_to_ptr.hbm [resolvable:$true] %s97
      %s99 = sshll.u32 [#allocation11], 4
      %s100 = int_to_ptr.vmem [resolvable:$true] %s99
      %105 = dma.hbm_to_vmem [thread:$0]  %s98, 256, %s100, [#allocation12], 64, 64, 4
    $region37: #{tpu_custom_call.1} parent=1 // pred_fallthru
      _
    // Predicated region
    $region38: #{tpu_custom_call.1} parent=1 // pred_check
      _
    $region39: #{tpu_custom_call.1} parent=1 // pred_check_branch
      %107 = sbr.rel (0) target = $region41
    $region40: #{tpu_custom_call.1} parent=1 // pred_region
      _
    $region41: #{tpu_custom_call.1} parent=1 // pred_fallthru
      _
    // Predicated region
    $region42: #{tpu_custom_call.1} parent=1 // pred_check
      _
    $region43: #{tpu_custom_call.1} parent=1 // pred_check_branch
      %109 = sbr.rel (0) target = $region45
    $region44: #{tpu_custom_call.1} parent=1 // pred_region
      _
    $region45: #{tpu_custom_call.1} parent=1 // pred_fallthru
      _
    // Predicated region
    $region46: #{tpu_custom_call.1} parent=1 // pred_check
      _
    $region47: #{tpu_custom_call.1} parent=1 // pred_check_branch
      %111 = sbr.rel (0) target = $region49
    $region48: #{tpu_custom_call.1} parent=1 // pred_region
      _
    $region49: #{tpu_custom_call.1} parent=1 // pred_fallthru
      _
    // Predicated region
    $region50: #{tpu_custom_call.1} parent=1 // pred_check
      _
    $region51: #{tpu_custom_call.1} parent=1 // pred_check_branch
      %113 = sbr.rel (0) target = $region53
    $region52: #{tpu_custom_call.1} parent=1 // pred_region
      %115 = dma.done [#allocation3], 256
    $region53: #{tpu_custom_call.1} parent=1 // pred_fallthru
      _
    // Predicated region
    $region54: #{tpu_custom_call.1} parent=1 // pred_check
      _
    $region55: #{tpu_custom_call.1} parent=1 // pred_check_branch
      %117 = sbr.rel (0) target = $region57
    $region56: #{tpu_custom_call.1} parent=1 // pred_region
      %119 = dma.done [#allocation6], 64
    $region57: #{tpu_custom_call.1} parent=1 // pred_fallthru
      _
    // Predicated region
    $region58: #{tpu_custom_call.1} parent=1 // pred_check
      _
    $region59: #{tpu_custom_call.1} parent=1 // pred_check_branch
      %121 = sbr.rel (0) target = $region61
    $region60: #{tpu_custom_call.1} parent=1 // pred_region
      %123 = dma.done [#allocation6], 256
    $region61: #{tpu_custom_call.1} parent=1 // pred_fallthru
      _
    // Predicated region
    $region62: #{tpu_custom_call.1} parent=1 // pred_check
      _
    $region63: #{tpu_custom_call.1} parent=1 // pred_check_branch
      %125 = sbr.rel (0) target = $region65
    $region64: #{tpu_custom_call.1} parent=1 // pred_region
      %127 = dma.done [#allocation9], 256
    $region65: #{tpu_custom_call.1} parent=1 // pred_fallthru
      _
    // Predicated region
    $region66: #{tpu_custom_call.1} parent=1 // pred_check
      _
    $region67: #{tpu_custom_call.1} parent=1 // pred_check_branch
      %129 = sbr.rel (0) target = $region69
    $region68: #{tpu_custom_call.1} parent=1 // pred_region
      %131 = dma.done [#allocation9], 256
    $region69: #{tpu_custom_call.1} parent=1 // pred_fallthru
      _
    // Predicated region
    $region70: #{tpu_custom_call.1} parent=1 // pred_check
      _
    $region71: #{tpu_custom_call.1} parent=1 // pred_check_branch
      %133 = sbr.rel (0) target = $region73
    $region72: #{tpu_custom_call.1} parent=1 // pred_region
      %135 = dma.done [#allocation12], 256
    $region73: #{tpu_custom_call.1} parent=1 // pred_fallthru
      _
    %v137 = vld [vmem:[#allocation2] sm:$0xff]
    %v138 = vld [vmem:[#allocation2 + $0x8] sm:$0xff]
    %v139 = vpack.c.bf16 %v138, %v137
    %v140 = vld [vmem:[#allocation7] sm:$0xf]
    %v141 = vld [vmem:[#allocation7 + $0x4] sm:$0xf]
    %v142 = vld [vmem:[#allocation7 + $0x8] sm:$0xf]
    %v143 = vld [vmem:[#allocation7 + $0xc] sm:$0xf]
    %v144 = vld [vmem:[%s3] sm:$0x1]
    %v146 = vperm.slane %v144, 0
    %v152 = vunpack.c.l.b16 %v140
    %v153 = vunpack.c.l.b16 %v141
    %v154 = vunpack.c.l.b16 %v142
    %v155 = vunpack.c.l.b16 %v143
    %v156 = vpack.c.b16 %v153, %v152
    %v157 = vpack.c.b16 %v155, %v154
    %vm160 = vcmask 261120
    %v162 = vsel %vm160, %v139, 0
    %164 = vmatpush.bf16.msra.mxu0 0
    %165 = vmatpush.bf16.msra.mxu0 0
    %166 = vmatpush.bf16.msra.mxu0 0
    %167 = vmatpush.bf16.msra.mxu0 0
    %168 = vmatpush.bf16.msra.mxu0 0
    %169 = vmatpush.bf16.msra.mxu0 0
    %170 = vmatpush.bf16.msra.mxu0 %v157
    %171 = vmatpush.bf16.msra.mxu0 %v156
    %172 = vmatmul.bf16.gmra.mxu0 %v162
    %v173 = vpop.f32.mrf.mxu0
    %v174 = vadd.f32 %v146, %v173
    %v175 = vpop.f32.mrf.mxu0
    %v176 = vadd.f32 %v146, %v175
    %177 = vdwg.mxu0
    %v178 = vpack.c.bf16 %v174, %v174
    %v179 = vpack.c.bf16 %v176, %v176
    %v180 = vld [vmem:[#allocation5] sm:$0x3]
    %v181 = vld [vmem:[#allocation5 + $0x2] sm:$0x3]
    %v182 = vunpack.c.0.s8 %v180
    %v183 = vunpack.c.0.s8 %v181
    %v184 = vcvt.s32.f32 %v182
    %v185 = vcvt.s32.f32 %v183
    %vm186 = vcmp.ne.f32.partialorder %v184, 0.0
    %vm187 = vcmp.ne.f32.partialorder %v185, 0.0
    %v189 = vunpack.c.l.b16 %v178
    %v190 = vpack.c.b16 %v189, %v189
    %191 = vrot.lane.b32.xlu0 %v190, 96
    %v192 = vpop.permute.xlu0 %191
    %vm193 = vcmask 31744
    %v195 = vsel %vm193, %v178, 0
    %v198 = vsel %vm193, %v192, 0
    %200 = vmatpush.bf16.xpose.msra.mxu0 0
    %201 = vmatpush.bf16.xpose.msra.mxu0 0
    %202 = vmatpush.bf16.xpose.msra.mxu0 0
    %203 = vmatpush.bf16.xpose.msra.mxu0 0
    %204 = vmatpush.bf16.xpose.msra.mxu0 0
    %205 = vmatpush.bf16.xpose.msra.mxu0 0
    %206 = vmatpush.bf16.xpose.msra.mxu0 0
    %207 = vmatpush.bf16.xpose.msra.mxu0 %v198
    %208 = vmatmul.bf16.gmra.mxu0 %v195
    %v209 = vpop.f32.mrf.mxu0
    %v210 = vadd.f32 0.0, %v209
    %v211 = vpop.f32.mrf.mxu0
    %212 = vdwg.mxu0
    %v214 = vunpack.c.l.b16 %v179
    %v215 = vpack.c.b16 %v214, %v214
    %216 = vrot.lane.b32.xlu0 %v215, 96
    %v217 = vpop.permute.xlu0 %216
    %v219 = vsel %vm193, %v179, 0
    %v222 = vsel %vm193, %v217, 0
    %224 = vmatpush.bf16.xpose.msra.mxu0 0
    %225 = vmatpush.bf16.xpose.msra.mxu0 0
    %226 = vmatpush.bf16.xpose.msra.mxu0 0
    %227 = vmatpush.bf16.xpose.msra.mxu0 0
    %228 = vmatpush.bf16.xpose.msra.mxu0 0
    %229 = vmatpush.bf16.xpose.msra.mxu0 0
    %230 = vmatpush.bf16.xpose.msra.mxu0 0
    %231 = vmatpush.bf16.xpose.msra.mxu0 %v222
    %232 = vmatmul.bf16.gmra.mxu0 %v219
    %v233 = vpop.f32.mrf.mxu0
    %v234 = vadd.f32 0.0, %v233
    %v235 = vpop.f32.mrf.mxu0
    %236 = vdwg.mxu0
    %v237 = vsel %vm186, %v210, -1e+09
    %v238 = vsel %vm187, %v234, -1e+09
    %vm239 = vcmask 64512
    %v240 = vsel %vm239, %v237, -inf
    %241 = vmax.xlane.f32.xlu0 %v240
    %v242 = vpop.xlane.xlu0 %241
    %v243 = vsel %vm239, %v238, -inf
    %244 = vmax.xlane.f32.xlu0 %v243
    %v245 = vpop.xlane.xlu0 %244
    %v246 = vsub.f32 %v237, %v242
    %v247 = vsub.f32 %v238, %v245
    %v248 = vmul.f32 %v246, 1.442695
    %v249 = vpow.pop %v248
    %v250 = vmul.f32 %v247, 1.442695
    %v251 = vpow.pop %v250
    %v252 = vsel %vm239, %v249, 0.0
    %253 = vadd.xlane.f32.xlu0 %v252
    %v254 = vpop.xlane.xlu0 %253
    %v255 = vsel %vm239, %v251, 0.0
    %256 = vadd.xlane.f32.xlu0 %v255
    %v257 = vpop.xlane.xlu0 %256
    %v258 = vrcp.pop %v254
    %v259 = vrcp.pop %v257
    %v260 = vmul.f32 %v249, %v258
    %v261 = vmul.f32 %v251, %v259
    %v262 = vpack.c.bf16 %v260, %v260
    %v263 = vpack.c.bf16 %v261, %v261
    %264 = vrot.lane.b32.xlu0 %v190, 64
    %v265 = vpop.permute.xlu0 %264
    %v267 = vsel %vm239, %v262, 0
    %vm269 = vcmask 1043456
    %v271 = vsel %vm269, %v265, 0
    %273 = vmatpush.bf16.msra.mxu0 0
    %274 = vmatpush.bf16.msra.mxu0 0
    %275 = vmatpush.bf16.msra.mxu0 0
    %276 = vmatpush.bf16.msra.mxu0 0
    %277 = vmatpush.bf16.msra.mxu0 0
    %278 = vmatpush.bf16.msra.mxu0 0
    %279 = vmatpush.bf16.msra.mxu0 0
    %280 = vmatpush.bf16.msra.mxu0 %v271
    %281 = vmatmul.bf16.gmra.mxu0 %v267
    %v282 = vpop.f32.mrf.mxu0
    %v283 = vadd.f32 0.0, %v282
    %v284 = vpop.f32.mrf.mxu0
    %285 = vdwg.mxu0
    %286 = vrot.lane.b32.xlu0 %v215, 64
    %v287 = vpop.permute.xlu0 %286
    %v289 = vsel %vm239, %v263, 0
    %v292 = vsel %vm269, %v287, 0
    %294 = vmatpush.bf16.msra.mxu0 0
    %295 = vmatpush.bf16.msra.mxu0 0
    %296 = vmatpush.bf16.msra.mxu0 0
    %297 = vmatpush.bf16.msra.mxu0 0
    %298 = vmatpush.bf16.msra.mxu0 0
    %299 = vmatpush.bf16.msra.mxu0 0
    %300 = vmatpush.bf16.msra.mxu0 0
    %301 = vmatpush.bf16.msra.mxu0 %v292
    %302 = vmatmul.bf16.gmra.mxu0 %v289
    %v303 = vpop.f32.mrf.mxu0
    %v304 = vadd.f32 0.0, %v303
    %v305 = vpop.f32.mrf.mxu0
    %306 = vdwg.mxu0
    %307 = vrot.lane.b32.xlu0 %v190, 124
    %v308 = vpop.permute.xlu0 %307
    %309 = vrot.lane.b32.xlu0 %v190, 92
    %v310 = vpop.permute.xlu0 %309
    %v312 = vsel %vm193, %v308, 0
    %v315 = vsel %vm193, %v310, 0
    %317 = vmatpush.bf16.xpose.msra.mxu0 0
    %318 = vmatpush.bf16.xpose.msra.mxu0 0
    %319 = vmatpush.bf16.xpose.msra.mxu0 0
    %320 = vmatpush.bf16.xpose.msra.mxu0 0
    %321 = vmatpush.bf16.xpose.msra.mxu0 0
    %322 = vmatpush.bf16.xpose.msra.mxu0 0
    %323 = vmatpush.bf16.xpose.msra.mxu0 0
    %324 = vmatpush.bf16.xpose.msra.mxu0 %v315
    %325 = vmatmul.bf16.gmra.mxu0 %v312
    %v326 = vpop.f32.mrf.mxu0
    %v327 = vadd.f32 0.0, %v326
    %v328 = vpop.f32.mrf.mxu0
    %329 = vdwg.mxu0
    %330 = vrot.lane.b32.xlu0 %v215, 124
    %v331 = vpop.permute.xlu0 %330
    %332 = vrot.lane.b32.xlu0 %v215, 92
    %v333 = vpop.permute.xlu0 %332
    %v335 = vsel %vm193, %v331, 0
    %v338 = vsel %vm193, %v333, 0
    %340 = vmatpush.bf16.xpose.msra.mxu0 0
    %341 = vmatpush.bf16.xpose.msra.mxu0 0
    %342 = vmatpush.bf16.xpose.msra.mxu0 0
    %343 = vmatpush.bf16.xpose.msra.mxu0 0
    %344 = vmatpush.bf16.xpose.msra.mxu0 0
    %345 = vmatpush.bf16.xpose.msra.mxu0 0
    %346 = vmatpush.bf16.xpose.msra.mxu0 0
    %347 = vmatpush.bf16.xpose.msra.mxu0 %v338
    %348 = vmatmul.bf16.gmra.mxu0 %v335
    %v349 = vpop.f32.mrf.mxu0
    %v350 = vadd.f32 0.0, %v349
    %v351 = vpop.f32.mrf.mxu0
    %352 = vdwg.mxu0
    %v353 = vsel %vm186, %v327, -1e+09
    %v354 = vsel %vm187, %v350, -1e+09
    %v355 = vsel %vm239, %v353, -inf
    %356 = vmax.xlane.f32.xlu0 %v355
    %v357 = vpop.xlane.xlu0 %356
    %v358 = vsel %vm239, %v354, -inf
    %359 = vmax.xlane.f32.xlu0 %v358
    %v360 = vpop.xlane.xlu0 %359
    %v361 = vsub.f32 %v353, %v357
    %v362 = vsub.f32 %v354, %v360
    %v363 = vmul.f32 %v361, 1.442695
    %v364 = vpow.pop %v363
    %v365 = vmul.f32 %v362, 1.442695
    %v366 = vpow.pop %v365
    %v367 = vsel %vm239, %v364, 0.0
    %368 = vadd.xlane.f32.xlu0 %v367
    %v369 = vpop.xlane.xlu0 %368
    %v370 = vsel %vm239, %v366, 0.0
    %371 = vadd.xlane.f32.xlu0 %v370
    %v372 = vpop.xlane.xlu0 %371
    %v373 = vrcp.pop %v369
    %v374 = vrcp.pop %v372
    %v375 = vmul.f32 %v364, %v373
    %v376 = vmul.f32 %v366, %v374
    %v377 = vpack.c.bf16 %v375, %v375
    %v378 = vpack.c.bf16 %v376, %v376
    %379 = vrot.lane.b32.xlu0 %v190, 60
    %v380 = vpop.permute.xlu0 %379
    %v382 = vsel %vm239, %v377, 0
    %v385 = vsel %vm269, %v380, 0
    %387 = vmatpush.bf16.msra.mxu0 0
    %388 = vmatpush.bf16.msra.mxu0 0
    %389 = vmatpush.bf16.msra.mxu0 0
    %390 = vmatpush.bf16.msra.mxu0 0
    %391 = vmatpush.bf16.msra.mxu0 0
    %392 = vmatpush.bf16.msra.mxu0 0
    %393 = vmatpush.bf16.msra.mxu0 0
    %394 = vmatpush.bf16.msra.mxu0 %v385
    %395 = vmatmul.bf16.gmra.mxu0 %v382
    %v396 = vpop.f32.mrf.mxu0
    %v397 = vadd.f32 0.0, %v396
    %v398 = vpop.f32.mrf.mxu0
    %399 = vdwg.mxu0
    %400 = vrot.lane.b32.xlu0 %v215, 60
    %v401 = vpop.permute.xlu0 %400
    %v403 = vsel %vm239, %v378, 0
    %v406 = vsel %vm269, %v401, 0
    %408 = vmatpush.bf16.msra.mxu0 0
    %409 = vmatpush.bf16.msra.mxu0 0
    %410 = vmatpush.bf16.msra.mxu0 0
    %411 = vmatpush.bf16.msra.mxu0 0
    %412 = vmatpush.bf16.msra.mxu0 0
    %413 = vmatpush.bf16.msra.mxu0 0
    %414 = vmatpush.bf16.msra.mxu0 0
    %415 = vmatpush.bf16.msra.mxu0 %v406
    %416 = vmatmul.bf16.gmra.mxu0 %v403
    %v417 = vpop.f32.mrf.mxu0
    %v418 = vadd.f32 0.0, %v417
    %v419 = vpop.f32.mrf.mxu0
    %420 = vdwg.mxu0
    %421 = vrot.lane.b32.xlu0 %v190, 120
    %v422 = vpop.permute.xlu0 %421
    %423 = vrot.lane.b32.xlu0 %v190, 88
    %v424 = vpop.permute.xlu0 %423
    %v426 = vsel %vm193, %v422, 0
    %v429 = vsel %vm193, %v424, 0
    %431 = vmatpush.bf16.xpose.msra.mxu0 0
    %432 = vmatpush.bf16.xpose.msra.mxu0 0
    %433 = vmatpush.bf16.xpose.msra.mxu0 0
    %434 = vmatpush.bf16.xpose.msra.mxu0 0
    %435 = vmatpush.bf16.xpose.msra.mxu0 0
    %436 = vmatpush.bf16.xpose.msra.mxu0 0
    %437 = vmatpush.bf16.xpose.msra.mxu0 0
    %438 = vmatpush.bf16.xpose.msra.mxu0 %v429
    %439 = vmatmul.bf16.gmra.mxu0 %v426
    %v440 = vpop.f32.mrf.mxu0
    %v441 = vadd.f32 0.0, %v440
    %v442 = vpop.f32.mrf.mxu0
    %443 = vdwg.mxu0
    %444 = vrot.lane.b32.xlu0 %v215, 120
    %v445 = vpop.permute.xlu0 %444
    %446 = vrot.lane.b32.xlu0 %v215, 88
    %v447 = vpop.permute.xlu0 %446
    %v449 = vsel %vm193, %v445, 0
    %v452 = vsel %vm193, %v447, 0
    %454 = vmatpush.bf16.xpose.msra.mxu0 0
    %455 = vmatpush.bf16.xpose.msra.mxu0 0
    %456 = vmatpush.bf16.xpose.msra.mxu0 0
    %457 = vmatpush.bf16.xpose.msra.mxu0 0
    %458 = vmatpush.bf16.xpose.msra.mxu0 0
    %459 = vmatpush.bf16.xpose.msra.mxu0 0
    %460 = vmatpush.bf16.xpose.msra.mxu0 0
    %461 = vmatpush.bf16.xpose.msra.mxu0 %v452
    %462 = vmatmul.bf16.gmra.mxu0 %v449
    %v463 = vpop.f32.mrf.mxu0
    %v464 = vadd.f32 0.0, %v463
    %v465 = vpop.f32.mrf.mxu0
    %466 = vdwg.mxu0
    %v467 = vsel %vm186, %v441, -1e+09
    %v468 = vsel %vm187, %v464, -1e+09
    %v469 = vsel %vm239, %v467, -inf
    %470 = vmax.xlane.f32.xlu0 %v469
    %v471 = vpop.xlane.xlu0 %470
    %v472 = vsel %vm239, %v468, -inf
    %473 = vmax.xlane.f32.xlu0 %v472
    %v474 = vpop.xlane.xlu0 %473
    %v475 = vsub.f32 %v467, %v471
    %v476 = vsub.f32 %v468, %v474
    %v477 = vmul.f32 %v475, 1.442695
    %v478 = vpow.pop %v477
    %v479 = vmul.f32 %v476, 1.442695
    %v480 = vpow.pop %v479
    %v481 = vsel %vm239, %v478, 0.0
    %482 = vadd.xlane.f32.xlu0 %v481
    %v483 = vpop.xlane.xlu0 %482
    %v484 = vsel %vm239, %v480, 0.0
    %485 = vadd.xlane.f32.xlu0 %v484
    %v486 = vpop.xlane.xlu0 %485
    %v487 = vrcp.pop %v483
    %v488 = vrcp.pop %v486
    %v489 = vmul.f32 %v478, %v487
    %v490 = vmul.f32 %v480, %v488
    %v491 = vpack.c.bf16 %v489, %v489
    %v492 = vpack.c.bf16 %v490, %v490
    %493 = vrot.lane.b32.xlu0 %v190, 56
    %v494 = vpop.permute.xlu0 %493
    %v496 = vsel %vm239, %v491, 0
    %v499 = vsel %vm269, %v494, 0
    %501 = vmatpush.bf16.msra.mxu0 0
    %502 = vmatpush.bf16.msra.mxu0 0
    %503 = vmatpush.bf16.msra.mxu0 0
    %504 = vmatpush.bf16.msra.mxu0 0
    %505 = vmatpush.bf16.msra.mxu0 0
    %506 = vmatpush.bf16.msra.mxu0 0
    %507 = vmatpush.bf16.msra.mxu0 0
    %508 = vmatpush.bf16.msra.mxu0 %v499
    %509 = vmatmul.bf16.gmra.mxu0 %v496
    %v510 = vpop.f32.mrf.mxu0
    %v511 = vadd.f32 0.0, %v510
    %v512 = vpop.f32.mrf.mxu0
    %513 = vdwg.mxu0
    %514 = vrot.lane.b32.xlu0 %v215, 56
    %v515 = vpop.permute.xlu0 %514
    %v517 = vsel %vm239, %v492, 0
    %v520 = vsel %vm269, %v515, 0
    %522 = vmatpush.bf16.msra.mxu0 0
    %523 = vmatpush.bf16.msra.mxu0 0
    %524 = vmatpush.bf16.msra.mxu0 0
    %525 = vmatpush.bf16.msra.mxu0 0
    %526 = vmatpush.bf16.msra.mxu0 0
    %527 = vmatpush.bf16.msra.mxu0 0
    %528 = vmatpush.bf16.msra.mxu0 0
    %529 = vmatpush.bf16.msra.mxu0 %v520
    %530 = vmatmul.bf16.gmra.mxu0 %v517
    %v531 = vpop.f32.mrf.mxu0
    %v532 = vadd.f32 0.0, %v531
    %v533 = vpop.f32.mrf.mxu0
    %534 = vdwg.mxu0
    %535 = vrot.lane.b32.xlu0 %v190, 116
    %v536 = vpop.permute.xlu0 %535
    %537 = vrot.lane.b32.xlu0 %v190, 84
    %v538 = vpop.permute.xlu0 %537
    %v540 = vsel %vm193, %v536, 0
    %v543 = vsel %vm193, %v538, 0
    %545 = vmatpush.bf16.xpose.msra.mxu0 0
    %546 = vmatpush.bf16.xpose.msra.mxu0 0
    %547 = vmatpush.bf16.xpose.msra.mxu0 0
    %548 = vmatpush.bf16.xpose.msra.mxu0 0
    %549 = vmatpush.bf16.xpose.msra.mxu0 0
    %550 = vmatpush.bf16.xpose.msra.mxu0 0
    %551 = vmatpush.bf16.xpose.msra.mxu0 0
    %552 = vmatpush.bf16.xpose.msra.mxu0 %v543
    %553 = vmatmul.bf16.gmra.mxu0 %v540
    %v554 = vpop.f32.mrf.mxu0
    %v555 = vadd.f32 0.0, %v554
    %v556 = vpop.f32.mrf.mxu0
    %557 = vdwg.mxu0
    %558 = vrot.lane.b32.xlu0 %v215, 116
    %v559 = vpop.permute.xlu0 %558
    %560 = vrot.lane.b32.xlu0 %v215, 84
    %v561 = vpop.permute.xlu0 %560
    %v563 = vsel %vm193, %v559, 0
    %v566 = vsel %vm193, %v561, 0
    %568 = vmatpush.bf16.xpose.msra.mxu0 0
    %569 = vmatpush.bf16.xpose.msra.mxu0 0
    %570 = vmatpush.bf16.xpose.msra.mxu0 0
    %571 = vmatpush.bf16.xpose.msra.mxu0 0
    %572 = vmatpush.bf16.xpose.msra.mxu0 0
    %573 = vmatpush.bf16.xpose.msra.mxu0 0
    %574 = vmatpush.bf16.xpose.msra.mxu0 0
    %575 = vmatpush.bf16.xpose.msra.mxu0 %v566
    %576 = vmatmul.bf16.gmra.mxu0 %v563
    %v577 = vpop.f32.mrf.mxu0
    %v578 = vadd.f32 0.0, %v577
    %v579 = vpop.f32.mrf.mxu0
    %580 = vdwg.mxu0
    %v581 = vsel %vm186, %v555, -1e+09
    %v582 = vsel %vm187, %v578, -1e+09
    %v583 = vsel %vm239, %v581, -inf
    %584 = vmax.xlane.f32.xlu0 %v583
    %v585 = vpop.xlane.xlu0 %584
    %v586 = vsel %vm239, %v582, -inf
    %587 = vmax.xlane.f32.xlu0 %v586
    %v588 = vpop.xlane.xlu0 %587
    %v589 = vsub.f32 %v581, %v585
    %v590 = vsub.f32 %v582, %v588
    %v591 = vmul.f32 %v589, 1.442695
    %v592 = vpow.pop %v591
    %v593 = vmul.f32 %v590, 1.442695
    %v594 = vpow.pop %v593
    %v595 = vsel %vm239, %v592, 0.0
    %596 = vadd.xlane.f32.xlu0 %v595
    %v597 = vpop.xlane.xlu0 %596
    %v598 = vsel %vm239, %v594, 0.0
    %599 = vadd.xlane.f32.xlu0 %v598
    %v600 = vpop.xlane.xlu0 %599
    %v601 = vrcp.pop %v597
    %v602 = vrcp.pop %v600
    %v603 = vmul.f32 %v592, %v601
    %v604 = vmul.f32 %v594, %v602
    %v605 = vpack.c.bf16 %v603, %v603
    %v606 = vpack.c.bf16 %v604, %v604
    %607 = vrot.lane.b32.xlu0 %v190, 52
    %v608 = vpop.permute.xlu0 %607
    %v610 = vsel %vm239, %v605, 0
    %v613 = vsel %vm269, %v608, 0
    %615 = vmatpush.bf16.msra.mxu0 0
    %616 = vmatpush.bf16.msra.mxu0 0
    %617 = vmatpush.bf16.msra.mxu0 0
    %618 = vmatpush.bf16.msra.mxu0 0
    %619 = vmatpush.bf16.msra.mxu0 0
    %620 = vmatpush.bf16.msra.mxu0 0
    %621 = vmatpush.bf16.msra.mxu0 0
    %622 = vmatpush.bf16.msra.mxu0 %v613
    %623 = vmatmul.bf16.gmra.mxu0 %v610
    %v624 = vpop.f32.mrf.mxu0
    %v625 = vadd.f32 0.0, %v624
    %v626 = vpop.f32.mrf.mxu0
    %627 = vdwg.mxu0
    %628 = vrot.lane.b32.xlu0 %v215, 52
    %v629 = vpop.permute.xlu0 %628
    %v631 = vsel %vm239, %v606, 0
    %v634 = vsel %vm269, %v629, 0
    %636 = vmatpush.bf16.msra.mxu0 0
    %637 = vmatpush.bf16.msra.mxu0 0
    %638 = vmatpush.bf16.msra.mxu0 0
    %639 = vmatpush.bf16.msra.mxu0 0
    %640 = vmatpush.bf16.msra.mxu0 0
    %641 = vmatpush.bf16.msra.mxu0 0
    %642 = vmatpush.bf16.msra.mxu0 0
    %643 = vmatpush.bf16.msra.mxu0 %v634
    %644 = vmatmul.bf16.gmra.mxu0 %v631
    %v645 = vpop.f32.mrf.mxu0
    %v646 = vadd.f32 0.0, %v645
    %v647 = vpop.f32.mrf.mxu0
    %648 = vdwg.mxu0
    %649 = vrot.lane.b32.xlu0 %v190, 112
    %v650 = vpop.permute.xlu0 %649
    %651 = vrot.lane.b32.xlu0 %v190, 80
    %v652 = vpop.permute.xlu0 %651
    %v654 = vsel %vm193, %v650, 0
    %v657 = vsel %vm193, %v652, 0
    %659 = vmatpush.bf16.xpose.msra.mxu0 0
    %660 = vmatpush.bf16.xpose.msra.mxu0 0
    %661 = vmatpush.bf16.xpose.msra.mxu0 0
    %662 = vmatpush.bf16.xpose.msra.mxu0 0
    %663 = vmatpush.bf16.xpose.msra.mxu0 0
    %664 = vmatpush.bf16.xpose.msra.mxu0 0
    %665 = vmatpush.bf16.xpose.msra.mxu0 0
    %666 = vmatpush.bf16.xpose.msra.mxu0 %v657
    %667 = vmatmul.bf16.gmra.mxu0 %v654
    %v668 = vpop.f32.mrf.mxu0
    %v669 = vadd.f32 0.0, %v668
    %v670 = vpop.f32.mrf.mxu0
    %671 = vdwg.mxu0
    %672 = vrot.lane.b32.xlu0 %v215, 112
    %v673 = vpop.permute.xlu0 %672
    %674 = vrot.lane.b32.xlu0 %v215, 80
    %v675 = vpop.permute.xlu0 %674
    %v677 = vsel %vm193, %v673, 0
    %v680 = vsel %vm193, %v675, 0
    %682 = vmatpush.bf16.xpose.msra.mxu0 0
    %683 = vmatpush.bf16.xpose.msra.mxu0 0
    %684 = vmatpush.bf16.xpose.msra.mxu0 0
    %685 = vmatpush.bf16.xpose.msra.mxu0 0
    %686 = vmatpush.bf16.xpose.msra.mxu0 0
    %687 = vmatpush.bf16.xpose.msra.mxu0 0
    %688 = vmatpush.bf16.xpose.msra.mxu0 0
    %689 = vmatpush.bf16.xpose.msra.mxu0 %v680
    %690 = vmatmul.bf16.gmra.mxu0 %v677
    %v691 = vpop.f32.mrf.mxu0
    %v692 = vadd.f32 0.0, %v691
    %v693 = vpop.f32.mrf.mxu0
    %694 = vdwg.mxu0
    %v695 = vsel %vm186, %v669, -1e+09
    %v696 = vsel %vm187, %v692, -1e+09
    %v697 = vsel %vm239, %v695, -inf
    %698 = vmax.xlane.f32.xlu0 %v697
    %v699 = vpop.xlane.xlu0 %698
    %v700 = vsel %vm239, %v696, -inf
    %701 = vmax.xlane.f32.xlu0 %v700
    %v702 = vpop.xlane.xlu0 %701
    %v703 = vsub.f32 %v695, %v699
    %v704 = vsub.f32 %v696, %v702
    %v705 = vmul.f32 %v703, 1.442695
    %v706 = vpow.pop %v705
    %v707 = vmul.f32 %v704, 1.442695
    %v708 = vpow.pop %v707
    %v709 = vsel %vm239, %v706, 0.0
    %710 = vadd.xlane.f32.xlu0 %v709
    %v711 = vpop.xlane.xlu0 %710
    %v712 = vsel %vm239, %v708, 0.0
    %713 = vadd.xlane.f32.xlu0 %v712
    %v714 = vpop.xlane.xlu0 %713
    %v715 = vrcp.pop %v711
    %v716 = vrcp.pop %v714
    %v717 = vmul.f32 %v706, %v715
    %v718 = vmul.f32 %v708, %v716
    %v719 = vpack.c.bf16 %v717, %v717
    %v720 = vpack.c.bf16 %v718, %v718
    %721 = vrot.lane.b32.xlu0 %v190, 48
    %v722 = vpop.permute.xlu0 %721
    %v724 = vsel %vm239, %v719, 0
    %v727 = vsel %vm269, %v722, 0
    %729 = vmatpush.bf16.msra.mxu0 0
    %730 = vmatpush.bf16.msra.mxu0 0
    %731 = vmatpush.bf16.msra.mxu0 0
    %732 = vmatpush.bf16.msra.mxu0 0
    %733 = vmatpush.bf16.msra.mxu0 0
    %734 = vmatpush.bf16.msra.mxu0 0
    %735 = vmatpush.bf16.msra.mxu0 0
    %736 = vmatpush.bf16.msra.mxu0 %v727
    %737 = vmatmul.bf16.gmra.mxu0 %v724
    %v738 = vpop.f32.mrf.mxu0
    %v739 = vadd.f32 0.0, %v738
    %v740 = vpop.f32.mrf.mxu0
    %741 = vdwg.mxu0
    %742 = vrot.lane.b32.xlu0 %v215, 48
    %v743 = vpop.permute.xlu0 %742
    %v745 = vsel %vm239, %v720, 0
    %v748 = vsel %vm269, %v743, 0
    %750 = vmatpush.bf16.msra.mxu0 0
    %751 = vmatpush.bf16.msra.mxu0 0
    %752 = vmatpush.bf16.msra.mxu0 0
    %753 = vmatpush.bf16.msra.mxu0 0
    %754 = vmatpush.bf16.msra.mxu0 0
    %755 = vmatpush.bf16.msra.mxu0 0
    %756 = vmatpush.bf16.msra.mxu0 0
    %757 = vmatpush.bf16.msra.mxu0 %v748
    %758 = vmatmul.bf16.gmra.mxu0 %v745
    %v759 = vpop.f32.mrf.mxu0
    %v760 = vadd.f32 0.0, %v759
    %v761 = vpop.f32.mrf.mxu0
    %762 = vdwg.mxu0
    %763 = vrot.lane.b32.xlu0 %v190, 108
    %v764 = vpop.permute.xlu0 %763
    %765 = vrot.lane.b32.xlu0 %v190, 76
    %v766 = vpop.permute.xlu0 %765
    %v768 = vsel %vm193, %v764, 0
    %v771 = vsel %vm193, %v766, 0
    %773 = vmatpush.bf16.xpose.msra.mxu0 0
    %774 = vmatpush.bf16.xpose.msra.mxu0 0
    %775 = vmatpush.bf16.xpose.msra.mxu0 0
    %776 = vmatpush.bf16.xpose.msra.mxu0 0
    %777 = vmatpush.bf16.xpose.msra.mxu0 0
    %778 = vmatpush.bf16.xpose.msra.mxu0 0
    %779 = vmatpush.bf16.xpose.msra.mxu0 0
    %780 = vmatpush.bf16.xpose.msra.mxu0 %v771
    %781 = vmatmul.bf16.gmra.mxu0 %v768
    %v782 = vpop.f32.mrf.mxu0
    %v783 = vadd.f32 0.0, %v782
    %v784 = vpop.f32.mrf.mxu0
    %785 = vdwg.mxu0
    %786 = vrot.lane.b32.xlu0 %v215, 108
    %v787 = vpop.permute.xlu0 %786
    %788 = vrot.lane.b32.xlu0 %v215, 76
    %v789 = vpop.permute.xlu0 %788
    %v791 = vsel %vm193, %v787, 0
    %v794 = vsel %vm193, %v789, 0
    %796 = vmatpush.bf16.xpose.msra.mxu0 0
    %797 = vmatpush.bf16.xpose.msra.mxu0 0
    %798 = vmatpush.bf16.xpose.msra.mxu0 0
    %799 = vmatpush.bf16.xpose.msra.mxu0 0
    %800 = vmatpush.bf16.xpose.msra.mxu0 0
    %801 = vmatpush.bf16.xpose.msra.mxu0 0
    %802 = vmatpush.bf16.xpose.msra.mxu0 0
    %803 = vmatpush.bf16.xpose.msra.mxu0 %v794
    %804 = vmatmul.bf16.gmra.mxu0 %v791
    %v805 = vpop.f32.mrf.mxu0
    %v806 = vadd.f32 0.0, %v805
    %v807 = vpop.f32.mrf.mxu0
    %808 = vdwg.mxu0
    %v809 = vsel %vm186, %v783, -1e+09
    %v810 = vsel %vm187, %v806, -1e+09
    %v811 = vsel %vm239, %v809, -inf
    %812 = vmax.xlane.f32.xlu0 %v811
    %v813 = vpop.xlane.xlu0 %812
    %v814 = vsel %vm239, %v810, -inf
    %815 = vmax.xlane.f32.xlu0 %v814
    %v816 = vpop.xlane.xlu0 %815
    %v817 = vsub.f32 %v809, %v813
    %v818 = vsub.f32 %v810, %v816
    %v819 = vmul.f32 %v817, 1.442695
    %v820 = vpow.pop %v819
    %v821 = vmul.f32 %v818, 1.442695
    %v822 = vpow.pop %v821
    %v823 = vsel %vm239, %v820, 0.0
    %824 = vadd.xlane.f32.xlu0 %v823
    %v825 = vpop.xlane.xlu0 %824
    %v826 = vsel %vm239, %v822, 0.0
    %827 = vadd.xlane.f32.xlu0 %v826
    %v828 = vpop.xlane.xlu0 %827
    %v829 = vrcp.pop %v825
    %v830 = vrcp.pop %v828
    %v831 = vmul.f32 %v820, %v829
    %v832 = vmul.f32 %v822, %v830
    %v833 = vpack.c.bf16 %v831, %v831
    %v834 = vpack.c.bf16 %v832, %v832
    %835 = vrot.lane.b32.xlu0 %v190, 44
    %v836 = vpop.permute.xlu0 %835
    %v838 = vsel %vm239, %v833, 0
    %v841 = vsel %vm269, %v836, 0
    %843 = vmatpush.bf16.msra.mxu0 0
    %844 = vmatpush.bf16.msra.mxu0 0
    %845 = vmatpush.bf16.msra.mxu0 0
    %846 = vmatpush.bf16.msra.mxu0 0
    %847 = vmatpush.bf16.msra.mxu0 0
    %848 = vmatpush.bf16.msra.mxu0 0
    %849 = vmatpush.bf16.msra.mxu0 0
    %850 = vmatpush.bf16.msra.mxu0 %v841
    %851 = vmatmul.bf16.gmra.mxu0 %v838
    %v852 = vpop.f32.mrf.mxu0
    %v853 = vadd.f32 0.0, %v852
    %v854 = vpop.f32.mrf.mxu0
    %855 = vdwg.mxu0
    %856 = vrot.lane.b32.xlu0 %v215, 44
    %v857 = vpop.permute.xlu0 %856
    %v859 = vsel %vm239, %v834, 0
    %v862 = vsel %vm269, %v857, 0
    %864 = vmatpush.bf16.msra.mxu0 0
    %865 = vmatpush.bf16.msra.mxu0 0
    %866 = vmatpush.bf16.msra.mxu0 0
    %867 = vmatpush.bf16.msra.mxu0 0
    %868 = vmatpush.bf16.msra.mxu0 0
    %869 = vmatpush.bf16.msra.mxu0 0
    %870 = vmatpush.bf16.msra.mxu0 0
    %871 = vmatpush.bf16.msra.mxu0 %v862
    %872 = vmatmul.bf16.gmra.mxu0 %v859
    %v873 = vpop.f32.mrf.mxu0
    %v874 = vadd.f32 0.0, %v873
    %v875 = vpop.f32.mrf.mxu0
    %876 = vdwg.mxu0
    %877 = vrot.lane.b32.xlu0 %v190, 104
    %v878 = vpop.permute.xlu0 %877
    %879 = vrot.lane.b32.xlu0 %v190, 72
    %v880 = vpop.permute.xlu0 %879
    %v882 = vsel %vm193, %v878, 0
    %v885 = vsel %vm193, %v880, 0
    %887 = vmatpush.bf16.xpose.msra.mxu0 0
    %888 = vmatpush.bf16.xpose.msra.mxu0 0
    %889 = vmatpush.bf16.xpose.msra.mxu0 0
    %890 = vmatpush.bf16.xpose.msra.mxu0 0
    %891 = vmatpush.bf16.xpose.msra.mxu0 0
    %892 = vmatpush.bf16.xpose.msra.mxu0 0
    %893 = vmatpush.bf16.xpose.msra.mxu0 0
    %894 = vmatpush.bf16.xpose.msra.mxu0 %v885
    %895 = vmatmul.bf16.gmra.mxu0 %v882
    %v896 = vpop.f32.mrf.mxu0
    %v897 = vadd.f32 0.0, %v896
    %v898 = vpop.f32.mrf.mxu0
    %899 = vdwg.mxu0
    %900 = vrot.lane.b32.xlu0 %v215, 104
    %v901 = vpop.permute.xlu0 %900
    %902 = vrot.lane.b32.xlu0 %v215, 72
    %v903 = vpop.permute.xlu0 %902
    %v905 = vsel %vm193, %v901, 0
    %v908 = vsel %vm193, %v903, 0
    %910 = vmatpush.bf16.xpose.msra.mxu0 0
    %911 = vmatpush.bf16.xpose.msra.mxu0 0
    %912 = vmatpush.bf16.xpose.msra.mxu0 0
    %913 = vmatpush.bf16.xpose.msra.mxu0 0
    %914 = vmatpush.bf16.xpose.msra.mxu0 0
    %915 = vmatpush.bf16.xpose.msra.mxu0 0
    %916 = vmatpush.bf16.xpose.msra.mxu0 0
    %917 = vmatpush.bf16.xpose.msra.mxu0 %v908
    %918 = vmatmul.bf16.gmra.mxu0 %v905
    %v919 = vpop.f32.mrf.mxu0
    %v920 = vadd.f32 0.0, %v919
    %v921 = vpop.f32.mrf.mxu0
    %922 = vdwg.mxu0
    %v923 = vsel %vm186, %v897, -1e+09
    %v924 = vsel %vm187, %v920, -1e+09
    %v925 = vsel %vm239, %v923, -inf
    %926 = vmax.xlane.f32.xlu0 %v925
    %v927 = vpop.xlane.xlu0 %926
    %v928 = vsel %vm239, %v924, -inf
    %929 = vmax.xlane.f32.xlu0 %v928
    %v930 = vpop.xlane.xlu0 %929
    %v931 = vsub.f32 %v923, %v927
    %v932 = vsub.f32 %v924, %v930
    %v933 = vmul.f32 %v931, 1.442695
    %v934 = vpow.pop %v933
    %v935 = vmul.f32 %v932, 1.442695
    %v936 = vpow.pop %v935
    %v937 = vsel %vm239, %v934, 0.0
    %938 = vadd.xlane.f32.xlu0 %v937
    %v939 = vpop.xlane.xlu0 %938
    %v940 = vsel %vm239, %v936, 0.0
    %941 = vadd.xlane.f32.xlu0 %v940
    %v942 = vpop.xlane.xlu0 %941
    %v943 = vrcp.pop %v939
    %v944 = vrcp.pop %v942
    %v945 = vmul.f32 %v934, %v943
    %v946 = vmul.f32 %v936, %v944
    %v947 = vpack.c.bf16 %v945, %v945
    %v948 = vpack.c.bf16 %v946, %v946
    %949 = vrot.lane.b32.xlu0 %v190, 40
    %v950 = vpop.permute.xlu0 %949
    %v952 = vsel %vm239, %v947, 0
    %v955 = vsel %vm269, %v950, 0
    %957 = vmatpush.bf16.msra.mxu0 0
    %958 = vmatpush.bf16.msra.mxu0 0
    %959 = vmatpush.bf16.msra.mxu0 0
    %960 = vmatpush.bf16.msra.mxu0 0
    %961 = vmatpush.bf16.msra.mxu0 0
    %962 = vmatpush.bf16.msra.mxu0 0
    %963 = vmatpush.bf16.msra.mxu0 0
    %964 = vmatpush.bf16.msra.mxu0 %v955
    %965 = vmatmul.bf16.gmra.mxu0 %v952
    %v966 = vpop.f32.mrf.mxu0
    %v967 = vadd.f32 0.0, %v966
    %v968 = vpop.f32.mrf.mxu0
    %969 = vdwg.mxu0
    %970 = vrot.lane.b32.xlu0 %v215, 40
    %v971 = vpop.permute.xlu0 %970
    %v973 = vsel %vm239, %v948, 0
    %v976 = vsel %vm269, %v971, 0
    %978 = vmatpush.bf16.msra.mxu0 0
    %979 = vmatpush.bf16.msra.mxu0 0
    %980 = vmatpush.bf16.msra.mxu0 0
    %981 = vmatpush.bf16.msra.mxu0 0
    %982 = vmatpush.bf16.msra.mxu0 0
    %983 = vmatpush.bf16.msra.mxu0 0
    %984 = vmatpush.bf16.msra.mxu0 0
    %985 = vmatpush.bf16.msra.mxu0 %v976
    %986 = vmatmul.bf16.gmra.mxu0 %v973
    %v987 = vpop.f32.mrf.mxu0
    %v988 = vadd.f32 0.0, %v987
    %v989 = vpop.f32.mrf.mxu0
    %990 = vdwg.mxu0
    %991 = vrot.lane.b32.xlu0 %v190, 100
    %v992 = vpop.permute.xlu0 %991
    %993 = vrot.lane.b32.xlu0 %v190, 68
    %v994 = vpop.permute.xlu0 %993
    %v996 = vsel %vm193, %v992, 0
    %v999 = vsel %vm193, %v994, 0
    %1001 = vmatpush.bf16.xpose.msra.mxu0 0
    %1002 = vmatpush.bf16.xpose.msra.mxu0 0
    %1003 = vmatpush.bf16.xpose.msra.mxu0 0
    %1004 = vmatpush.bf16.xpose.msra.mxu0 0
    %1005 = vmatpush.bf16.xpose.msra.mxu0 0
    %1006 = vmatpush.bf16.xpose.msra.mxu0 0
    %1007 = vmatpush.bf16.xpose.msra.mxu0 0
    %1008 = vmatpush.bf16.xpose.msra.mxu0 %v999
    %1009 = vmatmul.bf16.gmra.mxu0 %v996
    %v1010 = vpop.f32.mrf.mxu0
    %v1011 = vadd.f32 0.0, %v1010
    %v1012 = vpop.f32.mrf.mxu0
    %1013 = vdwg.mxu0
    %1014 = vrot.lane.b32.xlu0 %v215, 100
    %v1015 = vpop.permute.xlu0 %1014
    %1016 = vrot.lane.b32.xlu0 %v215, 68
    %v1017 = vpop.permute.xlu0 %1016
    %v1019 = vsel %vm193, %v1015, 0
    %v1022 = vsel %vm193, %v1017, 0
    %1024 = vmatpush.bf16.xpose.msra.mxu0 0
    %1025 = vmatpush.bf16.xpose.msra.mxu0 0
    %1026 = vmatpush.bf16.xpose.msra.mxu0 0
    %1027 = vmatpush.bf16.xpose.msra.mxu0 0
    %1028 = vmatpush.bf16.xpose.msra.mxu0 0
    %1029 = vmatpush.bf16.xpose.msra.mxu0 0
    %1030 = vmatpush.bf16.xpose.msra.mxu0 0
    %1031 = vmatpush.bf16.xpose.msra.mxu0 %v1022
    %1032 = vmatmul.bf16.gmra.mxu0 %v1019
    %v1033 = vpop.f32.mrf.mxu0
    %v1034 = vadd.f32 0.0, %v1033
    %v1035 = vpop.f32.mrf.mxu0
    %1036 = vdwg.mxu0
    %v1037 = vsel %vm186, %v1011, -1e+09
    %v1038 = vsel %vm187, %v1034, -1e+09
    %v1039 = vsel %vm239, %v1037, -inf
    %1040 = vmax.xlane.f32.xlu0 %v1039
    %v1041 = vpop.xlane.xlu0 %1040
    %v1042 = vsel %vm239, %v1038, -inf
    %1043 = vmax.xlane.f32.xlu0 %v1042
    %v1044 = vpop.xlane.xlu0 %1043
    %v1045 = vsub.f32 %v1037, %v1041
    %v1046 = vsub.f32 %v1038, %v1044
    %v1047 = vmul.f32 %v1045, 1.442695
    %v1048 = vpow.pop %v1047
    %v1049 = vmul.f32 %v1046, 1.442695
    %v1050 = vpow.pop %v1049
    %v1051 = vsel %vm239, %v1048, 0.0
    %1052 = vadd.xlane.f32.xlu0 %v1051
    %v1053 = vpop.xlane.xlu0 %1052
    %v1054 = vsel %vm239, %v1050, 0.0
    %1055 = vadd.xlane.f32.xlu0 %v1054
    %v1056 = vpop.xlane.xlu0 %1055
    %v1057 = vrcp.pop %v1053
    %v1058 = vrcp.pop %v1056
    %v1059 = vmul.f32 %v1048, %v1057
    %v1060 = vmul.f32 %v1050, %v1058
    %v1061 = vpack.c.bf16 %v1059, %v1059
    %v1062 = vpack.c.bf16 %v1060, %v1060
    %1063 = vrot.lane.b32.xlu0 %v190, 36
    %v1064 = vpop.permute.xlu0 %1063
    %v1066 = vsel %vm239, %v1061, 0
    %v1069 = vsel %vm269, %v1064, 0
    %1071 = vmatpush.bf16.msra.mxu0 0
    %1072 = vmatpush.bf16.msra.mxu0 0
    %1073 = vmatpush.bf16.msra.mxu0 0
    %1074 = vmatpush.bf16.msra.mxu0 0
    %1075 = vmatpush.bf16.msra.mxu0 0
    %1076 = vmatpush.bf16.msra.mxu0 0
    %1077 = vmatpush.bf16.msra.mxu0 0
    %1078 = vmatpush.bf16.msra.mxu0 %v1069
    %1079 = vmatmul.bf16.gmra.mxu0 %v1066
    %v1080 = vpop.f32.mrf.mxu0
    %v1081 = vadd.f32 0.0, %v1080
    %v1082 = vpop.f32.mrf.mxu0
    %1083 = vdwg.mxu0
    %1084 = vrot.lane.b32.xlu0 %v215, 36
    %v1085 = vpop.permute.xlu0 %1084
    %v1087 = vsel %vm239, %v1062, 0
    %v1090 = vsel %vm269, %v1085, 0
    %1092 = vmatpush.bf16.msra.mxu0 0
    %1093 = vmatpush.bf16.msra.mxu0 0
    %1094 = vmatpush.bf16.msra.mxu0 0
    %1095 = vmatpush.bf16.msra.mxu0 0
    %1096 = vmatpush.bf16.msra.mxu0 0
    %1097 = vmatpush.bf16.msra.mxu0 0
    %1098 = vmatpush.bf16.msra.mxu0 0
    %1099 = vmatpush.bf16.msra.mxu0 %v1090
    %1100 = vmatmul.bf16.gmra.mxu0 %v1087
    %v1101 = vpop.f32.mrf.mxu0
    %v1102 = vadd.f32 0.0, %v1101
    %v1103 = vpop.f32.mrf.mxu0
    %1104 = vdwg.mxu0
    %1107 = vrot.lane.b32.xlu0 %v397, 4
    %v1108 = vpop.permute.xlu0 %1107
    %1109 = vrot.lane.b32.xlu0 %v418, 4
    %v1110 = vpop.permute.xlu0 %1109
    %1115 = vrot.lane.b32.xlu0 %v511, 8
    %v1116 = vpop.permute.xlu0 %1115
    %1117 = vrot.lane.b32.xlu0 %v532, 8
    %v1118 = vpop.permute.xlu0 %1117
    %1123 = vrot.lane.b32.xlu0 %v625, 12
    %v1124 = vpop.permute.xlu0 %1123
    %1125 = vrot.lane.b32.xlu0 %v646, 12
    %v1126 = vpop.permute.xlu0 %1125
    %1131 = vrot.lane.b32.xlu0 %v739, 16
    %v1132 = vpop.permute.xlu0 %1131
    %1133 = vrot.lane.b32.xlu0 %v760, 16
    %v1134 = vpop.permute.xlu0 %1133
    %1139 = vrot.lane.b32.xlu0 %v853, 20
    %v1140 = vpop.permute.xlu0 %1139
    %1141 = vrot.lane.b32.xlu0 %v874, 20
    %v1142 = vpop.permute.xlu0 %1141
    %1147 = vrot.lane.b32.xlu0 %v967, 24
    %v1148 = vpop.permute.xlu0 %1147
    %1149 = vrot.lane.b32.xlu0 %v988, 24
    %v1150 = vpop.permute.xlu0 %1149
    %1155 = vrot.lane.b32.xlu0 %v1081, 28
    %v1156 = vpop.permute.xlu0 %1155
    %1157 = vrot.lane.b32.xlu0 %v1102, 28
    %v1158 = vpop.permute.xlu0 %1157
    %v1161 = vsel %vm193, %v283, %v1108
    %v1162 = vsel %vm193, %v304, %v1110
    %v1163 = vsel %vm239, %v1161, %v1116
    %v1164 = vsel %vm239, %v1162, %v1118
    %vm1165 = vcmask 97280
    %v1166 = vsel %vm1165, %v1163, %v1124
    %v1167 = vsel %vm1165, %v1164, %v1126
    %vm1168 = vcmask 130048
    %v1169 = vsel %vm1168, %v1166, %v1132
    %v1170 = vsel %vm1168, %v1167, %v1134
    %vm1171 = vcmask 162816
    %v1172 = vsel %vm1171, %v1169, %v1140
    %v1173 = vsel %vm1171, %v1170, %v1142
    %vm1174 = vcmask 195584
    %v1175 = vsel %vm1174, %v1172, %v1148
    %v1176 = vsel %vm1174, %v1173, %v1150
    %vm1177 = vcmask 228352
    %v1178 = vsel %vm1177, %v1175, %v1156
    %v1179 = vsel %vm1177, %v1176, %v1158
    %v1180 = vld [vmem:[%s10] sm:$0x1]
    %v1181 = vld [vmem:[%s11] sm:$0x1]
    %v1182 = vpack.c.bf16 %v1179, %v1178
    %v1183 = vld [vmem:[#allocation8] sm:$0xf]
    %v1184 = vld [vmem:[#allocation8 + $0x4] sm:$0xf]
    %v1185 = vld [vmem:[#allocation8 + $0x8] sm:$0xf]
    %v1186 = vld [vmem:[#allocation8 + $0xc] sm:$0xf]
    %v1187 = vld [vmem:[%s5] sm:$0x1]
    %v1189 = vperm.slane %v1187, 0
    %v1195 = vunpack.c.l.b16 %v1183
    %v1196 = vunpack.c.l.b16 %v1184
    %v1197 = vunpack.c.l.b16 %v1185
    %v1198 = vunpack.c.l.b16 %v1186
    %v1199 = vpack.c.b16 %v1196, %v1195
    %v1200 = vpack.c.b16 %v1198, %v1197
    %v1204 = vsel %vm160, %v1182, 0
    %1206 = vmatpush.bf16.msra.mxu0 0
    %1207 = vmatpush.bf16.msra.mxu0 0
    %1208 = vmatpush.bf16.msra.mxu0 0
    %1209 = vmatpush.bf16.msra.mxu0 0
    %1210 = vmatpush.bf16.msra.mxu0 0
    %1211 = vmatpush.bf16.msra.mxu0 0
    %1212 = vmatpush.bf16.msra.mxu0 %v1200
    %1213 = vmatpush.bf16.msra.mxu0 %v1199
    %1214 = vmatmul.bf16.gmra.mxu0 %v1204
    %v1215 = vpop.f32.mrf.mxu0
    %v1216 = vadd.f32 %v1189, %v1215
    %v1217 = vpop.f32.mrf.mxu0
    %v1218 = vadd.f32 %v1189, %v1217
    %1219 = vdwg.mxu0
    %v1220 = vadd.f32 %v1216, %v137
    %v1221 = vadd.f32 %v1218, %v138
    %v1222 = vsel %vm160, %v1220, 0.0
    %1223 = vadd.xlane.f32.xlu0 %v1222
    %v1224 = vpop.xlane.xlu0 %1223
    %v1225 = vsel %vm160, %v1221, 0.0
    %1226 = vadd.xlane.f32.xlu0 %v1225
    %v1227 = vpop.xlane.xlu0 %1226
    %v1228 = vrcp.pop 32.0
    %v1229 = vmul.f32 32.0, %v1228
    %v1230 = vsub.f32 1.0, %v1229
    %v1231 = vmul.f32 %v1228, %v1230
    %v1232 = vadd.f32 %v1228, %v1231
    %vm1233 = vweird.f32 %v1228
    %v1234 = vsel %vm1233, %v1228, %v1232
    %v1235 = vmul.f32 %v1224, %v1234
    %v1236 = vmul.f32 %v1227, %v1234
    %v1237 = vmul.f32 %v1220, %v1220
    %v1238 = vmul.f32 %v1221, %v1221
    %v1239 = vsel %vm160, %v1237, 0.0
    %1240 = vadd.xlane.f32.xlu0 %v1239
    %v1241 = vpop.xlane.xlu0 %1240
    %v1242 = vsel %vm160, %v1238, 0.0
    %1243 = vadd.xlane.f32.xlu0 %v1242
    %v1244 = vpop.xlane.xlu0 %1243
    %v1245 = vmul.f32 %v1241, %v1234
    %v1246 = vmul.f32 %v1244, %v1234
    %v1247 = vmul.f32 %v1235, %v1235
    %v1248 = vmul.f32 %v1236, %v1236
    %v1249 = vsub.f32 %v1245, %v1247
    %v1250 = vsub.f32 %v1246, %v1248
    %v1251 = vsub.f32 %v1220, %v1235
    %v1252 = vsub.f32 %v1221, %v1236
    %v1253 = vadd.f32 %v1249, 1e-05
    %v1254 = vadd.f32 %v1250, 1e-05
    %v1255 = vrsqrt.pop %v1253
    %v1256 = vmul.f32 %v1255, %v1253
    %v1257 = vmul.f32 %v1256, %v1255
    %v1258 = vmul.f32 0.5, %v1257
    %v1259 = vsub.f32 1.5, %v1258
    %v1260 = vmul.f32 %v1255, %v1259
    %vm1261 = vweird.f32 %v1253
    %vm1262 = vweird.f32 %v1255
    %vm1263 = vmor %vm1261, %vm1262
    %v1264 = vsel %vm1263, %v1255, %v1260
    %v1265 = vrsqrt.pop %v1254
    %v1266 = vmul.f32 %v1265, %v1254
    %v1267 = vmul.f32 %v1266, %v1265
    %v1268 = vmul.f32 0.5, %v1267
    %v1269 = vsub.f32 1.5, %v1268
    %v1270 = vmul.f32 %v1265, %v1269
    %vm1271 = vweird.f32 %v1254
    %vm1272 = vweird.f32 %v1265
    %vm1273 = vmor %vm1271, %vm1272
    %v1274 = vsel %vm1273, %v1265, %v1270
    %v1275 = vmul.f32 %v1251, %v1264
    %v1276 = vmul.f32 %v1252, %v1274
    %v1278 = vperm.slane %v1180, 0
    %v1280 = vmul.f32 %v1275, %v1278
    %v1281 = vmul.f32 %v1276, %v1278
    %v1283 = vperm.slane %v1181, 0
    %v1285 = vadd.f32 %v1280, %v1283
    %v1286 = vadd.f32 %v1281, %v1283
    %v1287 = vpack.c.bf16 %v1286, %v1285
    %v1288 = vld [vmem:[#allocation10] sm:$0xf]
    %v1289 = vld [vmem:[#allocation10 + $0x4] sm:$0xf]
    %v1290 = vld [vmem:[#allocation10 + $0x8] sm:$0xf]
    %v1291 = vld [vmem:[#allocation10 + $0xc] sm:$0xf]
    %v1292 = vld [vmem:[%s7] sm:$0x1]
    %v1294 = vperm.slane %v1292, 0
    %v1300 = vunpack.c.l.b16 %v1288
    %v1301 = vunpack.c.l.b16 %v1289
    %v1302 = vunpack.c.l.b16 %v1290
    %v1303 = vunpack.c.l.b16 %v1291
    %v1304 = vpack.c.b16 %v1301, %v1300
    %v1305 = vpack.c.b16 %v1303, %v1302
    %v1309 = vsel %vm160, %v1287, 0
    %1311 = vmatpush.bf16.msra.mxu0 0
    %1312 = vmatpush.bf16.msra.mxu0 0
    %1313 = vmatpush.bf16.msra.mxu0 0
    %1314 = vmatpush.bf16.msra.mxu0 0
    %1315 = vmatpush.bf16.msra.mxu0 0
    %1316 = vmatpush.bf16.msra.mxu0 0
    %1317 = vmatpush.bf16.msra.mxu0 %v1305
    %1318 = vmatpush.bf16.msra.mxu0 %v1304
    %1319 = vmatmul.bf16.gmra.mxu0 %v1309
    %v1320 = vpop.f32.mrf.mxu0
    %v1321 = vadd.f32 %v1294, %v1320
    %v1322 = vpop.f32.mrf.mxu0
    %v1323 = vadd.f32 %v1294, %v1322
    %1324 = vdwg.mxu0
    %vm1325 = vcmp.ge.f32.partialorder %v1321, 0.0
    %vm1326 = vcmp.ge.f32.partialorder %v1323, 0.0
    %v1327 = vmul.f32 %v1321, 0.01
    %v1328 = vmul.f32 %v1323, 0.01
    %v1329 = vsel %vm1325, %v1321, %v1327
    %v1330 = vsel %vm1326, %v1323, %v1328
    %v1331 = vpack.c.bf16 %v1330, %v1329
    %v1332 = vld [vmem:[#allocation11] sm:$0xf]
    %v1333 = vld [vmem:[#allocation11 + $0x4] sm:$0xf]
    %v1334 = vld [vmem:[#allocation11 + $0x8] sm:$0xf]
    %v1335 = vld [vmem:[#allocation11 + $0xc] sm:$0xf]
    %v1336 = vld [vmem:[%s9] sm:$0x1]
    %v1338 = vperm.slane %v1336, 0
    %v1344 = vunpack.c.l.b16 %v1332
    %v1345 = vunpack.c.l.b16 %v1333
    %v1346 = vunpack.c.l.b16 %v1334
    %v1347 = vunpack.c.l.b16 %v1335
    %v1348 = vpack.c.b16 %v1345, %v1344
    %v1349 = vpack.c.b16 %v1347, %v1346
    %v1353 = vsel %vm160, %v1331, 0
    %1355 = vmatpush.bf16.msra.mxu0 0
    %1356 = vmatpush.bf16.msra.mxu0 0
    %1357 = vmatpush.bf16.msra.mxu0 0
    %1358 = vmatpush.bf16.msra.mxu0 0
    %1359 = vmatpush.bf16.msra.mxu0 0
    %1360 = vmatpush.bf16.msra.mxu0 0
    %1361 = vmatpush.bf16.msra.mxu0 %v1349
    %1362 = vmatpush.bf16.msra.mxu0 %v1348
    %1363 = vmatmul.bf16.gmra.mxu0 %v1353
    %v1364 = vpop.f32.mrf.mxu0
    %v1365 = vadd.f32 %v1338, %v1364
    %v1366 = vpop.f32.mrf.mxu0
    %v1367 = vadd.f32 %v1338, %v1366
    %1368 = vdwg.mxu0
    %v1369 = vadd.f32 %v1365, %v1285
    %v1370 = vadd.f32 %v1367, %v1286
    %v1371 = vsel %vm160, %v1369, 0.0
    %1372 = vadd.xlane.f32.xlu0 %v1371
    %v1373 = vpop.xlane.xlu0 %1372
    %v1374 = vsel %vm160, %v1370, 0.0
    %1375 = vadd.xlane.f32.xlu0 %v1374
    %v1376 = vpop.xlane.xlu0 %1375
    %v1377 = vmul.f32 %v1373, %v1234
    %v1378 = vmul.f32 %v1376, %v1234
    %v1379 = vmul.f32 %v1369, %v1369
    %v1380 = vmul.f32 %v1370, %v1370
    %v1381 = vsel %vm160, %v1379, 0.0
    %1382 = vadd.xlane.f32.xlu0 %v1381
    %v1383 = vpop.xlane.xlu0 %1382
    %v1384 = vsel %vm160, %v1380, 0.0
    %1385 = vadd.xlane.f32.xlu0 %v1384
    %v1386 = vpop.xlane.xlu0 %1385
    %v1387 = vmul.f32 %v1383, %v1234
    %v1388 = vmul.f32 %v1386, %v1234
    %v1389 = vmul.f32 %v1377, %v1377
    %v1390 = vmul.f32 %v1378, %v1378
    %v1391 = vsub.f32 %v1387, %v1389
    %v1392 = vsub.f32 %v1388, %v1390
    %v1393 = vsub.f32 %v1369, %v1377
    %v1394 = vsub.f32 %v1370, %v1378
    %v1395 = vadd.f32 %v1391, 1e-05
    %v1396 = vadd.f32 %v1392, 1e-05
    %v1397 = vrsqrt.pop %v1395
    %v1398 = vmul.f32 %v1397, %v1395
    %v1399 = vmul.f32 %v1398, %v1397
    %v1400 = vmul.f32 0.5, %v1399
    %v1401 = vsub.f32 1.5, %v1400
    %v1402 = vmul.f32 %v1397, %v1401
    %vm1403 = vweird.f32 %v1395
    %vm1404 = vweird.f32 %v1397
    %vm1405 = vmor %vm1403, %vm1404
    %v1406 = vsel %vm1405, %v1397, %v1402
    %v1407 = vrsqrt.pop %v1396
    %v1408 = vmul.f32 %v1407, %v1396
    %v1409 = vmul.f32 %v1408, %v1407
    %v1410 = vmul.f32 0.5, %v1409
    %v1411 = vsub.f32 1.5, %v1410
    %v1412 = vmul.f32 %v1407, %v1411
    %vm1413 = vweird.f32 %v1396
    %vm1414 = vweird.f32 %v1407
    %vm1415 = vmor %vm1413, %vm1414
    %v1416 = vsel %vm1415, %v1407, %v1412
    %v1417 = vmul.f32 %v1393, %v1406
    %v1418 = vmul.f32 %v1394, %v1416
    %v1419 = vmul.f32 %v1417, %v1278
    %v1420 = vmul.f32 %v1418, %v1278
    %v1421 = vadd.f32 %v1419, %v1283
    %v1422 = vadd.f32 %v1420, %v1283
    %vm1423 = vcmp.ge.f32.partialorder %v1421, 0.0
    %vm1424 = vcmp.ge.f32.partialorder %v1422, 0.0
    %v1425 = vmul.f32 %v1421, 0.01
    %v1426 = vmul.f32 %v1422, 0.01
    %v1427 = vsel %vm1423, %v1421, %v1425
    %v1428 = vsel %vm1424, %v1422, %v1426
    %1429 = vst.msk [vmem:[#allocation13] sm:$0xff] %vm160, %v1427
    %1430 = vst.msk [vmem:[#allocation13 + $0x8] sm:$0xff] %vm160, %v1428
    // Predicated region
    $region74: #{tpu_custom_call.1} parent=1 // pred_check
      _
    $region75: #{tpu_custom_call.1} parent=1 // pred_check_branch
      %1432 = sbr.rel (0) target = $region77
    $region76: #{tpu_custom_call.1} parent=1 // pred_region
      %1434 = vsyncadd [#allocation4], 0
      %s1435 = sshll.u32 [#allocation13], 4
      %s1436 = int_to_ptr.vmem [resolvable:$true] %s1435
      %s1437 = sshll.u32 %s12, 4
      %s1438 = int_to_ptr.hbm [resolvable:$true] %s1437
      %1443 = dma.vmem_to_hbm [thread:$0]  %s1436, 256, %s1438, [#allocation4], 128, 128, 8
    $region77: #{tpu_custom_call.1} parent=1 // pred_fallthru
      _
    // Predicated region
    $region78: #{tpu_custom_call.1} parent=1 // pred_check
      _
    $region79: #{tpu_custom_call.1} parent=1 // pred_check_branch
      %1445 = sbr.rel (0) target = $region81
    $region80: #{tpu_custom_call.1} parent=1 // pred_region
      %1447 = dma.done [#allocation4], 256
    $region81: #{tpu_custom_call.1} parent=1 // pred_fallthru
      _
    %1448 = vsyncpa [#allocation3], 1
    %1449 = vsyncpa [#allocation6], 1
    %1450 = vsyncpa [#allocation9], 1
    %1451 = vsyncpa [#allocation12], 1
    %1452 = vsyncpa [#allocation4], 1

</llo_original>
